<compile_context>
chip_gen: v7x
topology: tpu7x:2x2x1
jax: 0.10.0
libtpu: 0.0.40
codegen_flags: <defaults>
</compile_context>

<pallas_src>
import math

import jax
import jax.numpy as jnp
from jax.experimental import pallas as pl
from jax.experimental.pallas import tpu as pltpu


# ---------------------------------------------------------------------------
# Pallas kernel: fused encoder forward for one batch block.
# ---------------------------------------------------------------------------
def _t2m_text_encoder_kernel(
    lens_ref,    # (Bb, 1)     int32   valid lengths (cap_lens) for this block
    feats_ref,   # (T*Bb, W+P) bf16    time-major [word | pos_onehot], flattened
    wx_ref,      # (W+P, 6H)   bf16    folded emb + x-side gate weights [fwd | bwd]
    bx_ref,      # (1, 6H)     f32     folded bias (incl. b_hh_r / b_hh_z)
    whh_ref,     # (2, H, 3H)  bf16    recurrent gate weights, lane-stacked [r|z|n]
    vecs_ref,    # (7, 1, H)   f32     [h0_f, h0_b, b_hh_n_f, b_hh_n_b, b_out1, ln_g, ln_b]
    wo1_ref,     # (2, H, H)   bf16    first output Linear, split over [h_f | h_b]
    wo2_ref,     # (H, O)      bf16    final output Linear
    bo2_ref,     # (1, O)      f32
    out_ref,     # (Bb, O)     f32
):
    f32 = jnp.float32
    bf16 = jnp.bfloat16
    Bb = lens_ref.shape[0]
    TB = feats_ref.shape[0]
    T = TB // Bb
    H = wo2_ref.shape[0]
    H3 = 3 * H

    lens = lens_ref[...]                                   # (Bb, 1) int32

    # --- prologue: ALL x-side gate pre-activations (both directions) in one matmul ---
    gi_all = jnp.dot(feats_ref[...], wx_ref[...],
                     preferred_element_type=f32) + bx_ref[...]        # (T*Bb, 6H)
    # rows [t*Bb:(t+1)*Bb] = timestep t; cols [0:3H] = fwd gates, [3H:6H] = bwd gates

    # Hoist all weight/bias reads out of the unrolled recurrence.
    whh_f = whh_ref[0]
    whh_b = whh_ref[1]
    h0_f = vecs_ref[0]
    h0_b = vecs_ref[1]
    bhn_f = vecs_ref[2]
    bhn_b = vecs_ref[3]
    bo1 = vecs_ref[4]
    ln_g = vecs_ref[5]
    ln_b = vecs_ref[6]

    def sigmoid(v):
        # single EUP op (tanh) instead of exp + true divide on the critical path
        return 0.5 * jnp.tanh(0.5 * v) + 0.5

    def gru_step(gi, h, whh, bhn, keep):
        # PyTorch GRU gate order [r, z, n]; b_ih and b_hh (r,z) are pre-folded into gi.
        gh = jnp.dot(h.astype(bf16), whh, preferred_element_type=f32)  # (Bb, 3H)
        r = sigmoid(gi[:, 0:H] + gh[:, 0:H])
        z = sigmoid(gi[:, H:2 * H] + gh[:, H:2 * H])
        n = jnp.tanh(gi[:, 2 * H:H3] + r * (gh[:, 2 * H:H3] + bhn))
        h_new = n + z * (h - n)                            # == (1-z)*n + z*h
        # pack_padded_sequence semantics: only valid timesteps update the state
        return jnp.where(keep, h_new, h)

    h_f = jnp.broadcast_to(h0_f, (Bb, H))
    h_b = jnp.broadcast_to(h0_b, (Bb, H))
    # Forward and backward recurrences interleaved in one loop: the two per-step matmuls
    # are data-independent and pipeline back-to-back in the MXU.
    for s in range(T):
        tb = T - 1 - s
        gi_f = gi_all[s * Bb:(s + 1) * Bb, 0:H3]
        gi_b = gi_all[tb * Bb:(tb + 1) * Bb, H3:2 * H3]
        h_f = gru_step(gi_f, h_f, whh_f, bhn_f, s < lens)
        h_b = gru_step(gi_b, h_b, whh_b, bhn_b, tb < lens)

    # output_net: Linear(2H->H) on [h_f | h_b] (split weights avoid a concat),
    # LayerNorm, LeakyReLU(0.2), Linear(H->O).
    y = (jnp.dot(h_f.astype(bf16), wo1_ref[0], preferred_element_type=f32)
         + jnp.dot(h_b.astype(bf16), wo1_ref[1], preferred_element_type=f32)
         + bo1)
    mean = jnp.mean(y, axis=-1, keepdims=True)
    var = jnp.mean(jnp.square(y - mean), axis=-1, keepdims=True)
    y = (y - mean) * jax.lax.rsqrt(var + 1e-5)
    y = y * ln_g + ln_b
    y = jnp.where(y > 0, y, 0.2 * y)
    out_ref[...] = (jnp.dot(y.astype(bf16), wo2_ref[...], preferred_element_type=f32)
                    + bo2_ref[...]).astype(out_ref.dtype)


# ---------------------------------------------------------------------------
# Wrapper: fold weights, pack operands, lay out inputs, invoke pallas_call.
# ---------------------------------------------------------------------------
def t2m_text_encoder_forward(params, word_embs, pos_onehot, cap_lens):
    """Equivalent of TextEncoderBiGRUCo.forward(word_embs, pos_onehot, cap_lens)."""
    B, T, W = word_embs.shape
    P = pos_onehot.shape[-1]
    H = params["w_in"].shape[0]
    O = params["w_out2"].shape[0]
    F = W + P
    hi = jax.lax.Precision.HIGHEST
    bf16 = jnp.bfloat16

    # ---- host-side folding: pos_emb + input_emb + x-side GRU gate pre-activations ----
    # x_t = [word_t | pos_t] @ W_embcat + b_emb
    w_embcat = jnp.concatenate(
        [params["w_in"].T,                                              # (W, H)
         jnp.dot(params["w_in"], params["w_pos"], precision=hi).T],     # (P, H)
        axis=0)                                                          # (F, H)
    b_emb = jnp.dot(params["b_pos"], params["w_in"].T, precision=hi) + params["b_in"]

    def fold_dir(w_ih, b_ih, b_hh):
        # gi_t = x_t @ w_ih^T + b_ih (+ b_hh for the r/z gates; b_hh_n stays separate
        # because it is scaled by r inside the cell).
        w_x = jnp.dot(w_embcat, w_ih.T, precision=hi)                    # (F, 3H)
        b_x = jnp.dot(b_emb, w_ih.T, precision=hi) + b_ih                # (3H,)
        b_x = b_x + jnp.concatenate([b_hh[:2 * H], jnp.zeros((H,), jnp.float32)])
        return w_x, b_x

    w_x_f, b_x_f = fold_dir(params["w_ih_f"], params["b_ih_f"], params["b_hh_f"])
    w_x_b, b_x_b = fold_dir(params["w_ih_b"], params["b_ih_b"], params["b_hh_b"])
    w_x = jnp.concatenate([w_x_f, w_x_b], axis=1)                        # (F, 6H)
    b_x = jnp.concatenate([b_x_f, b_x_b]).reshape(1, 6 * H)

    whh = jnp.stack([params["w_hh_f"].T, params["w_hh_b"].T], axis=0)    # (2, H, 3H)
    vecs = jnp.stack([
        params["h0"][0].reshape(1, H), params["h0"][1].reshape(1, H),
        params["b_hh_f"][2 * H:].reshape(1, H), params["b_hh_b"][2 * H:].reshape(1, H),
        params["b_out1"].reshape(1, H),
        params["ln_g"].reshape(1, H), params["ln_b"].reshape(1, H)], axis=0)  # (7,1,H)

    w_out1 = params["w_out1"]                                            # torch (H, 2H)
    wo1 = jnp.stack([w_out1[:, :H].T, w_out1[:, H:].T], axis=0)          # (2, H, H)
    wo2 = params["w_out2"].T                                             # (H, O)
    bo2 = params["b_out2"].reshape(1, O)

    # ---- batch-blocked, time-major input slabs (grid axis = batch blocks) ----
    if B % 256 == 0:
        Bb = 256
    elif B % 128 == 0:
        Bb = 128
    else:
        Bb = B
    nb = B // Bb

    feats = jnp.concatenate([word_embs.astype(jnp.float32),
                             pos_onehot.astype(jnp.float32)], axis=-1)   # (B, T, F)
    # batch-major blocks, time-major flattening inside each block: (nb, T*Bb, F)
    feats = feats.reshape(nb, Bb, T, F).transpose(0, 2, 1, 3).reshape(nb, T * Bb, F)
    feats = feats.astype(bf16)
    lens = cap_lens.astype(jnp.int32).reshape(nb, Bb, 1)

    args = (lens, feats, w_x.astype(bf16), b_x,
            whh.astype(bf16), vecs, wo1.astype(bf16), wo2.astype(bf16), bo2)

    def full_spec(a):   # whole-array VMEM block, constant index map
        return pl.BlockSpec(tuple(a.shape), lambda i, _n=a.ndim: (0,) * _n)

    in_specs = [
        pl.BlockSpec((None, Bb, 1), lambda i: (i, 0, 0)),        # lens
        pl.BlockSpec((None, T * Bb, F), lambda i: (i, 0, 0)),    # feats
        full_spec(args[2]), full_spec(args[3]), full_spec(args[4]),
        full_spec(args[5]), full_spec(args[6]), full_spec(args[7]), full_spec(args[8]),
    ]

    out = pl.pallas_call(
        _t2m_text_encoder_kernel,
        grid=(nb,),
        in_specs=in_specs,
        out_specs=pl.BlockSpec((Bb, O), lambda i: (i, 0)),
        out_shape=jax.ShapeDtypeStruct((B, O), jnp.float32),
        compiler_params=pltpu.CompilerParams(
            dimension_semantics=("parallel",),
            vmem_limit_bytes=48 * 1024 * 1024),
    )(*args)
    return out


# ---------------------------------------------------------------------------
# Pure-JAX reference (mirrors the PyTorch module exactly) for correctness check.
# ---------------------------------------------------------------------------
def ref_forward(params, word_embs, pos_onehot, cap_lens):
    H = params["w_in"].shape[0]
    B, T, _ = word_embs.shape
    pos_embs = pos_onehot @ params["w_pos"].T + params["b_pos"]
    inputs = word_embs + pos_embs
    x = inputs @ params["w_in"].T + params["b_in"]            # (B, T, H)

    def cell(xt, h, w_ih, w_hh, b_ih, b_hh):
        gi = xt @ w_ih.T + b_ih
        gh = h @ w_hh.T + b_hh
        r = jax.nn.sigmoid(gi[:, :H] + gh[:, :H])
        z = jax.nn.sigmoid(gi[:, H:2 * H] + gh[:, H:2 * H])
        n = jnp.tanh(gi[:, 2 * H:] + r * gh[:, 2 * H:])
        return (1.0 - z) * n + z * h

    h_f = jnp.broadcast_to(params["h0"][0], (B, H))
    for t in range(T):
        h_new = cell(x[:, t], h_f, params["w_ih_f"], params["w_hh_f"],
                     params["b_ih_f"], params["b_hh_f"])
        h_f = jnp.where((t < cap_lens)[:, None], h_new, h_f)

    h_b = jnp.broadcast_to(params["h0"][1], (B, H))
    for t in range(T - 1, -1, -1):
        h_new = cell(x[:, t], h_b, params["w_ih_b"], params["w_hh_b"],
                     params["b_ih_b"], params["b_hh_b"])
        h_b = jnp.where((t < cap_lens)[:, None], h_new, h_b)

    gru_last = jnp.concatenate([h_f, h_b], axis=-1)
    y = gru_last @ params["w_out1"].T + params["b_out1"]
    mean = y.mean(-1, keepdims=True)
    var = ((y - mean) ** 2).mean(-1, keepdims=True)
    y = (y - mean) / jnp.sqrt(var + 1e-5)
    y = y * params["ln_g"] + params["ln_b"]
    y = jnp.where(y > 0, y, 0.2 * y)
    return y @ params["w_out2"].T + params["b_out2"]


# ---------------------------------------------------------------------------
# Deterministic parameter construction (mirrors the torch init structure).
# ---------------------------------------------------------------------------
def init_params(key, word_size, pos_size, hidden_size, output_size):
    H = hidden_size
    ks = jax.random.split(key, 13)

    def xavier(k, shape):
        std = math.sqrt(2.0 / (shape[0] + shape[1]))
        return std * jax.random.normal(k, shape, jnp.float32)

    return {
        "w_pos": xavier(ks[0], (word_size, pos_size)),
        "b_pos": jnp.zeros((word_size,), jnp.float32),
        "w_in": xavier(ks[1], (H, word_size)),
        "b_in": jnp.zeros((H,), jnp.float32),
        "w_ih_f": 0.1 * jax.random.normal(ks[2], (3 * H, H), jnp.float32),
        "w_hh_f": 0.1 * jax.random.normal(ks[3], (3 * H, H), jnp.float32),
        "b_ih_f": 0.1 * jax.random.normal(ks[4], (3 * H,), jnp.float32),
        "b_hh_f": 0.1 * jax.random.normal(ks[5], (3 * H,), jnp.float32),
        "w_ih_b": 0.1 * jax.random.normal(ks[6], (3 * H, H), jnp.float32),
        "w_hh_b": 0.1 * jax.random.normal(ks[7], (3 * H, H), jnp.float32),
        "b_ih_b": 0.1 * jax.random.normal(ks[8], (3 * H,), jnp.float32),
        "b_hh_b": 0.1 * jax.random.normal(ks[9], (3 * H,), jnp.float32),
        "h0": jax.random.normal(ks[10], (2, 1, H), jnp.float32),
        "w_out1": xavier(ks[11], (H, 2 * H)),
        "b_out1": jnp.zeros((H,), jnp.float32),
        "ln_g": jnp.ones((H,), jnp.float32),
        "ln_b": jnp.zeros((H,), jnp.float32),
        "w_out2": xavier(ks[12], (output_size, H)),
        "b_out2": jnp.zeros((output_size,), jnp.float32),
    }


if __name__ == "__main__":
    # Small deterministic shapes: batch=2, seq=max_text_len+2=8, word=32, pos=16,
    # hidden=32, output=32.
    B = 2
    max_text_len = 6
    T = max_text_len + 2
    word_size, pos_size, hidden_size, output_size = 32, 16, 32, 32

    key = jax.random.PRNGKey(0)
    kp, kw, kpos = jax.random.split(key, 3)
    params = init_params(kp, word_size, pos_size, hidden_size, output_size)

    # TODO(synk): tokenization + GloVe WordVectorizer lookup is host-side string
    # processing with no Pallas equivalent; feed the resulting tensors directly.
    word_embs = jax.random.normal(kw, (B, T, word_size), jnp.float32)
    pos_ids = jax.random.randint(kpos, (B, T), 0, pos_size)
    pos_onehot = jax.nn.one_hot(pos_ids, pos_size, dtype=jnp.float32)
    cap_lens = jnp.array([T, 5], dtype=jnp.int32)   # variable valid lengths

    out = t2m_text_encoder_forward(params, word_embs, pos_onehot, cap_lens)
    out = jax.block_until_ready(out)

    with jax.default_matmul_precision("highest"):
        ref = jax.block_until_ready(ref_forward(params, word_embs, pos_onehot, cap_lens))

    assert out.shape == (B, output_size)
    # bf16 MXU inputs (per perf review) vs a float32-"highest" reference -> slightly
    # looser tolerance than a pure-f32 kernel.
    assert jnp.allclose(out, ref, atol=3e-2, rtol=3e-2), "mismatch vs JAX reference"

    print("KERNEL_OK")
</pallas_src>

<mosaic_0001>
module attributes {stable_mosaic.version = 11 : i64} {
  func.func @_t2m_text_encoder_kernel(%arg0: i32, %arg1: memref<1x2x1xi32, #tpu.memory_space<vmem>>, %arg2: memref<1x16x48xbf16, #tpu.memory_space<vmem>>, %arg3: memref<48x192xbf16, #tpu.memory_space<vmem>>, %arg4: memref<1x192xf32, #tpu.memory_space<vmem>>, %arg5: memref<2x32x96xbf16, #tpu.memory_space<vmem>>, %arg6: memref<7x1x32xf32, #tpu.memory_space<vmem>>, %arg7: memref<2x32x32xbf16, #tpu.memory_space<vmem>>, %arg8: memref<32x32xbf16, #tpu.memory_space<vmem>>, %arg9: memref<1x32xf32, #tpu.memory_space<vmem>>, %arg10: memref<2x32xf32, #tpu.memory_space<vmem>>) attributes {dimension_semantics = [#tpu.dimension_semantics<parallel>], iteration_bounds = array<i64: 1>, scalar_prefetch = 0 : i64, scratch_operands = 0 : i64, tpu.core_type = #tpu.core_type<tc>, window_params = [{transform_indices = @transform_0, window_bounds = array<i64: 1, 2, 1>}, {transform_indices = @transform_1, window_bounds = array<i64: 1, 16, 48>}, {pipeline_mode = #tpu.pipeline_mode<synchronous>, transform_indices = @transform_2, window_bounds = array<i64: 48, 192>}, {pipeline_mode = #tpu.pipeline_mode<synchronous>, transform_indices = @transform_3, window_bounds = array<i64: 1, 192>}, {pipeline_mode = #tpu.pipeline_mode<synchronous>, transform_indices = @transform_4, window_bounds = array<i64: 2, 32, 96>}, {pipeline_mode = #tpu.pipeline_mode<synchronous>, transform_indices = @transform_5, window_bounds = array<i64: 7, 1, 32>}, {pipeline_mode = #tpu.pipeline_mode<synchronous>, transform_indices = @transform_6, window_bounds = array<i64: 2, 32, 32>}, {pipeline_mode = #tpu.pipeline_mode<synchronous>, transform_indices = @transform_7, window_bounds = array<i64: 32, 32>}, {pipeline_mode = #tpu.pipeline_mode<synchronous>, transform_indices = @transform_8, window_bounds = array<i64: 1, 32>}, {transform_indices = @transform_9, window_bounds = array<i64: 2, 32>}]} {
    %c0 = arith.constant 0 : index
    %c0_0 = arith.constant 0 : index
    %c0_1 = arith.constant 0 : index
    %0 = vector.load %arg1[%c0, %c0_0, %c0_1] : memref<1x2x1xi32, #tpu.memory_space<vmem>>, vector<1x2x1xi32>
    %1 = vector.shape_cast %0 : vector<1x2x1xi32> to vector<2x1xi32>
    %c0_2 = arith.constant 0 : index
    %c0_3 = arith.constant 0 : index
    %c0_4 = arith.constant 0 : index
    %2 = vector.load %arg2[%c0_2, %c0_3, %c0_4] : memref<1x16x48xbf16, #tpu.memory_space<vmem>>, vector<1x16x48xbf16>
    %3 = vector.shape_cast %2 : vector<1x16x48xbf16> to vector<16x48xbf16>
    %c0_5 = arith.constant 0 : index
    %c0_6 = arith.constant 0 : index
    %4 = vector.load %arg3[%c0_5, %c0_6] : memref<48x192xbf16, #tpu.memory_space<vmem>>, vector<48x192xbf16>
    %cst = arith.constant dense<0.000000e+00> : vector<16x192xf32>
    %5 = tpu.matmul %3, %4, %cst {dimension_numbers = #tpu.dot_dimension_numbers<[1], [0], [0], [1], [0, 0, 1, 1], [], []>} : vector<16x48xbf16>, vector<48x192xbf16>, vector<16x192xf32> -> vector<16x192xf32>
    %c0_7 = arith.constant 0 : index
    %c0_8 = arith.constant 0 : index
    %6 = vector.load %arg4[%c0_7, %c0_8] : memref<1x192xf32, #tpu.memory_space<vmem>>, vector<1x192xf32>
    %7 = vector.broadcast %6 : vector<1x192xf32> to vector<16x192xf32>
    %8 = arith.addf %5, %7 : vector<16x192xf32>
    %c0_9 = arith.constant 0 : index
    %c0_10 = arith.constant 0 : index
    %c0_11 = arith.constant 0 : index
    %9 = vector.load %arg5[%c0_9, %c0_10, %c0_11] : memref<2x32x96xbf16, #tpu.memory_space<vmem>>, vector<1x32x96xbf16>
    %10 = vector.shape_cast %9 : vector<1x32x96xbf16> to vector<32x96xbf16>
    %c1 = arith.constant 1 : index
    %c0_12 = arith.constant 0 : index
    %c0_13 = arith.constant 0 : index
    %11 = vector.load %arg5[%c1, %c0_12, %c0_13] : memref<2x32x96xbf16, #tpu.memory_space<vmem>>, vector<1x32x96xbf16>
    %12 = vector.shape_cast %11 : vector<1x32x96xbf16> to vector<32x96xbf16>
    %c0_14 = arith.constant 0 : index
    %c0_15 = arith.constant 0 : index
    %c0_16 = arith.constant 0 : index
    %13 = vector.load %arg6[%c0_14, %c0_15, %c0_16] : memref<7x1x32xf32, #tpu.memory_space<vmem>>, vector<1x1x32xf32>
    %14 = vector.shape_cast %13 : vector<1x1x32xf32> to vector<1x32xf32>
    %c1_17 = arith.constant 1 : index
    %c0_18 = arith.constant 0 : index
    %c0_19 = arith.constant 0 : index
    %15 = vector.load %arg6[%c1_17, %c0_18, %c0_19] : memref<7x1x32xf32, #tpu.memory_space<vmem>>, vector<1x1x32xf32>
    %16 = vector.shape_cast %15 : vector<1x1x32xf32> to vector<1x32xf32>
    %c2 = arith.constant 2 : index
    %c0_20 = arith.constant 0 : index
    %c0_21 = arith.constant 0 : index
    %17 = vector.load %arg6[%c2, %c0_20, %c0_21] : memref<7x1x32xf32, #tpu.memory_space<vmem>>, vector<1x1x32xf32>
    %18 = vector.shape_cast %17 : vector<1x1x32xf32> to vector<1x32xf32>
    %c3 = arith.constant 3 : index
    %c0_22 = arith.constant 0 : index
    %c0_23 = arith.constant 0 : index
    %19 = vector.load %arg6[%c3, %c0_22, %c0_23] : memref<7x1x32xf32, #tpu.memory_space<vmem>>, vector<1x1x32xf32>
    %20 = vector.shape_cast %19 : vector<1x1x32xf32> to vector<1x32xf32>
    %c4 = arith.constant 4 : index
    %c0_24 = arith.constant 0 : index
    %c0_25 = arith.constant 0 : index
    %21 = vector.load %arg6[%c4, %c0_24, %c0_25] : memref<7x1x32xf32, #tpu.memory_space<vmem>>, vector<1x1x32xf32>
    %22 = vector.shape_cast %21 : vector<1x1x32xf32> to vector<1x32xf32>
    %c5 = arith.constant 5 : index
    %c0_26 = arith.constant 0 : index
    %c0_27 = arith.constant 0 : index
    %23 = vector.load %arg6[%c5, %c0_26, %c0_27] : memref<7x1x32xf32, #tpu.memory_space<vmem>>, vector<1x1x32xf32>
    %24 = vector.shape_cast %23 : vector<1x1x32xf32> to vector<1x32xf32>
    %c6 = arith.constant 6 : index
    %c0_28 = arith.constant 0 : index
    %c0_29 = arith.constant 0 : index
    %25 = vector.load %arg6[%c6, %c0_28, %c0_29] : memref<7x1x32xf32, #tpu.memory_space<vmem>>, vector<1x1x32xf32>
    %26 = vector.shape_cast %25 : vector<1x1x32xf32> to vector<1x32xf32>
    %27 = vector.shape_cast %14 : vector<1x32xf32> to vector<1x32xf32>
    %28 = vector.broadcast %27 : vector<1x32xf32> to vector<2x32xf32>
    %29 = vector.shape_cast %16 : vector<1x32xf32> to vector<1x32xf32>
    %30 = vector.broadcast %29 : vector<1x32xf32> to vector<2x32xf32>
    %31 = vector.extract_strided_slice %8 {offsets = [0, 0], sizes = [2, 96], strides = [1, 1]} : vector<16x192xf32> to vector<2x96xf32>
    %32 = vector.extract_strided_slice %8 {offsets = [14, 96], sizes = [2, 96], strides = [1, 1]} : vector<16x192xf32> to vector<2x96xf32>
    %c0_i32 = arith.constant 0 : i32
    %33 = vector.broadcast %c0_i32 : i32 to vector<2x1xi32>
    %34 = arith.cmpi sgt, %1, %33 : vector<2x1xi32>
    %35 = arith.truncf %28 : vector<2x32xf32> to vector<2x32xbf16>
    %cst_30 = arith.constant dense<0.000000e+00> : vector<2x96xf32>
    %36 = tpu.matmul %35, %10, %cst_30 {dimension_numbers = #tpu.dot_dimension_numbers<[1], [0], [0], [1], [0, 0, 1, 1], [], []>} : vector<2x32xbf16>, vector<32x96xbf16>, vector<2x96xf32> -> vector<2x96xf32>
    %37 = vector.extract_strided_slice %31 {offsets = [0, 0], sizes = [2, 32], strides = [1, 1]} : vector<2x96xf32> to vector<2x32xf32>
    %38 = vector.extract_strided_slice %36 {offsets = [0, 0], sizes = [2, 32], strides = [1, 1]} : vector<2x96xf32> to vector<2x32xf32>
    %39 = arith.addf %37, %38 : vector<2x32xf32>
    %cst_31 = arith.constant 5.000000e-01 : f32
    %40 = vector.broadcast %cst_31 : f32 to vector<2x32xf32>
    %41 = arith.mulf %40, %39 : vector<2x32xf32>
    %42 = math.tanh %41 : vector<2x32xf32>
    %cst_32 = arith.constant 5.000000e-01 : f32
    %43 = vector.broadcast %cst_32 : f32 to vector<2x32xf32>
    %44 = arith.mulf %43, %42 : vector<2x32xf32>
    %cst_33 = arith.constant 5.000000e-01 : f32
    %45 = vector.broadcast %cst_33 : f32 to vector<2x32xf32>
    %46 = arith.addf %44, %45 : vector<2x32xf32>
    %47 = vector.extract_strided_slice %31 {offsets = [0, 32], sizes = [2, 32], strides = [1, 1]} : vector<2x96xf32> to vector<2x32xf32>
    %48 = vector.extract_strided_slice %36 {offsets = [0, 32], sizes = [2, 32], strides = [1, 1]} : vector<2x96xf32> to vector<2x32xf32>
    %49 = arith.addf %47, %48 : vector<2x32xf32>
    %cst_34 = arith.constant 5.000000e-01 : f32
    %50 = vector.broadcast %cst_34 : f32 to vector<2x32xf32>
    %51 = arith.mulf %50, %49 : vector<2x32xf32>
    %52 = math.tanh %51 : vector<2x32xf32>
    %cst_35 = arith.constant 5.000000e-01 : f32
    %53 = vector.broadcast %cst_35 : f32 to vector<2x32xf32>
    %54 = arith.mulf %53, %52 : vector<2x32xf32>
    %cst_36 = arith.constant 5.000000e-01 : f32
    %55 = vector.broadcast %cst_36 : f32 to vector<2x32xf32>
    %56 = arith.addf %54, %55 : vector<2x32xf32>
    %57 = vector.extract_strided_slice %31 {offsets = [0, 64], sizes = [2, 32], strides = [1, 1]} : vector<2x96xf32> to vector<2x32xf32>
    %58 = vector.extract_strided_slice %36 {offsets = [0, 64], sizes = [2, 32], strides = [1, 1]} : vector<2x96xf32> to vector<2x32xf32>
    %59 = vector.broadcast %18 : vector<1x32xf32> to vector<2x32xf32>
    %60 = arith.addf %58, %59 : vector<2x32xf32>
    %61 = arith.mulf %46, %60 : vector<2x32xf32>
    %62 = arith.addf %57, %61 : vector<2x32xf32>
    %63 = math.tanh %62 : vector<2x32xf32>
    %64 = arith.subf %28, %63 : vector<2x32xf32>
    %65 = arith.mulf %56, %64 : vector<2x32xf32>
    %66 = arith.addf %63, %65 : vector<2x32xf32>
    %67 = vector.shape_cast %34 : vector<2x1xi1> to vector<2x1xi1>
    %68 = vector.broadcast %67 : vector<2x1xi1> to vector<2x32xi1>
    %69 = arith.select %68, %66, %28 : vector<2x32xi1>, vector<2x32xf32>
    %c7_i32 = arith.constant 7 : i32
    %70 = vector.broadcast %c7_i32 : i32 to vector<2x1xi32>
    %71 = arith.cmpi sgt, %1, %70 : vector<2x1xi32>
    %72 = arith.truncf %30 : vector<2x32xf32> to vector<2x32xbf16>
    %cst_37 = arith.constant dense<0.000000e+00> : vector<2x96xf32>
    %73 = tpu.matmul %72, %12, %cst_37 {dimension_numbers = #tpu.dot_dimension_numbers<[1], [0], [0], [1], [0, 0, 1, 1], [], []>} : vector<2x32xbf16>, vector<32x96xbf16>, vector<2x96xf32> -> vector<2x96xf32>
    %74 = vector.extract_strided_slice %32 {offsets = [0, 0], sizes = [2, 32], strides = [1, 1]} : vector<2x96xf32> to vector<2x32xf32>
    %75 = vector.extract_strided_slice %73 {offsets = [0, 0], sizes = [2, 32], strides = [1, 1]} : vector<2x96xf32> to vector<2x32xf32>
    %76 = arith.addf %74, %75 : vector<2x32xf32>
    %cst_38 = arith.constant 5.000000e-01 : f32
    %77 = vector.broadcast %cst_38 : f32 to vector<2x32xf32>
    %78 = arith.mulf %77, %76 : vector<2x32xf32>
    %79 = math.tanh %78 : vector<2x32xf32>
    %cst_39 = arith.constant 5.000000e-01 : f32
    %80 = vector.broadcast %cst_39 : f32 to vector<2x32xf32>
    %81 = arith.mulf %80, %79 : vector<2x32xf32>
    %cst_40 = arith.constant 5.000000e-01 : f32
    %82 = vector.broadcast %cst_40 : f32 to vector<2x32xf32>
    %83 = arith.addf %81, %82 : vector<2x32xf32>
    %84 = vector.extract_strided_slice %32 {offsets = [0, 32], sizes = [2, 32], strides = [1, 1]} : vector<2x96xf32> to vector<2x32xf32>
    %85 = vector.extract_strided_slice %73 {offsets = [0, 32], sizes = [2, 32], strides = [1, 1]} : vector<2x96xf32> to vector<2x32xf32>
    %86 = arith.addf %84, %85 : vector<2x32xf32>
    %cst_41 = arith.constant 5.000000e-01 : f32
    %87 = vector.broadcast %cst_41 : f32 to vector<2x32xf32>
    %88 = arith.mulf %87, %86 : vector<2x32xf32>
    %89 = math.tanh %88 : vector<2x32xf32>
    %cst_42 = arith.constant 5.000000e-01 : f32
    %90 = vector.broadcast %cst_42 : f32 to vector<2x32xf32>
    %91 = arith.mulf %90, %89 : vector<2x32xf32>
    %cst_43 = arith.constant 5.000000e-01 : f32
    %92 = vector.broadcast %cst_43 : f32 to vector<2x32xf32>
    %93 = arith.addf %91, %92 : vector<2x32xf32>
    %94 = vector.extract_strided_slice %32 {offsets = [0, 64], sizes = [2, 32], strides = [1, 1]} : vector<2x96xf32> to vector<2x32xf32>
    %95 = vector.extract_strided_slice %73 {offsets = [0, 64], sizes = [2, 32], strides = [1, 1]} : vector<2x96xf32> to vector<2x32xf32>
    %96 = vector.broadcast %20 : vector<1x32xf32> to vector<2x32xf32>
    %97 = arith.addf %95, %96 : vector<2x32xf32>
    %98 = arith.mulf %83, %97 : vector<2x32xf32>
    %99 = arith.addf %94, %98 : vector<2x32xf32>
    %100 = math.tanh %99 : vector<2x32xf32>
    %101 = arith.subf %30, %100 : vector<2x32xf32>
    %102 = arith.mulf %93, %101 : vector<2x32xf32>
    %103 = arith.addf %100, %102 : vector<2x32xf32>
    %104 = vector.shape_cast %71 : vector<2x1xi1> to vector<2x1xi1>
    %105 = vector.broadcast %104 : vector<2x1xi1> to vector<2x32xi1>
    %106 = arith.select %105, %103, %30 : vector<2x32xi1>, vector<2x32xf32>
    %107 = vector.extract_strided_slice %8 {offsets = [2, 0], sizes = [2, 96], strides = [1, 1]} : vector<16x192xf32> to vector<2x96xf32>
    %108 = vector.extract_strided_slice %8 {offsets = [12, 96], sizes = [2, 96], strides = [1, 1]} : vector<16x192xf32> to vector<2x96xf32>
    %c1_i32 = arith.constant 1 : i32
    %109 = vector.broadcast %c1_i32 : i32 to vector<2x1xi32>
    %110 = arith.cmpi sgt, %1, %109 : vector<2x1xi32>
    %111 = arith.truncf %69 : vector<2x32xf32> to vector<2x32xbf16>
    %cst_44 = arith.constant dense<0.000000e+00> : vector<2x96xf32>
    %112 = tpu.matmul %111, %10, %cst_44 {dimension_numbers = #tpu.dot_dimension_numbers<[1], [0], [0], [1], [0, 0, 1, 1], [], []>} : vector<2x32xbf16>, vector<32x96xbf16>, vector<2x96xf32> -> vector<2x96xf32>
    %113 = vector.extract_strided_slice %107 {offsets = [0, 0], sizes = [2, 32], strides = [1, 1]} : vector<2x96xf32> to vector<2x32xf32>
    %114 = vector.extract_strided_slice %112 {offsets = [0, 0], sizes = [2, 32], strides = [1, 1]} : vector<2x96xf32> to vector<2x32xf32>
    %115 = arith.addf %113, %114 : vector<2x32xf32>
    %cst_45 = arith.constant 5.000000e-01 : f32
    %116 = vector.broadcast %cst_45 : f32 to vector<2x32xf32>
    %117 = arith.mulf %116, %115 : vector<2x32xf32>
    %118 = math.tanh %117 : vector<2x32xf32>
    %cst_46 = arith.constant 5.000000e-01 : f32
    %119 = vector.broadcast %cst_46 : f32 to vector<2x32xf32>
    %120 = arith.mulf %119, %118 : vector<2x32xf32>
    %cst_47 = arith.constant 5.000000e-01 : f32
    %121 = vector.broadcast %cst_47 : f32 to vector<2x32xf32>
    %122 = arith.addf %120, %121 : vector<2x32xf32>
    %123 = vector.extract_strided_slice %107 {offsets = [0, 32], sizes = [2, 32], strides = [1, 1]} : vector<2x96xf32> to vector<2x32xf32>
    %124 = vector.extract_strided_slice %112 {offsets = [0, 32], sizes = [2, 32], strides = [1, 1]} : vector<2x96xf32> to vector<2x32xf32>
    %125 = arith.addf %123, %124 : vector<2x32xf32>
    %cst_48 = arith.constant 5.000000e-01 : f32
    %126 = vector.broadcast %cst_48 : f32 to vector<2x32xf32>
    %127 = arith.mulf %126, %125 : vector<2x32xf32>
    %128 = math.tanh %127 : vector<2x32xf32>
    %cst_49 = arith.constant 5.000000e-01 : f32
    %129 = vector.broadcast %cst_49 : f32 to vector<2x32xf32>
    %130 = arith.mulf %129, %128 : vector<2x32xf32>
    %cst_50 = arith.constant 5.000000e-01 : f32
    %131 = vector.broadcast %cst_50 : f32 to vector<2x32xf32>
    %132 = arith.addf %130, %131 : vector<2x32xf32>
    %133 = vector.extract_strided_slice %107 {offsets = [0, 64], sizes = [2, 32], strides = [1, 1]} : vector<2x96xf32> to vector<2x32xf32>
    %134 = vector.extract_strided_slice %112 {offsets = [0, 64], sizes = [2, 32], strides = [1, 1]} : vector<2x96xf32> to vector<2x32xf32>
    %135 = vector.broadcast %18 : vector<1x32xf32> to vector<2x32xf32>
    %136 = arith.addf %134, %135 : vector<2x32xf32>
    %137 = arith.mulf %122, %136 : vector<2x32xf32>
    %138 = arith.addf %133, %137 : vector<2x32xf32>
    %139 = math.tanh %138 : vector<2x32xf32>
    %140 = arith.subf %69, %139 : vector<2x32xf32>
    %141 = arith.mulf %132, %140 : vector<2x32xf32>
    %142 = arith.addf %139, %141 : vector<2x32xf32>
    %143 = vector.shape_cast %110 : vector<2x1xi1> to vector<2x1xi1>
    %144 = vector.broadcast %143 : vector<2x1xi1> to vector<2x32xi1>
    %145 = arith.select %144, %142, %69 : vector<2x32xi1>, vector<2x32xf32>
    %c6_i32 = arith.constant 6 : i32
    %146 = vector.broadcast %c6_i32 : i32 to vector<2x1xi32>
    %147 = arith.cmpi sgt, %1, %146 : vector<2x1xi32>
    %148 = arith.truncf %106 : vector<2x32xf32> to vector<2x32xbf16>
    %cst_51 = arith.constant dense<0.000000e+00> : vector<2x96xf32>
    %149 = tpu.matmul %148, %12, %cst_51 {dimension_numbers = #tpu.dot_dimension_numbers<[1], [0], [0], [1], [0, 0, 1, 1], [], []>} : vector<2x32xbf16>, vector<32x96xbf16>, vector<2x96xf32> -> vector<2x96xf32>
    %150 = vector.extract_strided_slice %108 {offsets = [0, 0], sizes = [2, 32], strides = [1, 1]} : vector<2x96xf32> to vector<2x32xf32>
    %151 = vector.extract_strided_slice %149 {offsets = [0, 0], sizes = [2, 32], strides = [1, 1]} : vector<2x96xf32> to vector<2x32xf32>
    %152 = arith.addf %150, %151 : vector<2x32xf32>
    %cst_52 = arith.constant 5.000000e-01 : f32
    %153 = vector.broadcast %cst_52 : f32 to vector<2x32xf32>
    %154 = arith.mulf %153, %152 : vector<2x32xf32>
    %155 = math.tanh %154 : vector<2x32xf32>
    %cst_53 = arith.constant 5.000000e-01 : f32
    %156 = vector.broadcast %cst_53 : f32 to vector<2x32xf32>
    %157 = arith.mulf %156, %155 : vector<2x32xf32>
    %cst_54 = arith.constant 5.000000e-01 : f32
    %158 = vector.broadcast %cst_54 : f32 to vector<2x32xf32>
    %159 = arith.addf %157, %158 : vector<2x32xf32>
    %160 = vector.extract_strided_slice %108 {offsets = [0, 32], sizes = [2, 32], strides = [1, 1]} : vector<2x96xf32> to vector<2x32xf32>
    %161 = vector.extract_strided_slice %149 {offsets = [0, 32], sizes = [2, 32], strides = [1, 1]} : vector<2x96xf32> to vector<2x32xf32>
    %162 = arith.addf %160, %161 : vector<2x32xf32>
    %cst_55 = arith.constant 5.000000e-01 : f32
    %163 = vector.broadcast %cst_55 : f32 to vector<2x32xf32>
    %164 = arith.mulf %163, %162 : vector<2x32xf32>
    %165 = math.tanh %164 : vector<2x32xf32>
    %cst_56 = arith.constant 5.000000e-01 : f32
    %166 = vector.broadcast %cst_56 : f32 to vector<2x32xf32>
    %167 = arith.mulf %166, %165 : vector<2x32xf32>
    %cst_57 = arith.constant 5.000000e-01 : f32
    %168 = vector.broadcast %cst_57 : f32 to vector<2x32xf32>
    %169 = arith.addf %167, %168 : vector<2x32xf32>
    %170 = vector.extract_strided_slice %108 {offsets = [0, 64], sizes = [2, 32], strides = [1, 1]} : vector<2x96xf32> to vector<2x32xf32>
    %171 = vector.extract_strided_slice %149 {offsets = [0, 64], sizes = [2, 32], strides = [1, 1]} : vector<2x96xf32> to vector<2x32xf32>
    %172 = vector.broadcast %20 : vector<1x32xf32> to vector<2x32xf32>
    %173 = arith.addf %171, %172 : vector<2x32xf32>
    %174 = arith.mulf %159, %173 : vector<2x32xf32>
    %175 = arith.addf %170, %174 : vector<2x32xf32>
    %176 = math.tanh %175 : vector<2x32xf32>
    %177 = arith.subf %106, %176 : vector<2x32xf32>
    %178 = arith.mulf %169, %177 : vector<2x32xf32>
    %179 = arith.addf %176, %178 : vector<2x32xf32>
    %180 = vector.shape_cast %147 : vector<2x1xi1> to vector<2x1xi1>
    %181 = vector.broadcast %180 : vector<2x1xi1> to vector<2x32xi1>
    %182 = arith.select %181, %179, %106 : vector<2x32xi1>, vector<2x32xf32>
    %183 = vector.extract_strided_slice %8 {offsets = [4, 0], sizes = [2, 96], strides = [1, 1]} : vector<16x192xf32> to vector<2x96xf32>
    %184 = vector.extract_strided_slice %8 {offsets = [10, 96], sizes = [2, 96], strides = [1, 1]} : vector<16x192xf32> to vector<2x96xf32>
    %c2_i32 = arith.constant 2 : i32
    %185 = vector.broadcast %c2_i32 : i32 to vector<2x1xi32>
    %186 = arith.cmpi sgt, %1, %185 : vector<2x1xi32>
    %187 = arith.truncf %145 : vector<2x32xf32> to vector<2x32xbf16>
    %cst_58 = arith.constant dense<0.000000e+00> : vector<2x96xf32>
    %188 = tpu.matmul %187, %10, %cst_58 {dimension_numbers = #tpu.dot_dimension_numbers<[1], [0], [0], [1], [0, 0, 1, 1], [], []>} : vector<2x32xbf16>, vector<32x96xbf16>, vector<2x96xf32> -> vector<2x96xf32>
    %189 = vector.extract_strided_slice %183 {offsets = [0, 0], sizes = [2, 32], strides = [1, 1]} : vector<2x96xf32> to vector<2x32xf32>
    %190 = vector.extract_strided_slice %188 {offsets = [0, 0], sizes = [2, 32], strides = [1, 1]} : vector<2x96xf32> to vector<2x32xf32>
    %191 = arith.addf %189, %190 : vector<2x32xf32>
    %cst_59 = arith.constant 5.000000e-01 : f32
    %192 = vector.broadcast %cst_59 : f32 to vector<2x32xf32>
    %193 = arith.mulf %192, %191 : vector<2x32xf32>
    %194 = math.tanh %193 : vector<2x32xf32>
    %cst_60 = arith.constant 5.000000e-01 : f32
    %195 = vector.broadcast %cst_60 : f32 to vector<2x32xf32>
    %196 = arith.mulf %195, %194 : vector<2x32xf32>
    %cst_61 = arith.constant 5.000000e-01 : f32
    %197 = vector.broadcast %cst_61 : f32 to vector<2x32xf32>
    %198 = arith.addf %196, %197 : vector<2x32xf32>
    %199 = vector.extract_strided_slice %183 {offsets = [0, 32], sizes = [2, 32], strides = [1, 1]} : vector<2x96xf32> to vector<2x32xf32>
    %200 = vector.extract_strided_slice %188 {offsets = [0, 32], sizes = [2, 32], strides = [1, 1]} : vector<2x96xf32> to vector<2x32xf32>
    %201 = arith.addf %199, %200 : vector<2x32xf32>
    %cst_62 = arith.constant 5.000000e-01 : f32
    %202 = vector.broadcast %cst_62 : f32 to vector<2x32xf32>
    %203 = arith.mulf %202, %201 : vector<2x32xf32>
    %204 = math.tanh %203 : vector<2x32xf32>
    %cst_63 = arith.constant 5.000000e-01 : f32
    %205 = vector.broadcast %cst_63 : f32 to vector<2x32xf32>
    %206 = arith.mulf %205, %204 : vector<2x32xf32>
    %cst_64 = arith.constant 5.000000e-01 : f32
    %207 = vector.broadcast %cst_64 : f32 to vector<2x32xf32>
    %208 = arith.addf %206, %207 : vector<2x32xf32>
    %209 = vector.extract_strided_slice %183 {offsets = [0, 64], sizes = [2, 32], strides = [1, 1]} : vector<2x96xf32> to vector<2x32xf32>
    %210 = vector.extract_strided_slice %188 {offsets = [0, 64], sizes = [2, 32], strides = [1, 1]} : vector<2x96xf32> to vector<2x32xf32>
    %211 = vector.broadcast %18 : vector<1x32xf32> to vector<2x32xf32>
    %212 = arith.addf %210, %211 : vector<2x32xf32>
    %213 = arith.mulf %198, %212 : vector<2x32xf32>
    %214 = arith.addf %209, %213 : vector<2x32xf32>
    %215 = math.tanh %214 : vector<2x32xf32>
    %216 = arith.subf %145, %215 : vector<2x32xf32>
    %217 = arith.mulf %208, %216 : vector<2x32xf32>
    %218 = arith.addf %215, %217 : vector<2x32xf32>
    %219 = vector.shape_cast %186 : vector<2x1xi1> to vector<2x1xi1>
    %220 = vector.broadcast %219 : vector<2x1xi1> to vector<2x32xi1>
    %221 = arith.select %220, %218, %145 : vector<2x32xi1>, vector<2x32xf32>
    %c5_i32 = arith.constant 5 : i32
    %222 = vector.broadcast %c5_i32 : i32 to vector<2x1xi32>
    %223 = arith.cmpi sgt, %1, %222 : vector<2x1xi32>
    %224 = arith.truncf %182 : vector<2x32xf32> to vector<2x32xbf16>
    %cst_65 = arith.constant dense<0.000000e+00> : vector<2x96xf32>
    %225 = tpu.matmul %224, %12, %cst_65 {dimension_numbers = #tpu.dot_dimension_numbers<[1], [0], [0], [1], [0, 0, 1, 1], [], []>} : vector<2x32xbf16>, vector<32x96xbf16>, vector<2x96xf32> -> vector<2x96xf32>
    %226 = vector.extract_strided_slice %184 {offsets = [0, 0], sizes = [2, 32], strides = [1, 1]} : vector<2x96xf32> to vector<2x32xf32>
    %227 = vector.extract_strided_slice %225 {offsets = [0, 0], sizes = [2, 32], strides = [1, 1]} : vector<2x96xf32> to vector<2x32xf32>
    %228 = arith.addf %226, %227 : vector<2x32xf32>
    %cst_66 = arith.constant 5.000000e-01 : f32
    %229 = vector.broadcast %cst_66 : f32 to vector<2x32xf32>
    %230 = arith.mulf %229, %228 : vector<2x32xf32>
    %231 = math.tanh %230 : vector<2x32xf32>
    %cst_67 = arith.constant 5.000000e-01 : f32
    %232 = vector.broadcast %cst_67 : f32 to vector<2x32xf32>
    %233 = arith.mulf %232, %231 : vector<2x32xf32>
    %cst_68 = arith.constant 5.000000e-01 : f32
    %234 = vector.broadcast %cst_68 : f32 to vector<2x32xf32>
    %235 = arith.addf %233, %234 : vector<2x32xf32>
    %236 = vector.extract_strided_slice %184 {offsets = [0, 32], sizes = [2, 32], strides = [1, 1]} : vector<2x96xf32> to vector<2x32xf32>
    %237 = vector.extract_strided_slice %225 {offsets = [0, 32], sizes = [2, 32], strides = [1, 1]} : vector<2x96xf32> to vector<2x32xf32>
    %238 = arith.addf %236, %237 : vector<2x32xf32>
    %cst_69 = arith.constant 5.000000e-01 : f32
    %239 = vector.broadcast %cst_69 : f32 to vector<2x32xf32>
    %240 = arith.mulf %239, %238 : vector<2x32xf32>
    %241 = math.tanh %240 : vector<2x32xf32>
    %cst_70 = arith.constant 5.000000e-01 : f32
    %242 = vector.broadcast %cst_70 : f32 to vector<2x32xf32>
    %243 = arith.mulf %242, %241 : vector<2x32xf32>
    %cst_71 = arith.constant 5.000000e-01 : f32
    %244 = vector.broadcast %cst_71 : f32 to vector<2x32xf32>
    %245 = arith.addf %243, %244 : vector<2x32xf32>
    %246 = vector.extract_strided_slice %184 {offsets = [0, 64], sizes = [2, 32], strides = [1, 1]} : vector<2x96xf32> to vector<2x32xf32>
    %247 = vector.extract_strided_slice %225 {offsets = [0, 64], sizes = [2, 32], strides = [1, 1]} : vector<2x96xf32> to vector<2x32xf32>
    %248 = vector.broadcast %20 : vector<1x32xf32> to vector<2x32xf32>
    %249 = arith.addf %247, %248 : vector<2x32xf32>
    %250 = arith.mulf %235, %249 : vector<2x32xf32>
    %251 = arith.addf %246, %250 : vector<2x32xf32>
    %252 = math.tanh %251 : vector<2x32xf32>
    %253 = arith.subf %182, %252 : vector<2x32xf32>
    %254 = arith.mulf %245, %253 : vector<2x32xf32>
    %255 = arith.addf %252, %254 : vector<2x32xf32>
    %256 = vector.shape_cast %223 : vector<2x1xi1> to vector<2x1xi1>
    %257 = vector.broadcast %256 : vector<2x1xi1> to vector<2x32xi1>
    %258 = arith.select %257, %255, %182 : vector<2x32xi1>, vector<2x32xf32>
    %259 = vector.extract_strided_slice %8 {offsets = [6, 0], sizes = [2, 96], strides = [1, 1]} : vector<16x192xf32> to vector<2x96xf32>
    %260 = vector.extract_strided_slice %8 {offsets = [8, 96], sizes = [2, 96], strides = [1, 1]} : vector<16x192xf32> to vector<2x96xf32>
    %c3_i32 = arith.constant 3 : i32
    %261 = vector.broadcast %c3_i32 : i32 to vector<2x1xi32>
    %262 = arith.cmpi sgt, %1, %261 : vector<2x1xi32>
    %263 = arith.truncf %221 : vector<2x32xf32> to vector<2x32xbf16>
    %cst_72 = arith.constant dense<0.000000e+00> : vector<2x96xf32>
    %264 = tpu.matmul %263, %10, %cst_72 {dimension_numbers = #tpu.dot_dimension_numbers<[1], [0], [0], [1], [0, 0, 1, 1], [], []>} : vector<2x32xbf16>, vector<32x96xbf16>, vector<2x96xf32> -> vector<2x96xf32>
    %265 = vector.extract_strided_slice %259 {offsets = [0, 0], sizes = [2, 32], strides = [1, 1]} : vector<2x96xf32> to vector<2x32xf32>
    %266 = vector.extract_strided_slice %264 {offsets = [0, 0], sizes = [2, 32], strides = [1, 1]} : vector<2x96xf32> to vector<2x32xf32>
    %267 = arith.addf %265, %266 : vector<2x32xf32>
    %cst_73 = arith.constant 5.000000e-01 : f32
    %268 = vector.broadcast %cst_73 : f32 to vector<2x32xf32>
    %269 = arith.mulf %268, %267 : vector<2x32xf32>
    %270 = math.tanh %269 : vector<2x32xf32>
    %cst_74 = arith.constant 5.000000e-01 : f32
    %271 = vector.broadcast %cst_74 : f32 to vector<2x32xf32>
    %272 = arith.mulf %271, %270 : vector<2x32xf32>
    %cst_75 = arith.constant 5.000000e-01 : f32
    %273 = vector.broadcast %cst_75 : f32 to vector<2x32xf32>
    %274 = arith.addf %272, %273 : vector<2x32xf32>
    %275 = vector.extract_strided_slice %259 {offsets = [0, 32], sizes = [2, 32], strides = [1, 1]} : vector<2x96xf32> to vector<2x32xf32>
    %276 = vector.extract_strided_slice %264 {offsets = [0, 32], sizes = [2, 32], strides = [1, 1]} : vector<2x96xf32> to vector<2x32xf32>
    %277 = arith.addf %275, %276 : vector<2x32xf32>
    %cst_76 = arith.constant 5.000000e-01 : f32
    %278 = vector.broadcast %cst_76 : f32 to vector<2x32xf32>
    %279 = arith.mulf %278, %277 : vector<2x32xf32>
    %280 = math.tanh %279 : vector<2x32xf32>
    %cst_77 = arith.constant 5.000000e-01 : f32
    %281 = vector.broadcast %cst_77 : f32 to vector<2x32xf32>
    %282 = arith.mulf %281, %280 : vector<2x32xf32>
    %cst_78 = arith.constant 5.000000e-01 : f32
    %283 = vector.broadcast %cst_78 : f32 to vector<2x32xf32>
    %284 = arith.addf %282, %283 : vector<2x32xf32>
    %285 = vector.extract_strided_slice %259 {offsets = [0, 64], sizes = [2, 32], strides = [1, 1]} : vector<2x96xf32> to vector<2x32xf32>
    %286 = vector.extract_strided_slice %264 {offsets = [0, 64], sizes = [2, 32], strides = [1, 1]} : vector<2x96xf32> to vector<2x32xf32>
    %287 = vector.broadcast %18 : vector<1x32xf32> to vector<2x32xf32>
    %288 = arith.addf %286, %287 : vector<2x32xf32>
    %289 = arith.mulf %274, %288 : vector<2x32xf32>
    %290 = arith.addf %285, %289 : vector<2x32xf32>
    %291 = math.tanh %290 : vector<2x32xf32>
    %292 = arith.subf %221, %291 : vector<2x32xf32>
    %293 = arith.mulf %284, %292 : vector<2x32xf32>
    %294 = arith.addf %291, %293 : vector<2x32xf32>
    %295 = vector.shape_cast %262 : vector<2x1xi1> to vector<2x1xi1>
    %296 = vector.broadcast %295 : vector<2x1xi1> to vector<2x32xi1>
    %297 = arith.select %296, %294, %221 : vector<2x32xi1>, vector<2x32xf32>
    %c4_i32 = arith.constant 4 : i32
    %298 = vector.broadcast %c4_i32 : i32 to vector<2x1xi32>
    %299 = arith.cmpi sgt, %1, %298 : vector<2x1xi32>
    %300 = arith.truncf %258 : vector<2x32xf32> to vector<2x32xbf16>
    %cst_79 = arith.constant dense<0.000000e+00> : vector<2x96xf32>
    %301 = tpu.matmul %300, %12, %cst_79 {dimension_numbers = #tpu.dot_dimension_numbers<[1], [0], [0], [1], [0, 0, 1, 1], [], []>} : vector<2x32xbf16>, vector<32x96xbf16>, vector<2x96xf32> -> vector<2x96xf32>
    %302 = vector.extract_strided_slice %260 {offsets = [0, 0], sizes = [2, 32], strides = [1, 1]} : vector<2x96xf32> to vector<2x32xf32>
    %303 = vector.extract_strided_slice %301 {offsets = [0, 0], sizes = [2, 32], strides = [1, 1]} : vector<2x96xf32> to vector<2x32xf32>
    %304 = arith.addf %302, %303 : vector<2x32xf32>
    %cst_80 = arith.constant 5.000000e-01 : f32
    %305 = vector.broadcast %cst_80 : f32 to vector<2x32xf32>
    %306 = arith.mulf %305, %304 : vector<2x32xf32>
    %307 = math.tanh %306 : vector<2x32xf32>
    %cst_81 = arith.constant 5.000000e-01 : f32
    %308 = vector.broadcast %cst_81 : f32 to vector<2x32xf32>
    %309 = arith.mulf %308, %307 : vector<2x32xf32>
    %cst_82 = arith.constant 5.000000e-01 : f32
    %310 = vector.broadcast %cst_82 : f32 to vector<2x32xf32>
    %311 = arith.addf %309, %310 : vector<2x32xf32>
    %312 = vector.extract_strided_slice %260 {offsets = [0, 32], sizes = [2, 32], strides = [1, 1]} : vector<2x96xf32> to vector<2x32xf32>
    %313 = vector.extract_strided_slice %301 {offsets = [0, 32], sizes = [2, 32], strides = [1, 1]} : vector<2x96xf32> to vector<2x32xf32>
    %314 = arith.addf %312, %313 : vector<2x32xf32>
    %cst_83 = arith.constant 5.000000e-01 : f32
    %315 = vector.broadcast %cst_83 : f32 to vector<2x32xf32>
    %316 = arith.mulf %315, %314 : vector<2x32xf32>
    %317 = math.tanh %316 : vector<2x32xf32>
    %cst_84 = arith.constant 5.000000e-01 : f32
    %318 = vector.broadcast %cst_84 : f32 to vector<2x32xf32>
    %319 = arith.mulf %318, %317 : vector<2x32xf32>
    %cst_85 = arith.constant 5.000000e-01 : f32
    %320 = vector.broadcast %cst_85 : f32 to vector<2x32xf32>
    %321 = arith.addf %319, %320 : vector<2x32xf32>
    %322 = vector.extract_strided_slice %260 {offsets = [0, 64], sizes = [2, 32], strides = [1, 1]} : vector<2x96xf32> to vector<2x32xf32>
    %323 = vector.extract_strided_slice %301 {offsets = [0, 64], sizes = [2, 32], strides = [1, 1]} : vector<2x96xf32> to vector<2x32xf32>
    %324 = vector.broadcast %20 : vector<1x32xf32> to vector<2x32xf32>
    %325 = arith.addf %323, %324 : vector<2x32xf32>
    %326 = arith.mulf %311, %325 : vector<2x32xf32>
    %327 = arith.addf %322, %326 : vector<2x32xf32>
    %328 = math.tanh %327 : vector<2x32xf32>
    %329 = arith.subf %258, %328 : vector<2x32xf32>
    %330 = arith.mulf %321, %329 : vector<2x32xf32>
    %331 = arith.addf %328, %330 : vector<2x32xf32>
    %332 = vector.shape_cast %299 : vector<2x1xi1> to vector<2x1xi1>
    %333 = vector.broadcast %332 : vector<2x1xi1> to vector<2x32xi1>
    %334 = arith.select %333, %331, %258 : vector<2x32xi1>, vector<2x32xf32>
    %335 = vector.extract_strided_slice %8 {offsets = [8, 0], sizes = [2, 96], strides = [1, 1]} : vector<16x192xf32> to vector<2x96xf32>
    %336 = vector.extract_strided_slice %8 {offsets = [6, 96], sizes = [2, 96], strides = [1, 1]} : vector<16x192xf32> to vector<2x96xf32>
    %c4_i32_86 = arith.constant 4 : i32
    %337 = vector.broadcast %c4_i32_86 : i32 to vector<2x1xi32>
    %338 = arith.cmpi sgt, %1, %337 : vector<2x1xi32>
    %339 = arith.truncf %297 : vector<2x32xf32> to vector<2x32xbf16>
    %cst_87 = arith.constant dense<0.000000e+00> : vector<2x96xf32>
    %340 = tpu.matmul %339, %10, %cst_87 {dimension_numbers = #tpu.dot_dimension_numbers<[1], [0], [0], [1], [0, 0, 1, 1], [], []>} : vector<2x32xbf16>, vector<32x96xbf16>, vector<2x96xf32> -> vector<2x96xf32>
    %341 = vector.extract_strided_slice %335 {offsets = [0, 0], sizes = [2, 32], strides = [1, 1]} : vector<2x96xf32> to vector<2x32xf32>
    %342 = vector.extract_strided_slice %340 {offsets = [0, 0], sizes = [2, 32], strides = [1, 1]} : vector<2x96xf32> to vector<2x32xf32>
    %343 = arith.addf %341, %342 : vector<2x32xf32>
    %cst_88 = arith.constant 5.000000e-01 : f32
    %344 = vector.broadcast %cst_88 : f32 to vector<2x32xf32>
    %345 = arith.mulf %344, %343 : vector<2x32xf32>
    %346 = math.tanh %345 : vector<2x32xf32>
    %cst_89 = arith.constant 5.000000e-01 : f32
    %347 = vector.broadcast %cst_89 : f32 to vector<2x32xf32>
    %348 = arith.mulf %347, %346 : vector<2x32xf32>
    %cst_90 = arith.constant 5.000000e-01 : f32
    %349 = vector.broadcast %cst_90 : f32 to vector<2x32xf32>
    %350 = arith.addf %348, %349 : vector<2x32xf32>
    %351 = vector.extract_strided_slice %335 {offsets = [0, 32], sizes = [2, 32], strides = [1, 1]} : vector<2x96xf32> to vector<2x32xf32>
    %352 = vector.extract_strided_slice %340 {offsets = [0, 32], sizes = [2, 32], strides = [1, 1]} : vector<2x96xf32> to vector<2x32xf32>
    %353 = arith.addf %351, %352 : vector<2x32xf32>
    %cst_91 = arith.constant 5.000000e-01 : f32
    %354 = vector.broadcast %cst_91 : f32 to vector<2x32xf32>
    %355 = arith.mulf %354, %353 : vector<2x32xf32>
    %356 = math.tanh %355 : vector<2x32xf32>
    %cst_92 = arith.constant 5.000000e-01 : f32
    %357 = vector.broadcast %cst_92 : f32 to vector<2x32xf32>
    %358 = arith.mulf %357, %356 : vector<2x32xf32>
    %cst_93 = arith.constant 5.000000e-01 : f32
    %359 = vector.broadcast %cst_93 : f32 to vector<2x32xf32>
    %360 = arith.addf %358, %359 : vector<2x32xf32>
    %361 = vector.extract_strided_slice %335 {offsets = [0, 64], sizes = [2, 32], strides = [1, 1]} : vector<2x96xf32> to vector<2x32xf32>
    %362 = vector.extract_strided_slice %340 {offsets = [0, 64], sizes = [2, 32], strides = [1, 1]} : vector<2x96xf32> to vector<2x32xf32>
    %363 = vector.broadcast %18 : vector<1x32xf32> to vector<2x32xf32>
    %364 = arith.addf %362, %363 : vector<2x32xf32>
    %365 = arith.mulf %350, %364 : vector<2x32xf32>
    %366 = arith.addf %361, %365 : vector<2x32xf32>
    %367 = math.tanh %366 : vector<2x32xf32>
    %368 = arith.subf %297, %367 : vector<2x32xf32>
    %369 = arith.mulf %360, %368 : vector<2x32xf32>
    %370 = arith.addf %367, %369 : vector<2x32xf32>
    %371 = vector.shape_cast %338 : vector<2x1xi1> to vector<2x1xi1>
    %372 = vector.broadcast %371 : vector<2x1xi1> to vector<2x32xi1>
    %373 = arith.select %372, %370, %297 : vector<2x32xi1>, vector<2x32xf32>
    %c3_i32_94 = arith.constant 3 : i32
    %374 = vector.broadcast %c3_i32_94 : i32 to vector<2x1xi32>
    %375 = arith.cmpi sgt, %1, %374 : vector<2x1xi32>
    %376 = arith.truncf %334 : vector<2x32xf32> to vector<2x32xbf16>
    %cst_95 = arith.constant dense<0.000000e+00> : vector<2x96xf32>
    %377 = tpu.matmul %376, %12, %cst_95 {dimension_numbers = #tpu.dot_dimension_numbers<[1], [0], [0], [1], [0, 0, 1, 1], [], []>} : vector<2x32xbf16>, vector<32x96xbf16>, vector<2x96xf32> -> vector<2x96xf32>
    %378 = vector.extract_strided_slice %336 {offsets = [0, 0], sizes = [2, 32], strides = [1, 1]} : vector<2x96xf32> to vector<2x32xf32>
    %379 = vector.extract_strided_slice %377 {offsets = [0, 0], sizes = [2, 32], strides = [1, 1]} : vector<2x96xf32> to vector<2x32xf32>
    %380 = arith.addf %378, %379 : vector<2x32xf32>
    %cst_96 = arith.constant 5.000000e-01 : f32
    %381 = vector.broadcast %cst_96 : f32 to vector<2x32xf32>
    %382 = arith.mulf %381, %380 : vector<2x32xf32>
    %383 = math.tanh %382 : vector<2x32xf32>
    %cst_97 = arith.constant 5.000000e-01 : f32
    %384 = vector.broadcast %cst_97 : f32 to vector<2x32xf32>
    %385 = arith.mulf %384, %383 : vector<2x32xf32>
    %cst_98 = arith.constant 5.000000e-01 : f32
    %386 = vector.broadcast %cst_98 : f32 to vector<2x32xf32>
    %387 = arith.addf %385, %386 : vector<2x32xf32>
    %388 = vector.extract_strided_slice %336 {offsets = [0, 32], sizes = [2, 32], strides = [1, 1]} : vector<2x96xf32> to vector<2x32xf32>
    %389 = vector.extract_strided_slice %377 {offsets = [0, 32], sizes = [2, 32], strides = [1, 1]} : vector<2x96xf32> to vector<2x32xf32>
    %390 = arith.addf %388, %389 : vector<2x32xf32>
    %cst_99 = arith.constant 5.000000e-01 : f32
    %391 = vector.broadcast %cst_99 : f32 to vector<2x32xf32>
    %392 = arith.mulf %391, %390 : vector<2x32xf32>
    %393 = math.tanh %392 : vector<2x32xf32>
    %cst_100 = arith.constant 5.000000e-01 : f32
    %394 = vector.broadcast %cst_100 : f32 to vector<2x32xf32>
    %395 = arith.mulf %394, %393 : vector<2x32xf32>
    %cst_101 = arith.constant 5.000000e-01 : f32
    %396 = vector.broadcast %cst_101 : f32 to vector<2x32xf32>
    %397 = arith.addf %395, %396 : vector<2x32xf32>
    %398 = vector.extract_strided_slice %336 {offsets = [0, 64], sizes = [2, 32], strides = [1, 1]} : vector<2x96xf32> to vector<2x32xf32>
    %399 = vector.extract_strided_slice %377 {offsets = [0, 64], sizes = [2, 32], strides = [1, 1]} : vector<2x96xf32> to vector<2x32xf32>
    %400 = vector.broadcast %20 : vector<1x32xf32> to vector<2x32xf32>
    %401 = arith.addf %399, %400 : vector<2x32xf32>
    %402 = arith.mulf %387, %401 : vector<2x32xf32>
    %403 = arith.addf %398, %402 : vector<2x32xf32>
    %404 = math.tanh %403 : vector<2x32xf32>
    %405 = arith.subf %334, %404 : vector<2x32xf32>
    %406 = arith.mulf %397, %405 : vector<2x32xf32>
    %407 = arith.addf %404, %406 : vector<2x32xf32>
    %408 = vector.shape_cast %375 : vector<2x1xi1> to vector<2x1xi1>
    %409 = vector.broadcast %408 : vector<2x1xi1> to vector<2x32xi1>
    %410 = arith.select %409, %407, %334 : vector<2x32xi1>, vector<2x32xf32>
    %411 = vector.extract_strided_slice %8 {offsets = [10, 0], sizes = [2, 96], strides = [1, 1]} : vector<16x192xf32> to vector<2x96xf32>
    %412 = vector.extract_strided_slice %8 {offsets = [4, 96], sizes = [2, 96], strides = [1, 1]} : vector<16x192xf32> to vector<2x96xf32>
    %c5_i32_102 = arith.constant 5 : i32
    %413 = vector.broadcast %c5_i32_102 : i32 to vector<2x1xi32>
    %414 = arith.cmpi sgt, %1, %413 : vector<2x1xi32>
    %415 = arith.truncf %373 : vector<2x32xf32> to vector<2x32xbf16>
    %cst_103 = arith.constant dense<0.000000e+00> : vector<2x96xf32>
    %416 = tpu.matmul %415, %10, %cst_103 {dimension_numbers = #tpu.dot_dimension_numbers<[1], [0], [0], [1], [0, 0, 1, 1], [], []>} : vector<2x32xbf16>, vector<32x96xbf16>, vector<2x96xf32> -> vector<2x96xf32>
    %417 = vector.extract_strided_slice %411 {offsets = [0, 0], sizes = [2, 32], strides = [1, 1]} : vector<2x96xf32> to vector<2x32xf32>
    %418 = vector.extract_strided_slice %416 {offsets = [0, 0], sizes = [2, 32], strides = [1, 1]} : vector<2x96xf32> to vector<2x32xf32>
    %419 = arith.addf %417, %418 : vector<2x32xf32>
    %cst_104 = arith.constant 5.000000e-01 : f32
    %420 = vector.broadcast %cst_104 : f32 to vector<2x32xf32>
    %421 = arith.mulf %420, %419 : vector<2x32xf32>
    %422 = math.tanh %421 : vector<2x32xf32>
    %cst_105 = arith.constant 5.000000e-01 : f32
    %423 = vector.broadcast %cst_105 : f32 to vector<2x32xf32>
    %424 = arith.mulf %423, %422 : vector<2x32xf32>
    %cst_106 = arith.constant 5.000000e-01 : f32
    %425 = vector.broadcast %cst_106 : f32 to vector<2x32xf32>
    %426 = arith.addf %424, %425 : vector<2x32xf32>
    %427 = vector.extract_strided_slice %411 {offsets = [0, 32], sizes = [2, 32], strides = [1, 1]} : vector<2x96xf32> to vector<2x32xf32>
    %428 = vector.extract_strided_slice %416 {offsets = [0, 32], sizes = [2, 32], strides = [1, 1]} : vector<2x96xf32> to vector<2x32xf32>
    %429 = arith.addf %427, %428 : vector<2x32xf32>
    %cst_107 = arith.constant 5.000000e-01 : f32
    %430 = vector.broadcast %cst_107 : f32 to vector<2x32xf32>
    %431 = arith.mulf %430, %429 : vector<2x32xf32>
    %432 = math.tanh %431 : vector<2x32xf32>
    %cst_108 = arith.constant 5.000000e-01 : f32
    %433 = vector.broadcast %cst_108 : f32 to vector<2x32xf32>
    %434 = arith.mulf %433, %432 : vector<2x32xf32>
    %cst_109 = arith.constant 5.000000e-01 : f32
    %435 = vector.broadcast %cst_109 : f32 to vector<2x32xf32>
    %436 = arith.addf %434, %435 : vector<2x32xf32>
    %437 = vector.extract_strided_slice %411 {offsets = [0, 64], sizes = [2, 32], strides = [1, 1]} : vector<2x96xf32> to vector<2x32xf32>
    %438 = vector.extract_strided_slice %416 {offsets = [0, 64], sizes = [2, 32], strides = [1, 1]} : vector<2x96xf32> to vector<2x32xf32>
    %439 = vector.broadcast %18 : vector<1x32xf32> to vector<2x32xf32>
    %440 = arith.addf %438, %439 : vector<2x32xf32>
    %441 = arith.mulf %426, %440 : vector<2x32xf32>
    %442 = arith.addf %437, %441 : vector<2x32xf32>
    %443 = math.tanh %442 : vector<2x32xf32>
    %444 = arith.subf %373, %443 : vector<2x32xf32>
    %445 = arith.mulf %436, %444 : vector<2x32xf32>
    %446 = arith.addf %443, %445 : vector<2x32xf32>
    %447 = vector.shape_cast %414 : vector<2x1xi1> to vector<2x1xi1>
    %448 = vector.broadcast %447 : vector<2x1xi1> to vector<2x32xi1>
    %449 = arith.select %448, %446, %373 : vector<2x32xi1>, vector<2x32xf32>
    %c2_i32_110 = arith.constant 2 : i32
    %450 = vector.broadcast %c2_i32_110 : i32 to vector<2x1xi32>
    %451 = arith.cmpi sgt, %1, %450 : vector<2x1xi32>
    %452 = arith.truncf %410 : vector<2x32xf32> to vector<2x32xbf16>
    %cst_111 = arith.constant dense<0.000000e+00> : vector<2x96xf32>
    %453 = tpu.matmul %452, %12, %cst_111 {dimension_numbers = #tpu.dot_dimension_numbers<[1], [0], [0], [1], [0, 0, 1, 1], [], []>} : vector<2x32xbf16>, vector<32x96xbf16>, vector<2x96xf32> -> vector<2x96xf32>
    %454 = vector.extract_strided_slice %412 {offsets = [0, 0], sizes = [2, 32], strides = [1, 1]} : vector<2x96xf32> to vector<2x32xf32>
    %455 = vector.extract_strided_slice %453 {offsets = [0, 0], sizes = [2, 32], strides = [1, 1]} : vector<2x96xf32> to vector<2x32xf32>
    %456 = arith.addf %454, %455 : vector<2x32xf32>
    %cst_112 = arith.constant 5.000000e-01 : f32
    %457 = vector.broadcast %cst_112 : f32 to vector<2x32xf32>
    %458 = arith.mulf %457, %456 : vector<2x32xf32>
    %459 = math.tanh %458 : vector<2x32xf32>
    %cst_113 = arith.constant 5.000000e-01 : f32
    %460 = vector.broadcast %cst_113 : f32 to vector<2x32xf32>
    %461 = arith.mulf %460, %459 : vector<2x32xf32>
    %cst_114 = arith.constant 5.000000e-01 : f32
    %462 = vector.broadcast %cst_114 : f32 to vector<2x32xf32>
    %463 = arith.addf %461, %462 : vector<2x32xf32>
    %464 = vector.extract_strided_slice %412 {offsets = [0, 32], sizes = [2, 32], strides = [1, 1]} : vector<2x96xf32> to vector<2x32xf32>
    %465 = vector.extract_strided_slice %453 {offsets = [0, 32], sizes = [2, 32], strides = [1, 1]} : vector<2x96xf32> to vector<2x32xf32>
    %466 = arith.addf %464, %465 : vector<2x32xf32>
    %cst_115 = arith.constant 5.000000e-01 : f32
    %467 = vector.broadcast %cst_115 : f32 to vector<2x32xf32>
    %468 = arith.mulf %467, %466 : vector<2x32xf32>
    %469 = math.tanh %468 : vector<2x32xf32>
    %cst_116 = arith.constant 5.000000e-01 : f32
    %470 = vector.broadcast %cst_116 : f32 to vector<2x32xf32>
    %471 = arith.mulf %470, %469 : vector<2x32xf32>
    %cst_117 = arith.constant 5.000000e-01 : f32
    %472 = vector.broadcast %cst_117 : f32 to vector<2x32xf32>
    %473 = arith.addf %471, %472 : vector<2x32xf32>
    %474 = vector.extract_strided_slice %412 {offsets = [0, 64], sizes = [2, 32], strides = [1, 1]} : vector<2x96xf32> to vector<2x32xf32>
    %475 = vector.extract_strided_slice %453 {offsets = [0, 64], sizes = [2, 32], strides = [1, 1]} : vector<2x96xf32> to vector<2x32xf32>
    %476 = vector.broadcast %20 : vector<1x32xf32> to vector<2x32xf32>
    %477 = arith.addf %475, %476 : vector<2x32xf32>
    %478 = arith.mulf %463, %477 : vector<2x32xf32>
    %479 = arith.addf %474, %478 : vector<2x32xf32>
    %480 = math.tanh %479 : vector<2x32xf32>
    %481 = arith.subf %410, %480 : vector<2x32xf32>
    %482 = arith.mulf %473, %481 : vector<2x32xf32>
    %483 = arith.addf %480, %482 : vector<2x32xf32>
    %484 = vector.shape_cast %451 : vector<2x1xi1> to vector<2x1xi1>
    %485 = vector.broadcast %484 : vector<2x1xi1> to vector<2x32xi1>
    %486 = arith.select %485, %483, %410 : vector<2x32xi1>, vector<2x32xf32>
    %487 = vector.extract_strided_slice %8 {offsets = [12, 0], sizes = [2, 96], strides = [1, 1]} : vector<16x192xf32> to vector<2x96xf32>
    %488 = vector.extract_strided_slice %8 {offsets = [2, 96], sizes = [2, 96], strides = [1, 1]} : vector<16x192xf32> to vector<2x96xf32>
    %c6_i32_118 = arith.constant 6 : i32
    %489 = vector.broadcast %c6_i32_118 : i32 to vector<2x1xi32>
    %490 = arith.cmpi sgt, %1, %489 : vector<2x1xi32>
    %491 = arith.truncf %449 : vector<2x32xf32> to vector<2x32xbf16>
    %cst_119 = arith.constant dense<0.000000e+00> : vector<2x96xf32>
    %492 = tpu.matmul %491, %10, %cst_119 {dimension_numbers = #tpu.dot_dimension_numbers<[1], [0], [0], [1], [0, 0, 1, 1], [], []>} : vector<2x32xbf16>, vector<32x96xbf16>, vector<2x96xf32> -> vector<2x96xf32>
    %493 = vector.extract_strided_slice %487 {offsets = [0, 0], sizes = [2, 32], strides = [1, 1]} : vector<2x96xf32> to vector<2x32xf32>
    %494 = vector.extract_strided_slice %492 {offsets = [0, 0], sizes = [2, 32], strides = [1, 1]} : vector<2x96xf32> to vector<2x32xf32>
    %495 = arith.addf %493, %494 : vector<2x32xf32>
    %cst_120 = arith.constant 5.000000e-01 : f32
    %496 = vector.broadcast %cst_120 : f32 to vector<2x32xf32>
    %497 = arith.mulf %496, %495 : vector<2x32xf32>
    %498 = math.tanh %497 : vector<2x32xf32>
    %cst_121 = arith.constant 5.000000e-01 : f32
    %499 = vector.broadcast %cst_121 : f32 to vector<2x32xf32>
    %500 = arith.mulf %499, %498 : vector<2x32xf32>
    %cst_122 = arith.constant 5.000000e-01 : f32
    %501 = vector.broadcast %cst_122 : f32 to vector<2x32xf32>
    %502 = arith.addf %500, %501 : vector<2x32xf32>
    %503 = vector.extract_strided_slice %487 {offsets = [0, 32], sizes = [2, 32], strides = [1, 1]} : vector<2x96xf32> to vector<2x32xf32>
    %504 = vector.extract_strided_slice %492 {offsets = [0, 32], sizes = [2, 32], strides = [1, 1]} : vector<2x96xf32> to vector<2x32xf32>
    %505 = arith.addf %503, %504 : vector<2x32xf32>
    %cst_123 = arith.constant 5.000000e-01 : f32
    %506 = vector.broadcast %cst_123 : f32 to vector<2x32xf32>
    %507 = arith.mulf %506, %505 : vector<2x32xf32>
    %508 = math.tanh %507 : vector<2x32xf32>
    %cst_124 = arith.constant 5.000000e-01 : f32
    %509 = vector.broadcast %cst_124 : f32 to vector<2x32xf32>
    %510 = arith.mulf %509, %508 : vector<2x32xf32>
    %cst_125 = arith.constant 5.000000e-01 : f32
    %511 = vector.broadcast %cst_125 : f32 to vector<2x32xf32>
    %512 = arith.addf %510, %511 : vector<2x32xf32>
    %513 = vector.extract_strided_slice %487 {offsets = [0, 64], sizes = [2, 32], strides = [1, 1]} : vector<2x96xf32> to vector<2x32xf32>
    %514 = vector.extract_strided_slice %492 {offsets = [0, 64], sizes = [2, 32], strides = [1, 1]} : vector<2x96xf32> to vector<2x32xf32>
    %515 = vector.broadcast %18 : vector<1x32xf32> to vector<2x32xf32>
    %516 = arith.addf %514, %515 : vector<2x32xf32>
    %517 = arith.mulf %502, %516 : vector<2x32xf32>
    %518 = arith.addf %513, %517 : vector<2x32xf32>
    %519 = math.tanh %518 : vector<2x32xf32>
    %520 = arith.subf %449, %519 : vector<2x32xf32>
    %521 = arith.mulf %512, %520 : vector<2x32xf32>
    %522 = arith.addf %519, %521 : vector<2x32xf32>
    %523 = vector.shape_cast %490 : vector<2x1xi1> to vector<2x1xi1>
    %524 = vector.broadcast %523 : vector<2x1xi1> to vector<2x32xi1>
    %525 = arith.select %524, %522, %449 : vector<2x32xi1>, vector<2x32xf32>
    %c1_i32_126 = arith.constant 1 : i32
    %526 = vector.broadcast %c1_i32_126 : i32 to vector<2x1xi32>
    %527 = arith.cmpi sgt, %1, %526 : vector<2x1xi32>
    %528 = arith.truncf %486 : vector<2x32xf32> to vector<2x32xbf16>
    %cst_127 = arith.constant dense<0.000000e+00> : vector<2x96xf32>
    %529 = tpu.matmul %528, %12, %cst_127 {dimension_numbers = #tpu.dot_dimension_numbers<[1], [0], [0], [1], [0, 0, 1, 1], [], []>} : vector<2x32xbf16>, vector<32x96xbf16>, vector<2x96xf32> -> vector<2x96xf32>
    %530 = vector.extract_strided_slice %488 {offsets = [0, 0], sizes = [2, 32], strides = [1, 1]} : vector<2x96xf32> to vector<2x32xf32>
    %531 = vector.extract_strided_slice %529 {offsets = [0, 0], sizes = [2, 32], strides = [1, 1]} : vector<2x96xf32> to vector<2x32xf32>
    %532 = arith.addf %530, %531 : vector<2x32xf32>
    %cst_128 = arith.constant 5.000000e-01 : f32
    %533 = vector.broadcast %cst_128 : f32 to vector<2x32xf32>
    %534 = arith.mulf %533, %532 : vector<2x32xf32>
    %535 = math.tanh %534 : vector<2x32xf32>
    %cst_129 = arith.constant 5.000000e-01 : f32
    %536 = vector.broadcast %cst_129 : f32 to vector<2x32xf32>
    %537 = arith.mulf %536, %535 : vector<2x32xf32>
    %cst_130 = arith.constant 5.000000e-01 : f32
    %538 = vector.broadcast %cst_130 : f32 to vector<2x32xf32>
    %539 = arith.addf %537, %538 : vector<2x32xf32>
    %540 = vector.extract_strided_slice %488 {offsets = [0, 32], sizes = [2, 32], strides = [1, 1]} : vector<2x96xf32> to vector<2x32xf32>
    %541 = vector.extract_strided_slice %529 {offsets = [0, 32], sizes = [2, 32], strides = [1, 1]} : vector<2x96xf32> to vector<2x32xf32>
    %542 = arith.addf %540, %541 : vector<2x32xf32>
    %cst_131 = arith.constant 5.000000e-01 : f32
    %543 = vector.broadcast %cst_131 : f32 to vector<2x32xf32>
    %544 = arith.mulf %543, %542 : vector<2x32xf32>
    %545 = math.tanh %544 : vector<2x32xf32>
    %cst_132 = arith.constant 5.000000e-01 : f32
    %546 = vector.broadcast %cst_132 : f32 to vector<2x32xf32>
    %547 = arith.mulf %546, %545 : vector<2x32xf32>
    %cst_133 = arith.constant 5.000000e-01 : f32
    %548 = vector.broadcast %cst_133 : f32 to vector<2x32xf32>
    %549 = arith.addf %547, %548 : vector<2x32xf32>
    %550 = vector.extract_strided_slice %488 {offsets = [0, 64], sizes = [2, 32], strides = [1, 1]} : vector<2x96xf32> to vector<2x32xf32>
    %551 = vector.extract_strided_slice %529 {offsets = [0, 64], sizes = [2, 32], strides = [1, 1]} : vector<2x96xf32> to vector<2x32xf32>
    %552 = vector.broadcast %20 : vector<1x32xf32> to vector<2x32xf32>
    %553 = arith.addf %551, %552 : vector<2x32xf32>
    %554 = arith.mulf %539, %553 : vector<2x32xf32>
    %555 = arith.addf %550, %554 : vector<2x32xf32>
    %556 = math.tanh %555 : vector<2x32xf32>
    %557 = arith.subf %486, %556 : vector<2x32xf32>
    %558 = arith.mulf %549, %557 : vector<2x32xf32>
    %559 = arith.addf %556, %558 : vector<2x32xf32>
    %560 = vector.shape_cast %527 : vector<2x1xi1> to vector<2x1xi1>
    %561 = vector.broadcast %560 : vector<2x1xi1> to vector<2x32xi1>
    %562 = arith.select %561, %559, %486 : vector<2x32xi1>, vector<2x32xf32>
    %563 = vector.extract_strided_slice %8 {offsets = [14, 0], sizes = [2, 96], strides = [1, 1]} : vector<16x192xf32> to vector<2x96xf32>
    %564 = vector.extract_strided_slice %8 {offsets = [0, 96], sizes = [2, 96], strides = [1, 1]} : vector<16x192xf32> to vector<2x96xf32>
    %c7_i32_134 = arith.constant 7 : i32
    %565 = vector.broadcast %c7_i32_134 : i32 to vector<2x1xi32>
    %566 = arith.cmpi sgt, %1, %565 : vector<2x1xi32>
    %567 = arith.truncf %525 : vector<2x32xf32> to vector<2x32xbf16>
    %cst_135 = arith.constant dense<0.000000e+00> : vector<2x96xf32>
    %568 = tpu.matmul %567, %10, %cst_135 {dimension_numbers = #tpu.dot_dimension_numbers<[1], [0], [0], [1], [0, 0, 1, 1], [], []>} : vector<2x32xbf16>, vector<32x96xbf16>, vector<2x96xf32> -> vector<2x96xf32>
    %569 = vector.extract_strided_slice %563 {offsets = [0, 0], sizes = [2, 32], strides = [1, 1]} : vector<2x96xf32> to vector<2x32xf32>
    %570 = vector.extract_strided_slice %568 {offsets = [0, 0], sizes = [2, 32], strides = [1, 1]} : vector<2x96xf32> to vector<2x32xf32>
    %571 = arith.addf %569, %570 : vector<2x32xf32>
    %cst_136 = arith.constant 5.000000e-01 : f32
    %572 = vector.broadcast %cst_136 : f32 to vector<2x32xf32>
    %573 = arith.mulf %572, %571 : vector<2x32xf32>
    %574 = math.tanh %573 : vector<2x32xf32>
    %cst_137 = arith.constant 5.000000e-01 : f32
    %575 = vector.broadcast %cst_137 : f32 to vector<2x32xf32>
    %576 = arith.mulf %575, %574 : vector<2x32xf32>
    %cst_138 = arith.constant 5.000000e-01 : f32
    %577 = vector.broadcast %cst_138 : f32 to vector<2x32xf32>
    %578 = arith.addf %576, %577 : vector<2x32xf32>
    %579 = vector.extract_strided_slice %563 {offsets = [0, 32], sizes = [2, 32], strides = [1, 1]} : vector<2x96xf32> to vector<2x32xf32>
    %580 = vector.extract_strided_slice %568 {offsets = [0, 32], sizes = [2, 32], strides = [1, 1]} : vector<2x96xf32> to vector<2x32xf32>
    %581 = arith.addf %579, %580 : vector<2x32xf32>
    %cst_139 = arith.constant 5.000000e-01 : f32
    %582 = vector.broadcast %cst_139 : f32 to vector<2x32xf32>
    %583 = arith.mulf %582, %581 : vector<2x32xf32>
    %584 = math.tanh %583 : vector<2x32xf32>
    %cst_140 = arith.constant 5.000000e-01 : f32
    %585 = vector.broadcast %cst_140 : f32 to vector<2x32xf32>
    %586 = arith.mulf %585, %584 : vector<2x32xf32>
    %cst_141 = arith.constant 5.000000e-01 : f32
    %587 = vector.broadcast %cst_141 : f32 to vector<2x32xf32>
    %588 = arith.addf %586, %587 : vector<2x32xf32>
    %589 = vector.extract_strided_slice %563 {offsets = [0, 64], sizes = [2, 32], strides = [1, 1]} : vector<2x96xf32> to vector<2x32xf32>
    %590 = vector.extract_strided_slice %568 {offsets = [0, 64], sizes = [2, 32], strides = [1, 1]} : vector<2x96xf32> to vector<2x32xf32>
    %591 = vector.broadcast %18 : vector<1x32xf32> to vector<2x32xf32>
    %592 = arith.addf %590, %591 : vector<2x32xf32>
    %593 = arith.mulf %578, %592 : vector<2x32xf32>
    %594 = arith.addf %589, %593 : vector<2x32xf32>
    %595 = math.tanh %594 : vector<2x32xf32>
    %596 = arith.subf %525, %595 : vector<2x32xf32>
    %597 = arith.mulf %588, %596 : vector<2x32xf32>
    %598 = arith.addf %595, %597 : vector<2x32xf32>
    %599 = vector.shape_cast %566 : vector<2x1xi1> to vector<2x1xi1>
    %600 = vector.broadcast %599 : vector<2x1xi1> to vector<2x32xi1>
    %601 = arith.select %600, %598, %525 : vector<2x32xi1>, vector<2x32xf32>
    %c0_i32_142 = arith.constant 0 : i32
    %602 = vector.broadcast %c0_i32_142 : i32 to vector<2x1xi32>
    %603 = arith.cmpi sgt, %1, %602 : vector<2x1xi32>
    %604 = arith.truncf %562 : vector<2x32xf32> to vector<2x32xbf16>
    %cst_143 = arith.constant dense<0.000000e+00> : vector<2x96xf32>
    %605 = tpu.matmul %604, %12, %cst_143 {dimension_numbers = #tpu.dot_dimension_numbers<[1], [0], [0], [1], [0, 0, 1, 1], [], []>} : vector<2x32xbf16>, vector<32x96xbf16>, vector<2x96xf32> -> vector<2x96xf32>
    %606 = vector.extract_strided_slice %564 {offsets = [0, 0], sizes = [2, 32], strides = [1, 1]} : vector<2x96xf32> to vector<2x32xf32>
    %607 = vector.extract_strided_slice %605 {offsets = [0, 0], sizes = [2, 32], strides = [1, 1]} : vector<2x96xf32> to vector<2x32xf32>
    %608 = arith.addf %606, %607 : vector<2x32xf32>
    %cst_144 = arith.constant 5.000000e-01 : f32
    %609 = vector.broadcast %cst_144 : f32 to vector<2x32xf32>
    %610 = arith.mulf %609, %608 : vector<2x32xf32>
    %611 = math.tanh %610 : vector<2x32xf32>
    %cst_145 = arith.constant 5.000000e-01 : f32
    %612 = vector.broadcast %cst_145 : f32 to vector<2x32xf32>
    %613 = arith.mulf %612, %611 : vector<2x32xf32>
    %cst_146 = arith.constant 5.000000e-01 : f32
    %614 = vector.broadcast %cst_146 : f32 to vector<2x32xf32>
    %615 = arith.addf %613, %614 : vector<2x32xf32>
    %616 = vector.extract_strided_slice %564 {offsets = [0, 32], sizes = [2, 32], strides = [1, 1]} : vector<2x96xf32> to vector<2x32xf32>
    %617 = vector.extract_strided_slice %605 {offsets = [0, 32], sizes = [2, 32], strides = [1, 1]} : vector<2x96xf32> to vector<2x32xf32>
    %618 = arith.addf %616, %617 : vector<2x32xf32>
    %cst_147 = arith.constant 5.000000e-01 : f32
    %619 = vector.broadcast %cst_147 : f32 to vector<2x32xf32>
    %620 = arith.mulf %619, %618 : vector<2x32xf32>
    %621 = math.tanh %620 : vector<2x32xf32>
    %cst_148 = arith.constant 5.000000e-01 : f32
    %622 = vector.broadcast %cst_148 : f32 to vector<2x32xf32>
    %623 = arith.mulf %622, %621 : vector<2x32xf32>
    %cst_149 = arith.constant 5.000000e-01 : f32
    %624 = vector.broadcast %cst_149 : f32 to vector<2x32xf32>
    %625 = arith.addf %623, %624 : vector<2x32xf32>
    %626 = vector.extract_strided_slice %564 {offsets = [0, 64], sizes = [2, 32], strides = [1, 1]} : vector<2x96xf32> to vector<2x32xf32>
    %627 = vector.extract_strided_slice %605 {offsets = [0, 64], sizes = [2, 32], strides = [1, 1]} : vector<2x96xf32> to vector<2x32xf32>
    %628 = vector.broadcast %20 : vector<1x32xf32> to vector<2x32xf32>
    %629 = arith.addf %627, %628 : vector<2x32xf32>
    %630 = arith.mulf %615, %629 : vector<2x32xf32>
    %631 = arith.addf %626, %630 : vector<2x32xf32>
    %632 = math.tanh %631 : vector<2x32xf32>
    %633 = arith.subf %562, %632 : vector<2x32xf32>
    %634 = arith.mulf %625, %633 : vector<2x32xf32>
    %635 = arith.addf %632, %634 : vector<2x32xf32>
    %636 = vector.shape_cast %603 : vector<2x1xi1> to vector<2x1xi1>
    %637 = vector.broadcast %636 : vector<2x1xi1> to vector<2x32xi1>
    %638 = arith.select %637, %635, %562 : vector<2x32xi1>, vector<2x32xf32>
    %639 = arith.truncf %601 : vector<2x32xf32> to vector<2x32xbf16>
    %c0_150 = arith.constant 0 : index
    %c0_151 = arith.constant 0 : index
    %c0_152 = arith.constant 0 : index
    %640 = vector.load %arg7[%c0_150, %c0_151, %c0_152] : memref<2x32x32xbf16, #tpu.memory_space<vmem>>, vector<1x32x32xbf16>
    %641 = vector.shape_cast %640 : vector<1x32x32xbf16> to vector<32x32xbf16>
    %cst_153 = arith.constant dense<0.000000e+00> : vector<2x32xf32>
    %642 = tpu.matmul %639, %641, %cst_153 {dimension_numbers = #tpu.dot_dimension_numbers<[1], [0], [0], [1], [0, 0, 1, 1], [], []>} : vector<2x32xbf16>, vector<32x32xbf16>, vector<2x32xf32> -> vector<2x32xf32>
    %643 = arith.truncf %638 : vector<2x32xf32> to vector<2x32xbf16>
    %c1_154 = arith.constant 1 : index
    %c0_155 = arith.constant 0 : index
    %c0_156 = arith.constant 0 : index
    %644 = vector.load %arg7[%c1_154, %c0_155, %c0_156] : memref<2x32x32xbf16, #tpu.memory_space<vmem>>, vector<1x32x32xbf16>
    %645 = vector.shape_cast %644 : vector<1x32x32xbf16> to vector<32x32xbf16>
    %cst_157 = arith.constant dense<0.000000e+00> : vector<2x32xf32>
    %646 = tpu.matmul %643, %645, %cst_157 {dimension_numbers = #tpu.dot_dimension_numbers<[1], [0], [0], [1], [0, 0, 1, 1], [], []>} : vector<2x32xbf16>, vector<32x32xbf16>, vector<2x32xf32> -> vector<2x32xf32>
    %647 = arith.addf %642, %646 : vector<2x32xf32>
    %648 = vector.broadcast %22 : vector<1x32xf32> to vector<2x32xf32>
    %649 = arith.addf %647, %648 : vector<2x32xf32>
    %cst_158 = arith.constant dense<0.000000e+00> : vector<2xf32>
    %650 = vector.multi_reduction <add>, %649, %cst_158 [1] : vector<2x32xf32> to vector<2xf32>
    %651 = vector.shape_cast %650 : vector<2xf32> to vector<2x1xf32>
    %cst_159 = arith.constant 3.200000e+01 : f32
    %652 = vector.broadcast %cst_159 : f32 to vector<2x1xf32>
    %653 = arith.divf %651, %652 : vector<2x1xf32>
    %654 = vector.broadcast %653 : vector<2x1xf32> to vector<2x32xf32>
    %655 = arith.subf %649, %654 : vector<2x32xf32>
    %656 = arith.mulf %655, %655 : vector<2x32xf32>
    %cst_160 = arith.constant dense<0.000000e+00> : vector<2xf32>
    %657 = vector.multi_reduction <add>, %656, %cst_160 [1] : vector<2x32xf32> to vector<2xf32>
    %658 = vector.shape_cast %657 : vector<2xf32> to vector<2x1xf32>
    %cst_161 = arith.constant 3.200000e+01 : f32
    %659 = vector.broadcast %cst_161 : f32 to vector<2x1xf32>
    %660 = arith.divf %658, %659 : vector<2x1xf32>
    %661 = vector.broadcast %653 : vector<2x1xf32> to vector<2x32xf32>
    %662 = arith.subf %649, %661 : vector<2x32xf32>
    %cst_162 = arith.constant 9.99999974E-6 : f32
    %663 = vector.broadcast %cst_162 : f32 to vector<2x1xf32>
    %664 = arith.addf %660, %663 : vector<2x1xf32>
    %665 = math.rsqrt %664 : vector<2x1xf32>
    %666 = vector.broadcast %665 : vector<2x1xf32> to vector<2x32xf32>
    %667 = arith.mulf %662, %666 : vector<2x32xf32>
    %668 = vector.broadcast %24 : vector<1x32xf32> to vector<2x32xf32>
    %669 = arith.mulf %667, %668 : vector<2x32xf32>
    %670 = vector.broadcast %26 : vector<1x32xf32> to vector<2x32xf32>
    %671 = arith.addf %669, %670 : vector<2x32xf32>
    %cst_163 = arith.constant 0.000000e+00 : f32
    %672 = vector.broadcast %cst_163 : f32 to vector<2x32xf32>
    %673 = arith.cmpf ogt, %671, %672 : vector<2x32xf32>
    %cst_164 = arith.constant 2.000000e-01 : f32
    %674 = vector.broadcast %cst_164 : f32 to vector<2x32xf32>
    %675 = arith.mulf %674, %671 : vector<2x32xf32>
    %676 = arith.select %673, %671, %675 : vector<2x32xi1>, vector<2x32xf32>
    %677 = arith.truncf %676 : vector<2x32xf32> to vector<2x32xbf16>
    %c0_165 = arith.constant 0 : index
    %c0_166 = arith.constant 0 : index
    %678 = vector.load %arg8[%c0_165, %c0_166] : memref<32x32xbf16, #tpu.memory_space<vmem>>, vector<32x32xbf16>
    %cst_167 = arith.constant dense<0.000000e+00> : vector<2x32xf32>
    %679 = tpu.matmul %677, %678, %cst_167 {dimension_numbers = #tpu.dot_dimension_numbers<[1], [0], [0], [1], [0, 0, 1, 1], [], []>} : vector<2x32xbf16>, vector<32x32xbf16>, vector<2x32xf32> -> vector<2x32xf32>
    %c0_168 = arith.constant 0 : index
    %c0_169 = arith.constant 0 : index
    %680 = vector.load %arg9[%c0_168, %c0_169] : memref<1x32xf32, #tpu.memory_space<vmem>>, vector<1x32xf32>
    %681 = vector.broadcast %680 : vector<1x32xf32> to vector<2x32xf32>
    %682 = arith.addf %679, %681 : vector<2x32xf32>
    %c0_170 = arith.constant 0 : index
    %c0_171 = arith.constant 0 : index
    %683 = vector.load %arg10[%c0_170, %c0_171] : memref<2x32xf32, #tpu.memory_space<vmem>>, vector<2x32xf32>
    tpu.vector_store %arg10[%c0_170, %c0_171], %682 {strides = array<i32>} : memref<2x32xf32, #tpu.memory_space<vmem>>, vector<2x32xf32>,
    return
  }
  func.func @transform_0(%arg0: i32) -> (i32, i32, i32) {
    %c0_i32 = arith.constant 0 : i32
    %c0_i32_0 = arith.constant 0 : i32
    %c0_i32_1 = arith.constant 0 : i32
    return %arg0, %c0_i32, %c0_i32_0 : i32, i32, i32
  }
  func.func @transform_1(%arg0: i32) -> (i32, i32, i32) {
    %c0_i32 = arith.constant 0 : i32
    %c0_i32_0 = arith.constant 0 : i32
    %c0_i32_1 = arith.constant 0 : i32
    return %arg0, %c0_i32, %c0_i32_0 : i32, i32, i32
  }
  func.func @transform_2(%arg0: i32) -> (i32, i32) {
    %c0_i32 = arith.constant 0 : i32
    %c0_i32_0 = arith.constant 0 : i32
    %c0_i32_1 = arith.constant 0 : i32
    return %c0_i32, %c0_i32_0 : i32, i32
  }
  func.func @transform_3(%arg0: i32) -> (i32, i32) {
    %c0_i32 = arith.constant 0 : i32
    %c0_i32_0 = arith.constant 0 : i32
    %c0_i32_1 = arith.constant 0 : i32
    return %c0_i32, %c0_i32_0 : i32, i32
  }
  func.func @transform_4(%arg0: i32) -> (i32, i32, i32) {
    %c0_i32 = arith.constant 0 : i32
    %c0_i32_0 = arith.constant 0 : i32
    %c0_i32_1 = arith.constant 0 : i32
    %c0_i32_2 = arith.constant 0 : i32
    return %c0_i32, %c0_i32_0, %c0_i32_1 : i32, i32, i32
  }
  func.func @transform_5(%arg0: i32) -> (i32, i32, i32) {
    %c0_i32 = arith.constant 0 : i32
    %c0_i32_0 = arith.constant 0 : i32
    %c0_i32_1 = arith.constant 0 : i32
    %c0_i32_2 = arith.constant 0 : i32
    return %c0_i32, %c0_i32_0, %c0_i32_1 : i32, i32, i32
  }
  func.func @transform_6(%arg0: i32) -> (i32, i32, i32) {
    %c0_i32 = arith.constant 0 : i32
    %c0_i32_0 = arith.constant 0 : i32
    %c0_i32_1 = arith.constant 0 : i32
    %c0_i32_2 = arith.constant 0 : i32
    return %c0_i32, %c0_i32_0, %c0_i32_1 : i32, i32, i32
  }
  func.func @transform_7(%arg0: i32) -> (i32, i32) {
    %c0_i32 = arith.constant 0 : i32
    %c0_i32_0 = arith.constant 0 : i32
    %c0_i32_1 = arith.constant 0 : i32
    return %c0_i32, %c0_i32_0 : i32, i32
  }
  func.func @transform_8(%arg0: i32) -> (i32, i32) {
    %c0_i32 = arith.constant 0 : i32
    %c0_i32_0 = arith.constant 0 : i32
    %c0_i32_1 = arith.constant 0 : i32
    return %c0_i32, %c0_i32_0 : i32, i32
  }
  func.func @transform_9(%arg0: i32) -> (i32, i32) {
    %c0_i32 = arith.constant 0 : i32
    %c0_i32_0 = arith.constant 0 : i32
    return %arg0, %c0_i32 : i32, i32
  }
}

</mosaic_0001>

<llo_original>
// kernel: tpu_custom_call.1
$region0: #{tpu_custom_call.1}
  #allocation0 [shape = 'u32[]', space=smem, size = 0x4, offset = 0x4, fixed_abs, tag = 'smem constant byte address 0x4 - core index']
  #allocation1 [shape = 'u32[144,128]{1,0:T(1,128)}', space=vmem, size = 0x12000, scoped, tag = 'internal scratch']
  %s0 = inlined_call_operand.vmem [shape: s32[1,2,1], index: 0, kind: input, shape index: {}]
  %s1 = inlined_call_operand.hbm [shape: bf16[1,16,48], index: 1, kind: input, shape index: {}]
  %s2 = inlined_call_operand.hbm [shape: bf16[48,192], index: 2, kind: input, shape index: {}]
  %s3 = inlined_call_operand.vmem [shape: f32[1,192], index: 3, kind: input, shape index: {}]
  %s4 = inlined_call_operand.hbm [shape: bf16[2,32,96], index: 4, kind: input, shape index: {}]
  %s5 = inlined_call_operand.vmem [shape: f32[7,1,32], index: 5, kind: input, shape index: {}]
  %s6 = inlined_call_operand.hbm [shape: bf16[2,32,32], index: 6, kind: input, shape index: {}]
  %s7 = inlined_call_operand.vmem [shape: bf16[32,32], index: 7, kind: input, shape index: {}]
  %s8 = inlined_call_operand.vmem [shape: f32[1,32], index: 8, kind: input, shape index: {}]
  %s9 = inlined_call_operand.hbm [shape: f32[2,32], index: 9, kind: output, shape index: {}]
  %s10 = sld [smem:[#allocation0]]
  $region62: #{tpu_custom_call.1} parent=0
    _
  %s12 = ssub.s32 1, %s10
  %s13 = scalar_select 0, %s12, %s10
  $region1: #{tpu_custom_call.1} parent=0
    #allocation2 [shape = 'u8[4096]{0}', space=vmem, size = 0x1000, scoped, tag = 'input window, operand 1, single buffered']
    #allocation3 [shape = 's32[1]{0}', space=sflag, size = 0x4, scoped, tag = 'scoped memory for tpu_custom_call.1']
    #allocation4 [shape = 's32[1]{0}', space=sflag, size = 0x4, scoped, tag = 'scoped memory for tpu_custom_call.1']
    #allocation5 [shape = 'u8[24576]{0}', space=vmem, size = 0x6000, scoped, tag = 'input window, operand 2, single buffered']
    #allocation6 [shape = 's32[1]{0}', space=sflag, size = 0x4, scoped, tag = 'scoped memory for tpu_custom_call.1']
    #allocation7 [shape = 'u8[16384]{0}', space=vmem, size = 0x4000, scoped, tag = 'input window, operand 4, single buffered']
    #allocation8 [shape = 'u8[16384]{0}', space=vmem, size = 0x4000, scoped, tag = 'input window, operand 6, single buffered']
    #allocation9 [shape = 's32[1]{0}', space=sflag, size = 0x4, scoped, tag = 'scoped memory for tpu_custom_call.1']
    #allocation10 [shape = 'u8[1024]{0}', space=vmem, size = 0x400, scoped, tag = 'output window, operand 0, single buffered']
    %14 = vsyncpa [#allocation3], 0
    %15 = vsyncpa [#allocation6], 0
    %16 = vsyncpa [#allocation9], 0
    %17 = vsyncpa [#allocation4], 0
    // Predicated region
    $region2: #{tpu_custom_call.1} parent=1 // pred_check
      _
    $region3: #{tpu_custom_call.1} parent=1 // pred_check_branch
      %19 = sbr.rel (0) target = $region5
    $region4: #{tpu_custom_call.1} parent=1 // pred_region
      _
    $region5: #{tpu_custom_call.1} parent=1 // pred_fallthru
      _
    // Predicated region
    $region6: #{tpu_custom_call.1} parent=1 // pred_check
      _
    $region7: #{tpu_custom_call.1} parent=1 // pred_check_branch
      %21 = sbr.rel (0) target = $region9
    $region8: #{tpu_custom_call.1} parent=1 // pred_region
      %s23 = ssub.s32 128, 128
      %24 = vsyncadd [#allocation3], %s23
      %s25 = sshll.u32 [#allocation2], 4
      %s26 = int_to_ptr.vmem [resolvable:$true] %s25
      %31 = dma.hbm_to_vmem [thread:$0]  %s1, 128, %s26, [#allocation3], 64, 64, 4
    $region9: #{tpu_custom_call.1} parent=1 // pred_fallthru
      _
    // Predicated region
    $region10: #{tpu_custom_call.1} parent=1 // pred_check
      _
    $region11: #{tpu_custom_call.1} parent=1 // pred_check_branch
      %33 = sbr.rel (0) target = $region13
    $region12: #{tpu_custom_call.1} parent=1 // pred_region
      %s35 = ssub.s32 768, 768
      %36 = vsyncadd [#allocation6], %s35
      %s37 = sshll.u32 [#allocation5], 4
      %s38 = int_to_ptr.vmem [resolvable:$true] %s37
      %43 = dma.hbm_to_vmem [thread:$0]  %s2, 768, %s38, [#allocation6], 128, 128, 8
    $region13: #{tpu_custom_call.1} parent=1 // pred_fallthru
      _
    // Predicated region
    $region14: #{tpu_custom_call.1} parent=1 // pred_check
      _
    $region15: #{tpu_custom_call.1} parent=1 // pred_check_branch
      %45 = sbr.rel (0) target = $region17
    $region16: #{tpu_custom_call.1} parent=1 // pred_region
      _
    $region17: #{tpu_custom_call.1} parent=1 // pred_fallthru
      _
    // Predicated region
    $region18: #{tpu_custom_call.1} parent=1 // pred_check
      _
    $region19: #{tpu_custom_call.1} parent=1 // pred_check_branch
      %47 = sbr.rel (0) target = $region21
    $region20: #{tpu_custom_call.1} parent=1 // pred_region
      %s49 = ssub.s32 512, 512
      %50 = vsyncadd [#allocation6], %s49
      %s51 = sshll.u32 [#allocation7], 4
      %s52 = int_to_ptr.vmem [resolvable:$true] %s51
      %57 = dma.hbm_to_vmem [thread:$0]  %s4, 512, %s52, [#allocation6], 64, 64, 4
    $region21: #{tpu_custom_call.1} parent=1 // pred_fallthru
      _
    // Predicated region
    $region22: #{tpu_custom_call.1} parent=1 // pred_check
      _
    $region23: #{tpu_custom_call.1} parent=1 // pred_check_branch
      %59 = sbr.rel (0) target = $region25
    $region24: #{tpu_custom_call.1} parent=1 // pred_region
      _
    $region25: #{tpu_custom_call.1} parent=1 // pred_fallthru
      _
    // Predicated region
    $region26: #{tpu_custom_call.1} parent=1 // pred_check
      _
    $region27: #{tpu_custom_call.1} parent=1 // pred_check_branch
      %61 = sbr.rel (0) target = $region29
    $region28: #{tpu_custom_call.1} parent=1 // pred_region
      %s63 = ssub.s32 512, 512
      %64 = vsyncadd [#allocation9], %s63
      %s65 = sshll.u32 [#allocation8], 4
      %s66 = int_to_ptr.vmem [resolvable:$true] %s65
      %71 = dma.hbm_to_vmem [thread:$0]  %s6, 512, %s66, [#allocation9], 64, 64, 4
    $region29: #{tpu_custom_call.1} parent=1 // pred_fallthru
      _
    // Predicated region
    $region30: #{tpu_custom_call.1} parent=1 // pred_check
      _
    $region31: #{tpu_custom_call.1} parent=1 // pred_check_branch
      %73 = sbr.rel (0) target = $region33
    $region32: #{tpu_custom_call.1} parent=1 // pred_region
      _
    $region33: #{tpu_custom_call.1} parent=1 // pred_fallthru
      _
    // Predicated region
    $region34: #{tpu_custom_call.1} parent=1 // pred_check
      _
    $region35: #{tpu_custom_call.1} parent=1 // pred_check_branch
      %75 = sbr.rel (0) target = $region37
    $region36: #{tpu_custom_call.1} parent=1 // pred_region
      _
    $region37: #{tpu_custom_call.1} parent=1 // pred_fallthru
      _
    // Predicated region
    $region38: #{tpu_custom_call.1} parent=1 // pred_check
      _
    $region39: #{tpu_custom_call.1} parent=1 // pred_check_branch
      %77 = sbr.rel (0) target = $region41
    $region40: #{tpu_custom_call.1} parent=1 // pred_region
      %78 = dma.done [#allocation3], 128
    $region41: #{tpu_custom_call.1} parent=1 // pred_fallthru
      _
    // Predicated region
    $region42: #{tpu_custom_call.1} parent=1 // pred_check
      _
    $region43: #{tpu_custom_call.1} parent=1 // pred_check_branch
      %80 = sbr.rel (0) target = $region45
    $region44: #{tpu_custom_call.1} parent=1 // pred_region
      %81 = dma.done [#allocation6], 768
    $region45: #{tpu_custom_call.1} parent=1 // pred_fallthru
      _
    // Predicated region
    $region46: #{tpu_custom_call.1} parent=1 // pred_check
      _
    $region47: #{tpu_custom_call.1} parent=1 // pred_check_branch
      %83 = sbr.rel (0) target = $region49
    $region48: #{tpu_custom_call.1} parent=1 // pred_region
      %84 = dma.done [#allocation6], 512
    $region49: #{tpu_custom_call.1} parent=1 // pred_fallthru
      _
    // Predicated region
    $region50: #{tpu_custom_call.1} parent=1 // pred_check
      _
    $region51: #{tpu_custom_call.1} parent=1 // pred_check_branch
      %86 = sbr.rel (0) target = $region53
    $region52: #{tpu_custom_call.1} parent=1 // pred_region
      %87 = dma.done [#allocation9], 512
    $region53: #{tpu_custom_call.1} parent=1 // pred_fallthru
      _
    %v89 = vld [vmem:[%s0] sm:$0x3]
    %v90 = vld [vmem:[#allocation2] sm:$0xf]
    %v91 = vld [vmem:[#allocation2 + $0x4] sm:$0xf]
    %v92 = vld [vmem:[#allocation5] sm:$0xff]
    %v93 = vld [vmem:[#allocation5 + $0x8] sm:$0xff]
    %v94 = vld [vmem:[#allocation5 + $0x10] sm:$0xff]
    %v95 = vld [vmem:[#allocation5 + $0x18] sm:$0xff]
    %v96 = vld [vmem:[#allocation5 + $0x20] sm:$0xff]
    %v97 = vld [vmem:[#allocation5 + $0x28] sm:$0xff]
    %v98 = vld [vmem:[%s3] sm:$0x3]
    %v100 = vlaneseq
    %v101 = vshrl.u32 %v100, 7
    %v102 = vsub.s32 0, %v101
    %v103 = vrot.slane %v98, %v102
    %v104 = vlaneseq
    %v105 = vshrl.u32 %v104, 7
    %v106 = vsub.s32 1, %v105
    %v107 = vrot.slane %v98, %v106
    %v112 = vunpack.c.l.b16 %v90
    %v113 = vunpack.c.l.b16 %v91
    %v114 = vpack.c.b16 %v113, %v112
    %v121 = vunpack.c.l.b16 %v92
    %v122 = vunpack.c.h.b16 %v92
    %v123 = vunpack.c.l.b16 %v93
    %v124 = vunpack.c.h.b16 %v93
    %v125 = vunpack.c.l.b16 %v94
    %v126 = vunpack.c.h.b16 %v94
    %v127 = vunpack.c.l.b16 %v95
    %v128 = vunpack.c.h.b16 %v95
    %v129 = vunpack.c.l.b16 %v96
    %v130 = vunpack.c.h.b16 %v96
    %v131 = vunpack.c.l.b16 %v97
    %v132 = vunpack.c.h.b16 %v97
    %v133 = vpack.c.b16 %v123, %v121
    %v134 = vpack.c.b16 %v124, %v122
    %v135 = vpack.c.b16 %v127, %v125
    %v136 = vpack.c.b16 %v128, %v126
    %v137 = vpack.c.b16 %v131, %v129
    %v138 = vpack.c.b16 %v132, %v130
    %vm145 = vcmask 392192
    %v147 = vsel %vm145, %v114, 0
    %149 = vmatprep.subr.bf16.mxu0 %v134
    %150 = vmatpush1.bf16.msra.mxu0 %v133
    %151 = vmatprep.subr.bf16.mxu0 %v136
    %152 = vmatpush1.bf16.msra.mxu0 %v135
    %153 = vmatprep.subr.bf16.mxu0 %v138
    %154 = vmatpush1.bf16.msra.mxu0 %v137
    %155 = vmatprep.subr.bf16.mxu0 0
    %156 = vmatpush1.bf16.msra.mxu0 0
    %157 = vmatprep.subr.bf16.mxu0 0
    %158 = vmatpush1.bf16.msra.mxu0 0
    %159 = vmatprep.subr.bf16.mxu0 0
    %160 = vmatpush1.bf16.msra.mxu0 0
    %161 = vmatprep.subr.bf16.mxu0 0
    %162 = vmatpush1.bf16.msra.mxu0 0
    %163 = vmatprep.subr.bf16.mxu0 0
    %164 = vmatpush1.bf16.msra.mxu0 0
    %165 = vmatprep.subr.bf16.mxu0 0
    %166 = vmatpush1.bf16.msra.mxu0 0
    %167 = vmatprep.subr.bf16.mxu0 0
    %168 = vmatpush1.bf16.msra.mxu0 0
    %169 = vmatprep.subr.bf16.mxu0 0
    %170 = vmatpush1.bf16.msra.mxu0 0
    %171 = vmatprep.subr.bf16.mxu0 0
    %172 = vmatpush1.bf16.msra.mxu0 0
    %173 = vmatprep.subr.bf16.mxu0 0
    %174 = vmatpush1.bf16.msra.mxu0 0
    %175 = vmatprep.subr.bf16.mxu0 0
    %176 = vmatpush1.bf16.msra.mxu0 0
    %177 = vmatprep.subr.bf16.mxu0 0
    %178 = vmatpush1.bf16.msra.mxu0 0
    %179 = vmatprep.subr.bf16.mxu0 0
    %180 = vmatpush1.bf16.msra.mxu0 0
    %181 = vmatprep.mubr.bf16.mxu0 0
    %182 = vmatmul.mubr.bf16.gmra.mrb[0].mxu0 %v147
    %v183 = vpop.f32.mrb[0].mxu0
    %v184 = vadd.f32 %v103, %v183
    %v185 = vpop.f32.mrb[0].mxu0
    %v186 = vadd.f32 %v107, %v185
    %v187 = vpop.f32.mrb[0].mxu0
    %v188 = vadd.f32 %v103, %v187
    %v189 = vpop.f32.mrb[0].mxu0
    %v190 = vadd.f32 %v107, %v189
    %191 = vdwg.mxu0
    %v192 = vld [vmem:[#allocation7] sm:$0xf]
    %v193 = vld [vmem:[#allocation7 + $0x4] sm:$0xf]
    %v194 = vld [vmem:[#allocation7 + $0x8] sm:$0xf]
    %v195 = vld [vmem:[#allocation7 + $0xc] sm:$0xf]
    %s196 = scalar_lea.vmem [#allocation7], 16
    %v197 = vld [vmem:[%s196] sm:$0xf]
    %v198 = vld [vmem:[%s196 + $0x4] sm:$0xf]
    %v199 = vld [vmem:[%s196 + $0x8] sm:$0xf]
    %v200 = vld [vmem:[%s196 + $0xc] sm:$0xf]
    %v201 = vld [vmem:[%s5] sm:$0x1]
    %s202 = scalar_lea.vmem %s5, 1
    %v203 = vld [vmem:[%s202] sm:$0x1]
    %s204 = scalar_lea.vmem %s5, 2
    %v205 = vld [vmem:[%s204] sm:$0x1]
    %s206 = scalar_lea.vmem %s5, 3
    %v207 = vld [vmem:[%s206] sm:$0x1]
    %s208 = scalar_lea.vmem %s5, 4
    %v209 = vld [vmem:[%s208] sm:$0x1]
    %s210 = scalar_lea.vmem %s5, 5
    %v211 = vld [vmem:[%s210] sm:$0x1]
    %s212 = scalar_lea.vmem %s5, 6
    %v213 = vld [vmem:[%s212] sm:$0x1]
    %v215 = vlaneseq
    %v216 = vshrl.u32 %v215, 7
    %v217 = vsub.s32 0, %v216
    %v218 = vrot.slane %v201, %v217
    %v221 = vlaneseq
    %v222 = vshrl.u32 %v221, 7
    %v223 = vsub.s32 0, %v222
    %v224 = vrot.slane %v203, %v223
    %vm226 = vcmp.gt.s32.totalorder %v89, 0
    %v227 = vpack.c.bf16 %v218, %v218
    %v232 = vunpack.c.l.b16 %v192
    %v233 = vunpack.c.l.b16 %v193
    %v234 = vunpack.c.l.b16 %v194
    %v235 = vunpack.c.l.b16 %v195
    %v236 = vpack.c.b16 %v233, %v232
    %v237 = vpack.c.b16 %v235, %v234
    %vm240 = vcmask 261120
    %v242 = vsel %vm240, %v227, 0
    %244 = vmatprep.subr.bf16.mxu0 0
    %245 = vmatpush1.bf16.msra.mxu0 %v236
    %246 = vmatprep.subr.bf16.mxu0 0
    %247 = vmatpush1.bf16.msra.mxu0 %v237
    %248 = vmatprep.subr.bf16.mxu0 0
    %249 = vmatpush1.bf16.msra.mxu0 0
    %250 = vmatprep.subr.bf16.mxu0 0
    %251 = vmatpush1.bf16.msra.mxu0 0
    %252 = vmatprep.subr.bf16.mxu0 0
    %253 = vmatpush1.bf16.msra.mxu0 0
    %254 = vmatprep.subr.bf16.mxu0 0
    %255 = vmatpush1.bf16.msra.mxu0 0
    %256 = vmatprep.subr.bf16.mxu0 0
    %257 = vmatpush1.bf16.msra.mxu0 0
    %258 = vmatprep.subr.bf16.mxu0 0
    %259 = vmatpush1.bf16.msra.mxu0 0
    %260 = vmatprep.subr.bf16.mxu0 0
    %261 = vmatpush1.bf16.msra.mxu0 0
    %262 = vmatprep.subr.bf16.mxu0 0
    %263 = vmatpush1.bf16.msra.mxu0 0
    %264 = vmatprep.subr.bf16.mxu0 0
    %265 = vmatpush1.bf16.msra.mxu0 0
    %266 = vmatprep.subr.bf16.mxu0 0
    %267 = vmatpush1.bf16.msra.mxu0 0
    %268 = vmatprep.subr.bf16.mxu0 0
    %269 = vmatpush1.bf16.msra.mxu0 0
    %270 = vmatprep.subr.bf16.mxu0 0
    %271 = vmatpush1.bf16.msra.mxu0 0
    %272 = vmatprep.subr.bf16.mxu0 0
    %273 = vmatpush1.bf16.msra.mxu0 0
    %274 = vmatprep.subr.bf16.mxu0 0
    %275 = vmatpush1.bf16.msra.mxu0 0
    %276 = vmatprep.mubr.bf16.mxu0 0
    %277 = vmatmul.mubr.bf16.gmra.mrb[0].mxu0 %v242
    %v278 = vpop.f32.mrb[0].mxu0
    %v279 = vadd.f32 0.0, %v278
    %v280 = vpop.f32.mrb[0].mxu0
    %v281 = vpop.f32.mrb[0].mxu0
    %v282 = vpop.f32.mrb[0].mxu0
    %283 = vdwg.mxu0
    %v284 = vadd.f32 %v184, %v279
    %v285 = vmul.f32 %v284, 0.5
    %v286 = vtanh.pop %v285
    %v287 = vmul.f32 %v286, 0.5
    %v288 = vadd.f32 %v287, 0.5
    %v290 = vlaneseq
    %v291 = vshrl.u32 %v290, 7
    %v292 = vsub.s32 0, %v291
    %v293 = vrot.slane %v205, %v292
    %294 = vrot.lane.b32.xlu0 %v293, 64
    %v295 = vpop.permute.xlu0 %294
    %v297 = vadd.f32 %v279, %v295
    %299 = vrot.lane.b32.xlu0 %v297, 64
    %v300 = vpop.permute.xlu0 %299
    %v302 = vmul.f32 %v288, %v300
    %304 = vrot.lane.b32.xlu0 %v302, 64
    %v305 = vpop.permute.xlu0 %304
    %v307 = vadd.f32 %v184, %v305
    %v308 = vtanh.pop %v307
    %310 = vrot.lane.b32.xlu0 %v308, 64
    %v311 = vpop.permute.xlu0 %310
    %v313 = vsub.f32 %v218, %v311
    %315 = vrot.lane.b32.xlu0 %v313, 32
    %v316 = vpop.permute.xlu0 %315
    %v318 = vmul.f32 %v288, %v316
    %320 = vrot.lane.b32.xlu0 %v318, 32
    %v321 = vpop.permute.xlu0 %320
    %v323 = vadd.f32 %v308, %v321
    %v324 = vsel %vm226, 1, 0
    %325 = vset.pattern.permute.xlu0 0
    %326 = vperm.xlu0 %325, %v324
    %v327 = vpop.permute.xlu0 %326
    %vm328 = vcmp.eq.s32.totalorder %v327, 1
    %329 = vrot.lane.b32.xlu0 %v218, 64
    %v330 = vpop.permute.xlu0 %329
    %v332 = vsel %vm328, %v323, %v330
    %vm333 = vcmp.gt.s32.totalorder %v89, 7
    %v334 = vpack.c.bf16 %v224, %v224
    %v339 = vunpack.c.l.b16 %v197
    %v340 = vunpack.c.l.b16 %v198
    %v341 = vunpack.c.l.b16 %v199
    %v342 = vunpack.c.l.b16 %v200
    %v343 = vpack.c.b16 %v340, %v339
    %v344 = vpack.c.b16 %v342, %v341
    %v348 = vsel %vm240, %v334, 0
    %350 = vmatprep.subr.bf16.mxu0 0
    %351 = vmatpush1.bf16.msra.mxu0 %v343
    %352 = vmatprep.subr.bf16.mxu0 0
    %353 = vmatpush1.bf16.msra.mxu0 %v344
    %354 = vmatprep.subr.bf16.mxu0 0
    %355 = vmatpush1.bf16.msra.mxu0 0
    %356 = vmatprep.subr.bf16.mxu0 0
    %357 = vmatpush1.bf16.msra.mxu0 0
    %358 = vmatprep.subr.bf16.mxu0 0
    %359 = vmatpush1.bf16.msra.mxu0 0
    %360 = vmatprep.subr.bf16.mxu0 0
    %361 = vmatpush1.bf16.msra.mxu0 0
    %362 = vmatprep.subr.bf16.mxu0 0
    %363 = vmatpush1.bf16.msra.mxu0 0
    %364 = vmatprep.subr.bf16.mxu0 0
    %365 = vmatpush1.bf16.msra.mxu0 0
    %366 = vmatprep.subr.bf16.mxu0 0
    %367 = vmatpush1.bf16.msra.mxu0 0
    %368 = vmatprep.subr.bf16.mxu0 0
    %369 = vmatpush1.bf16.msra.mxu0 0
    %370 = vmatprep.subr.bf16.mxu0 0
    %371 = vmatpush1.bf16.msra.mxu0 0
    %372 = vmatprep.subr.bf16.mxu0 0
    %373 = vmatpush1.bf16.msra.mxu0 0
    %374 = vmatprep.subr.bf16.mxu0 0
    %375 = vmatpush1.bf16.msra.mxu0 0
    %376 = vmatprep.subr.bf16.mxu0 0
    %377 = vmatpush1.bf16.msra.mxu0 0
    %378 = vmatprep.subr.bf16.mxu0 0
    %379 = vmatpush1.bf16.msra.mxu0 0
    %380 = vmatprep.subr.bf16.mxu0 0
    %381 = vmatpush1.bf16.msra.mxu0 0
    %382 = vmatprep.mubr.bf16.mxu0 0
    %383 = vmatmul.mubr.bf16.gmra.mrb[0].mxu0 %v348
    %v384 = vpop.f32.mrb[0].mxu0
    %v385 = vadd.f32 0.0, %v384
    %v386 = vpop.f32.mrb[0].mxu0
    %v387 = vpop.f32.mrb[0].mxu0
    %v388 = vpop.f32.mrb[0].mxu0
    %389 = vdwg.mxu0
    %v391 = vrot.slane %v385, 2
    %392 = vrot.lane.b32.xlu0 %v391, 96
    %v393 = vpop.permute.xlu0 %392
    %v395 = vadd.f32 %v188, %v393
    %v396 = vmul.f32 %v395, 0.5
    %v397 = vtanh.pop %v396
    %v398 = vmul.f32 %v397, 0.5
    %v399 = vadd.f32 %v398, 0.5
    %v400 = vadd.f32 %v190, %v393
    %v401 = vmul.f32 %v400, 0.5
    %v402 = vtanh.pop %v401
    %v403 = vmul.f32 %v402, 0.5
    %v404 = vadd.f32 %v403, 0.5
    %v406 = vlaneseq
    %v407 = vshrl.u32 %v406, 7
    %v408 = vsub.s32 0, %v407
    %v409 = vrot.slane %v207, %v408
    %410 = vrot.lane.b32.xlu0 %v409, 64
    %v411 = vpop.permute.xlu0 %410
    %v413 = vadd.f32 %v385, %v411
    %v415 = vrot.slane %v413, 2
    %416 = vrot.lane.b32.xlu0 %v415, 32
    %v417 = vpop.permute.xlu0 %416
    %v419 = vmul.f32 %v399, %v417
    %421 = vrot.lane.b32.xlu0 %v419, 64
    %v422 = vpop.permute.xlu0 %421
    %v424 = vadd.f32 %v190, %v422
    %v425 = vtanh.pop %v424
    %v427 = vrot.slane %v425, 6
    %428 = vrot.lane.b32.xlu0 %v427, 96
    %v429 = vpop.permute.xlu0 %428
    %v431 = vsub.f32 %v224, %v429
    %v433 = vrot.slane %v431, 2
    %v435 = vmul.f32 %v404, %v433
    %437 = vrot.lane.b32.xlu0 %v435, 32
    %v438 = vpop.permute.xlu0 %437
    %v440 = vadd.f32 %v425, %v438
    %v441 = vsel %vm333, 1, 0
    %442 = vset.pattern.permute.xlu0 0
    %443 = vperm.xlu0 %442, %v441
    %v444 = vpop.permute.xlu0 %443
    %vm445 = vcmp.eq.s32.totalorder %v444, 1
    %v447 = vrot.slane %v440, 6
    %448 = vrot.lane.b32.xlu0 %v447, 96
    %v449 = vpop.permute.xlu0 %448
    %v451 = vsel %vm445, %v449, %v224
    %vm452 = vcmp.gt.s32.totalorder %v89, 1
    %v453 = vpack.c.bf16 %v332, %v332
    %455 = vrot.lane.b32.xlu0 %v453, 64
    %v456 = vpop.permute.xlu0 %455
    %v458 = vsel %vm240, %v456, 0
    %460 = vmatprep.subr.bf16.mxu0 0
    %461 = vmatpush1.bf16.msra.mxu0 %v236
    %462 = vmatprep.subr.bf16.mxu0 0
    %463 = vmatpush1.bf16.msra.mxu0 %v237
    %464 = vmatprep.subr.bf16.mxu0 0
    %465 = vmatpush1.bf16.msra.mxu0 0
    %466 = vmatprep.subr.bf16.mxu0 0
    %467 = vmatpush1.bf16.msra.mxu0 0
    %468 = vmatprep.subr.bf16.mxu0 0
    %469 = vmatpush1.bf16.msra.mxu0 0
    %470 = vmatprep.subr.bf16.mxu0 0
    %471 = vmatpush1.bf16.msra.mxu0 0
    %472 = vmatprep.subr.bf16.mxu0 0
    %473 = vmatpush1.bf16.msra.mxu0 0
    %474 = vmatprep.subr.bf16.mxu0 0
    %475 = vmatpush1.bf16.msra.mxu0 0
    %476 = vmatprep.subr.bf16.mxu0 0
    %477 = vmatpush1.bf16.msra.mxu0 0
    %478 = vmatprep.subr.bf16.mxu0 0
    %479 = vmatpush1.bf16.msra.mxu0 0
    %480 = vmatprep.subr.bf16.mxu0 0
    %481 = vmatpush1.bf16.msra.mxu0 0
    %482 = vmatprep.subr.bf16.mxu0 0
    %483 = vmatpush1.bf16.msra.mxu0 0
    %484 = vmatprep.subr.bf16.mxu0 0
    %485 = vmatpush1.bf16.msra.mxu0 0
    %486 = vmatprep.subr.bf16.mxu0 0
    %487 = vmatpush1.bf16.msra.mxu0 0
    %488 = vmatprep.subr.bf16.mxu0 0
    %489 = vmatpush1.bf16.msra.mxu0 0
    %490 = vmatprep.subr.bf16.mxu0 0
    %491 = vmatpush1.bf16.msra.mxu0 0
    %492 = vmatprep.mubr.bf16.mxu0 0
    %493 = vmatmul.mubr.bf16.gmra.mrb[0].mxu0 %v458
    %v494 = vpop.f32.mrb[0].mxu0
    %v495 = vadd.f32 0.0, %v494
    %v496 = vpop.f32.mrb[0].mxu0
    %v497 = vpop.f32.mrb[0].mxu0
    %v498 = vpop.f32.mrb[0].mxu0
    %499 = vdwg.mxu0
    %v501 = vrot.slane %v495, 6
    %v503 = vadd.f32 %v184, %v501
    %v504 = vmul.f32 %v503, 0.5
    %v505 = vtanh.pop %v504
    %v506 = vmul.f32 %v505, 0.5
    %v507 = vadd.f32 %v506, 0.5
    %v508 = vadd.f32 %v495, %v295
    %v510 = vrot.slane %v508, 6
    %511 = vrot.lane.b32.xlu0 %v510, 64
    %v512 = vpop.permute.xlu0 %511
    %v514 = vmul.f32 %v507, %v512
    %516 = vrot.lane.b32.xlu0 %v514, 64
    %v517 = vpop.permute.xlu0 %516
    %v519 = vadd.f32 %v184, %v517
    %v520 = vtanh.pop %v519
    %v522 = vrot.slane %v520, 2
    %v524 = vsub.f32 %v332, %v522
    %v526 = vrot.slane %v524, 6
    %527 = vrot.lane.b32.xlu0 %v526, 96
    %v528 = vpop.permute.xlu0 %527
    %v530 = vmul.f32 %v507, %v528
    %532 = vrot.lane.b32.xlu0 %v530, 32
    %v533 = vpop.permute.xlu0 %532
    %v535 = vadd.f32 %v520, %v533
    %v536 = vsel %vm452, 1, 0
    %537 = vset.pattern.permute.xlu0 0
    %538 = vperm.xlu0 %537, %v536
    %v539 = vpop.permute.xlu0 %538
    %vm540 = vcmp.eq.s32.totalorder %v539, 1
    %v542 = vrot.slane %v535, 2
    %543 = vrot.lane.b32.xlu0 %v542, 64
    %v544 = vpop.permute.xlu0 %543
    %547 = vrot.lane.b32.xlu0 %v332, 64
    %v548 = vpop.permute.xlu0 %547
    %v550 = vsel %vm540, %v544, %v548
    %vm551 = vcmp.gt.s32.totalorder %v89, 6
    %v552 = vpack.c.bf16 %v451, %v451
    %v554 = vsel %vm240, %v552, 0
    %556 = vmatprep.subr.bf16.mxu0 0
    %557 = vmatpush1.bf16.msra.mxu0 %v343
    %558 = vmatprep.subr.bf16.mxu0 0
    %559 = vmatpush1.bf16.msra.mxu0 %v344
    %560 = vmatprep.subr.bf16.mxu0 0
    %561 = vmatpush1.bf16.msra.mxu0 0
    %562 = vmatprep.subr.bf16.mxu0 0
    %563 = vmatpush1.bf16.msra.mxu0 0
    %564 = vmatprep.subr.bf16.mxu0 0
    %565 = vmatpush1.bf16.msra.mxu0 0
    %566 = vmatprep.subr.bf16.mxu0 0
    %567 = vmatpush1.bf16.msra.mxu0 0
    %568 = vmatprep.subr.bf16.mxu0 0
    %569 = vmatpush1.bf16.msra.mxu0 0
    %570 = vmatprep.subr.bf16.mxu0 0
    %571 = vmatpush1.bf16.msra.mxu0 0
    %572 = vmatprep.subr.bf16.mxu0 0
    %573 = vmatpush1.bf16.msra.mxu0 0
    %574 = vmatprep.subr.bf16.mxu0 0
    %575 = vmatpush1.bf16.msra.mxu0 0
    %576 = vmatprep.subr.bf16.mxu0 0
    %577 = vmatpush1.bf16.msra.mxu0 0
    %578 = vmatprep.subr.bf16.mxu0 0
    %579 = vmatpush1.bf16.msra.mxu0 0
    %580 = vmatprep.subr.bf16.mxu0 0
    %581 = vmatpush1.bf16.msra.mxu0 0
    %582 = vmatprep.subr.bf16.mxu0 0
    %583 = vmatpush1.bf16.msra.mxu0 0
    %584 = vmatprep.subr.bf16.mxu0 0
    %585 = vmatpush1.bf16.msra.mxu0 0
    %586 = vmatprep.subr.bf16.mxu0 0
    %587 = vmatpush1.bf16.msra.mxu0 0
    %588 = vmatprep.mubr.bf16.mxu0 0
    %589 = vmatmul.mubr.bf16.gmra.mrb[0].mxu0 %v554
    %v590 = vpop.f32.mrb[0].mxu0
    %v591 = vadd.f32 0.0, %v590
    %v592 = vpop.f32.mrb[0].mxu0
    %v593 = vpop.f32.mrb[0].mxu0
    %v594 = vpop.f32.mrb[0].mxu0
    %595 = vdwg.mxu0
    %v597 = vrot.slane %v591, 4
    %598 = vrot.lane.b32.xlu0 %v597, 96
    %v599 = vpop.permute.xlu0 %598
    %v601 = vadd.f32 %v188, %v599
    %v602 = vmul.f32 %v601, 0.5
    %v603 = vtanh.pop %v602
    %v604 = vmul.f32 %v603, 0.5
    %v605 = vadd.f32 %v604, 0.5
    %v606 = vadd.f32 %v190, %v599
    %v607 = vmul.f32 %v606, 0.5
    %v608 = vtanh.pop %v607
    %v609 = vmul.f32 %v608, 0.5
    %v610 = vadd.f32 %v609, 0.5
    %v611 = vadd.f32 %v591, %v411
    %v613 = vrot.slane %v611, 4
    %614 = vrot.lane.b32.xlu0 %v613, 32
    %v615 = vpop.permute.xlu0 %614
    %v617 = vmul.f32 %v605, %v615
    %619 = vrot.lane.b32.xlu0 %v617, 64
    %v620 = vpop.permute.xlu0 %619
    %v622 = vadd.f32 %v190, %v620
    %v623 = vtanh.pop %v622
    %v625 = vrot.slane %v623, 4
    %626 = vrot.lane.b32.xlu0 %v625, 96
    %v627 = vpop.permute.xlu0 %626
    %v629 = vsub.f32 %v451, %v627
    %v631 = vrot.slane %v629, 4
    %v633 = vmul.f32 %v610, %v631
    %635 = vrot.lane.b32.xlu0 %v633, 32
    %v636 = vpop.permute.xlu0 %635
    %v638 = vadd.f32 %v623, %v636
    %v639 = vsel %vm551, 1, 0
    %640 = vset.pattern.permute.xlu0 0
    %641 = vperm.xlu0 %640, %v639
    %v642 = vpop.permute.xlu0 %641
    %vm643 = vcmp.eq.s32.totalorder %v642, 1
    %v645 = vrot.slane %v638, 4
    %646 = vrot.lane.b32.xlu0 %v645, 96
    %v647 = vpop.permute.xlu0 %646
    %v649 = vsel %vm643, %v647, %v451
    %vm650 = vcmp.gt.s32.totalorder %v89, 2
    %v651 = vpack.c.bf16 %v550, %v550
    %v653 = vsel %vm240, %v651, 0
    %655 = vmatprep.subr.bf16.mxu0 0
    %656 = vmatpush1.bf16.msra.mxu0 %v236
    %657 = vmatprep.subr.bf16.mxu0 0
    %658 = vmatpush1.bf16.msra.mxu0 %v237
    %659 = vmatprep.subr.bf16.mxu0 0
    %660 = vmatpush1.bf16.msra.mxu0 0
    %661 = vmatprep.subr.bf16.mxu0 0
    %662 = vmatpush1.bf16.msra.mxu0 0
    %663 = vmatprep.subr.bf16.mxu0 0
    %664 = vmatpush1.bf16.msra.mxu0 0
    %665 = vmatprep.subr.bf16.mxu0 0
    %666 = vmatpush1.bf16.msra.mxu0 0
    %667 = vmatprep.subr.bf16.mxu0 0
    %668 = vmatpush1.bf16.msra.mxu0 0
    %669 = vmatprep.subr.bf16.mxu0 0
    %670 = vmatpush1.bf16.msra.mxu0 0
    %671 = vmatprep.subr.bf16.mxu0 0
    %672 = vmatpush1.bf16.msra.mxu0 0
    %673 = vmatprep.subr.bf16.mxu0 0
    %674 = vmatpush1.bf16.msra.mxu0 0
    %675 = vmatprep.subr.bf16.mxu0 0
    %676 = vmatpush1.bf16.msra.mxu0 0
    %677 = vmatprep.subr.bf16.mxu0 0
    %678 = vmatpush1.bf16.msra.mxu0 0
    %679 = vmatprep.subr.bf16.mxu0 0
    %680 = vmatpush1.bf16.msra.mxu0 0
    %681 = vmatprep.subr.bf16.mxu0 0
    %682 = vmatpush1.bf16.msra.mxu0 0
    %683 = vmatprep.subr.bf16.mxu0 0
    %684 = vmatpush1.bf16.msra.mxu0 0
    %685 = vmatprep.subr.bf16.mxu0 0
    %686 = vmatpush1.bf16.msra.mxu0 0
    %687 = vmatprep.mubr.bf16.mxu0 0
    %688 = vmatmul.mubr.bf16.gmra.mrb[0].mxu0 %v653
    %v689 = vpop.f32.mrb[0].mxu0
    %v690 = vadd.f32 0.0, %v689
    %v691 = vpop.f32.mrb[0].mxu0
    %v692 = vpop.f32.mrb[0].mxu0
    %v693 = vpop.f32.mrb[0].mxu0
    %694 = vdwg.mxu0
    %v696 = vrot.slane %v690, 4
    %v698 = vadd.f32 %v184, %v696
    %v699 = vmul.f32 %v698, 0.5
    %v700 = vtanh.pop %v699
    %v701 = vmul.f32 %v700, 0.5
    %v702 = vadd.f32 %v701, 0.5
    %v703 = vadd.f32 %v690, %v295
    %v705 = vrot.slane %v703, 4
    %706 = vrot.lane.b32.xlu0 %v705, 64
    %v707 = vpop.permute.xlu0 %706
    %v709 = vmul.f32 %v702, %v707
    %711 = vrot.lane.b32.xlu0 %v709, 64
    %v712 = vpop.permute.xlu0 %711
    %v714 = vadd.f32 %v184, %v712
    %v715 = vtanh.pop %v714
    %v717 = vrot.slane %v715, 4
    %718 = vrot.lane.b32.xlu0 %v717, 64
    %v719 = vpop.permute.xlu0 %718
    %v721 = vsub.f32 %v550, %v719
    %v723 = vrot.slane %v721, 4
    %724 = vrot.lane.b32.xlu0 %v723, 32
    %v725 = vpop.permute.xlu0 %724
    %v727 = vmul.f32 %v702, %v725
    %729 = vrot.lane.b32.xlu0 %v727, 32
    %v730 = vpop.permute.xlu0 %729
    %v732 = vadd.f32 %v715, %v730
    %v733 = vsel %vm650, 1, 0
    %734 = vset.pattern.permute.xlu0 0
    %735 = vperm.xlu0 %734, %v733
    %v736 = vpop.permute.xlu0 %735
    %vm737 = vcmp.eq.s32.totalorder %v736, 1
    %v739 = vrot.slane %v732, 4
    %740 = vrot.lane.b32.xlu0 %v739, 64
    %v741 = vpop.permute.xlu0 %740
    %v743 = vsel %vm737, %v741, %v550
    %vm744 = vcmp.gt.s32.totalorder %v89, 5
    %v745 = vpack.c.bf16 %v649, %v649
    %v747 = vsel %vm240, %v745, 0
    %749 = vmatprep.subr.bf16.mxu0 0
    %750 = vmatpush1.bf16.msra.mxu0 %v343
    %751 = vmatprep.subr.bf16.mxu0 0
    %752 = vmatpush1.bf16.msra.mxu0 %v344
    %753 = vmatprep.subr.bf16.mxu0 0
    %754 = vmatpush1.bf16.msra.mxu0 0
    %755 = vmatprep.subr.bf16.mxu0 0
    %756 = vmatpush1.bf16.msra.mxu0 0
    %757 = vmatprep.subr.bf16.mxu0 0
    %758 = vmatpush1.bf16.msra.mxu0 0
    %759 = vmatprep.subr.bf16.mxu0 0
    %760 = vmatpush1.bf16.msra.mxu0 0
    %761 = vmatprep.subr.bf16.mxu0 0
    %762 = vmatpush1.bf16.msra.mxu0 0
    %763 = vmatprep.subr.bf16.mxu0 0
    %764 = vmatpush1.bf16.msra.mxu0 0
    %765 = vmatprep.subr.bf16.mxu0 0
    %766 = vmatpush1.bf16.msra.mxu0 0
    %767 = vmatprep.subr.bf16.mxu0 0
    %768 = vmatpush1.bf16.msra.mxu0 0
    %769 = vmatprep.subr.bf16.mxu0 0
    %770 = vmatpush1.bf16.msra.mxu0 0
    %771 = vmatprep.subr.bf16.mxu0 0
    %772 = vmatpush1.bf16.msra.mxu0 0
    %773 = vmatprep.subr.bf16.mxu0 0
    %774 = vmatpush1.bf16.msra.mxu0 0
    %775 = vmatprep.subr.bf16.mxu0 0
    %776 = vmatpush1.bf16.msra.mxu0 0
    %777 = vmatprep.subr.bf16.mxu0 0
    %778 = vmatpush1.bf16.msra.mxu0 0
    %779 = vmatprep.subr.bf16.mxu0 0
    %780 = vmatpush1.bf16.msra.mxu0 0
    %781 = vmatprep.mubr.bf16.mxu0 0
    %782 = vmatmul.mubr.bf16.gmra.mrb[0].mxu0 %v747
    %v783 = vpop.f32.mrb[0].mxu0
    %v784 = vadd.f32 0.0, %v783
    %v785 = vpop.f32.mrb[0].mxu0
    %v786 = vpop.f32.mrb[0].mxu0
    %v787 = vpop.f32.mrb[0].mxu0
    %788 = vdwg.mxu0
    %v790 = vrot.slane %v784, 6
    %791 = vrot.lane.b32.xlu0 %v790, 96
    %v792 = vpop.permute.xlu0 %791
    %v794 = vadd.f32 %v188, %v792
    %v795 = vmul.f32 %v794, 0.5
    %v796 = vtanh.pop %v795
    %v797 = vmul.f32 %v796, 0.5
    %v798 = vadd.f32 %v797, 0.5
    %v799 = vadd.f32 %v190, %v792
    %v800 = vmul.f32 %v799, 0.5
    %v801 = vtanh.pop %v800
    %v802 = vmul.f32 %v801, 0.5
    %v803 = vadd.f32 %v802, 0.5
    %v804 = vadd.f32 %v784, %v411
    %v806 = vrot.slane %v804, 6
    %807 = vrot.lane.b32.xlu0 %v806, 32
    %v808 = vpop.permute.xlu0 %807
    %v810 = vmul.f32 %v798, %v808
    %812 = vrot.lane.b32.xlu0 %v810, 64
    %v813 = vpop.permute.xlu0 %812
    %v815 = vadd.f32 %v190, %v813
    %v816 = vtanh.pop %v815
    %v818 = vrot.slane %v816, 2
    %819 = vrot.lane.b32.xlu0 %v818, 96
    %v820 = vpop.permute.xlu0 %819
    %v822 = vsub.f32 %v649, %v820
    %v824 = vrot.slane %v822, 6
    %v826 = vmul.f32 %v803, %v824
    %828 = vrot.lane.b32.xlu0 %v826, 32
    %v829 = vpop.permute.xlu0 %828
    %v831 = vadd.f32 %v816, %v829
    %v832 = vsel %vm744, 1, 0
    %833 = vset.pattern.permute.xlu0 0
    %834 = vperm.xlu0 %833, %v832
    %v835 = vpop.permute.xlu0 %834
    %vm836 = vcmp.eq.s32.totalorder %v835, 1
    %v838 = vrot.slane %v831, 2
    %839 = vrot.lane.b32.xlu0 %v838, 96
    %v840 = vpop.permute.xlu0 %839
    %v842 = vsel %vm836, %v840, %v649
    %vm843 = vcmp.gt.s32.totalorder %v89, 3
    %v844 = vpack.c.bf16 %v743, %v743
    %v846 = vsel %vm240, %v844, 0
    %848 = vmatprep.subr.bf16.mxu0 0
    %849 = vmatpush1.bf16.msra.mxu0 %v236
    %850 = vmatprep.subr.bf16.mxu0 0
    %851 = vmatpush1.bf16.msra.mxu0 %v237
    %852 = vmatprep.subr.bf16.mxu0 0
    %853 = vmatpush1.bf16.msra.mxu0 0
    %854 = vmatprep.subr.bf16.mxu0 0
    %855 = vmatpush1.bf16.msra.mxu0 0
    %856 = vmatprep.subr.bf16.mxu0 0
    %857 = vmatpush1.bf16.msra.mxu0 0
    %858 = vmatprep.subr.bf16.mxu0 0
    %859 = vmatpush1.bf16.msra.mxu0 0
    %860 = vmatprep.subr.bf16.mxu0 0
    %861 = vmatpush1.bf16.msra.mxu0 0
    %862 = vmatprep.subr.bf16.mxu0 0
    %863 = vmatpush1.bf16.msra.mxu0 0
    %864 = vmatprep.subr.bf16.mxu0 0
    %865 = vmatpush1.bf16.msra.mxu0 0
    %866 = vmatprep.subr.bf16.mxu0 0
    %867 = vmatpush1.bf16.msra.mxu0 0
    %868 = vmatprep.subr.bf16.mxu0 0
    %869 = vmatpush1.bf16.msra.mxu0 0
    %870 = vmatprep.subr.bf16.mxu0 0
    %871 = vmatpush1.bf16.msra.mxu0 0
    %872 = vmatprep.subr.bf16.mxu0 0
    %873 = vmatpush1.bf16.msra.mxu0 0
    %874 = vmatprep.subr.bf16.mxu0 0
    %875 = vmatpush1.bf16.msra.mxu0 0
    %876 = vmatprep.subr.bf16.mxu0 0
    %877 = vmatpush1.bf16.msra.mxu0 0
    %878 = vmatprep.subr.bf16.mxu0 0
    %879 = vmatpush1.bf16.msra.mxu0 0
    %880 = vmatprep.mubr.bf16.mxu0 0
    %881 = vmatmul.mubr.bf16.gmra.mrb[0].mxu0 %v846
    %v882 = vpop.f32.mrb[0].mxu0
    %v883 = vadd.f32 0.0, %v882
    %v884 = vpop.f32.mrb[0].mxu0
    %v885 = vpop.f32.mrb[0].mxu0
    %v886 = vpop.f32.mrb[0].mxu0
    %887 = vdwg.mxu0
    %v889 = vrot.slane %v883, 2
    %v891 = vadd.f32 %v184, %v889
    %v892 = vmul.f32 %v891, 0.5
    %v893 = vtanh.pop %v892
    %v894 = vmul.f32 %v893, 0.5
    %v895 = vadd.f32 %v894, 0.5
    %v896 = vadd.f32 %v883, %v295
    %v898 = vrot.slane %v896, 2
    %899 = vrot.lane.b32.xlu0 %v898, 64
    %v900 = vpop.permute.xlu0 %899
    %v902 = vmul.f32 %v895, %v900
    %904 = vrot.lane.b32.xlu0 %v902, 64
    %v905 = vpop.permute.xlu0 %904
    %v907 = vadd.f32 %v184, %v905
    %v908 = vtanh.pop %v907
    %v910 = vrot.slane %v908, 6
    %911 = vrot.lane.b32.xlu0 %v910, 64
    %v912 = vpop.permute.xlu0 %911
    %v914 = vsub.f32 %v743, %v912
    %v916 = vrot.slane %v914, 2
    %917 = vrot.lane.b32.xlu0 %v916, 32
    %v918 = vpop.permute.xlu0 %917
    %v920 = vmul.f32 %v895, %v918
    %922 = vrot.lane.b32.xlu0 %v920, 32
    %v923 = vpop.permute.xlu0 %922
    %v925 = vadd.f32 %v908, %v923
    %v926 = vsel %vm843, 1, 0
    %927 = vset.pattern.permute.xlu0 0
    %928 = vperm.xlu0 %927, %v926
    %v929 = vpop.permute.xlu0 %928
    %vm930 = vcmp.eq.s32.totalorder %v929, 1
    %v932 = vrot.slane %v925, 6
    %933 = vrot.lane.b32.xlu0 %v932, 64
    %v934 = vpop.permute.xlu0 %933
    %v936 = vsel %vm930, %v934, %v743
    %vm937 = vcmp.gt.s32.totalorder %v89, 4
    %v938 = vpack.c.bf16 %v842, %v842
    %v940 = vsel %vm240, %v938, 0
    %942 = vmatprep.subr.bf16.mxu0 0
    %943 = vmatpush1.bf16.msra.mxu0 %v343
    %944 = vmatprep.subr.bf16.mxu0 0
    %945 = vmatpush1.bf16.msra.mxu0 %v344
    %946 = vmatprep.subr.bf16.mxu0 0
    %947 = vmatpush1.bf16.msra.mxu0 0
    %948 = vmatprep.subr.bf16.mxu0 0
    %949 = vmatpush1.bf16.msra.mxu0 0
    %950 = vmatprep.subr.bf16.mxu0 0
    %951 = vmatpush1.bf16.msra.mxu0 0
    %952 = vmatprep.subr.bf16.mxu0 0
    %953 = vmatpush1.bf16.msra.mxu0 0
    %954 = vmatprep.subr.bf16.mxu0 0
    %955 = vmatpush1.bf16.msra.mxu0 0
    %956 = vmatprep.subr.bf16.mxu0 0
    %957 = vmatpush1.bf16.msra.mxu0 0
    %958 = vmatprep.subr.bf16.mxu0 0
    %959 = vmatpush1.bf16.msra.mxu0 0
    %960 = vmatprep.subr.bf16.mxu0 0
    %961 = vmatpush1.bf16.msra.mxu0 0
    %962 = vmatprep.subr.bf16.mxu0 0
    %963 = vmatpush1.bf16.msra.mxu0 0
    %964 = vmatprep.subr.bf16.mxu0 0
    %965 = vmatpush1.bf16.msra.mxu0 0
    %966 = vmatprep.subr.bf16.mxu0 0
    %967 = vmatpush1.bf16.msra.mxu0 0
    %968 = vmatprep.subr.bf16.mxu0 0
    %969 = vmatpush1.bf16.msra.mxu0 0
    %970 = vmatprep.subr.bf16.mxu0 0
    %971 = vmatpush1.bf16.msra.mxu0 0
    %972 = vmatprep.subr.bf16.mxu0 0
    %973 = vmatpush1.bf16.msra.mxu0 0
    %974 = vmatprep.mubr.bf16.mxu0 0
    %975 = vmatmul.mubr.bf16.gmra.mrb[0].mxu0 %v940
    %v976 = vpop.f32.mrb[0].mxu0
    %v977 = vadd.f32 0.0, %v976
    %v978 = vpop.f32.mrb[0].mxu0
    %v979 = vpop.f32.mrb[0].mxu0
    %v980 = vpop.f32.mrb[0].mxu0
    %981 = vdwg.mxu0
    %983 = vrot.lane.b32.xlu0 %v977, 96
    %v984 = vpop.permute.xlu0 %983
    %v986 = vadd.f32 %v188, %v984
    %v987 = vmul.f32 %v986, 0.5
    %v988 = vtanh.pop %v987
    %v989 = vmul.f32 %v988, 0.5
    %v990 = vadd.f32 %v989, 0.5
    %v991 = vadd.f32 %v190, %v984
    %v992 = vmul.f32 %v991, 0.5
    %v993 = vtanh.pop %v992
    %v994 = vmul.f32 %v993, 0.5
    %v995 = vadd.f32 %v994, 0.5
    %v996 = vadd.f32 %v977, %v411
    %998 = vrot.lane.b32.xlu0 %v996, 32
    %v999 = vpop.permute.xlu0 %998
    %v1001 = vmul.f32 %v990, %v999
    %1003 = vrot.lane.b32.xlu0 %v1001, 64
    %v1004 = vpop.permute.xlu0 %1003
    %v1006 = vadd.f32 %v190, %v1004
    %v1007 = vtanh.pop %v1006
    %1009 = vrot.lane.b32.xlu0 %v1007, 96
    %v1010 = vpop.permute.xlu0 %1009
    %v1012 = vsub.f32 %v842, %v1010
    %v1013 = vmul.f32 %v995, %v1012
    %1015 = vrot.lane.b32.xlu0 %v1013, 32
    %v1016 = vpop.permute.xlu0 %1015
    %v1018 = vadd.f32 %v1007, %v1016
    %v1019 = vsel %vm937, 1, 0
    %1020 = vset.pattern.permute.xlu0 0
    %1021 = vperm.xlu0 %1020, %v1019
    %v1022 = vpop.permute.xlu0 %1021
    %vm1023 = vcmp.eq.s32.totalorder %v1022, 1
    %1025 = vrot.lane.b32.xlu0 %v842, 32
    %v1026 = vpop.permute.xlu0 %1025
    %v1028 = vsel %vm1023, %v1018, %v1026
    %v1029 = vpack.c.bf16 %v936, %v936
    %v1031 = vsel %vm240, %v1029, 0
    %1033 = vmatprep.subr.bf16.mxu0 0
    %1034 = vmatpush1.bf16.msra.mxu0 %v236
    %1035 = vmatprep.subr.bf16.mxu0 0
    %1036 = vmatpush1.bf16.msra.mxu0 %v237
    %1037 = vmatprep.subr.bf16.mxu0 0
    %1038 = vmatpush1.bf16.msra.mxu0 0
    %1039 = vmatprep.subr.bf16.mxu0 0
    %1040 = vmatpush1.bf16.msra.mxu0 0
    %1041 = vmatprep.subr.bf16.mxu0 0
    %1042 = vmatpush1.bf16.msra.mxu0 0
    %1043 = vmatprep.subr.bf16.mxu0 0
    %1044 = vmatpush1.bf16.msra.mxu0 0
    %1045 = vmatprep.subr.bf16.mxu0 0
    %1046 = vmatpush1.bf16.msra.mxu0 0
    %1047 = vmatprep.subr.bf16.mxu0 0
    %1048 = vmatpush1.bf16.msra.mxu0 0
    %1049 = vmatprep.subr.bf16.mxu0 0
    %1050 = vmatpush1.bf16.msra.mxu0 0
    %1051 = vmatprep.subr.bf16.mxu0 0
    %1052 = vmatpush1.bf16.msra.mxu0 0
    %1053 = vmatprep.subr.bf16.mxu0 0
    %1054 = vmatpush1.bf16.msra.mxu0 0
    %1055 = vmatprep.subr.bf16.mxu0 0
    %1056 = vmatpush1.bf16.msra.mxu0 0
    %1057 = vmatprep.subr.bf16.mxu0 0
    %1058 = vmatpush1.bf16.msra.mxu0 0
    %1059 = vmatprep.subr.bf16.mxu0 0
    %1060 = vmatpush1.bf16.msra.mxu0 0
    %1061 = vmatprep.subr.bf16.mxu0 0
    %1062 = vmatpush1.bf16.msra.mxu0 0
    %1063 = vmatprep.subr.bf16.mxu0 0
    %1064 = vmatpush1.bf16.msra.mxu0 0
    %1065 = vmatprep.mubr.bf16.mxu0 0
    %1066 = vmatmul.mubr.bf16.gmra.mrb[0].mxu0 %v1031
    %v1067 = vpop.f32.mrb[0].mxu0
    %v1068 = vadd.f32 0.0, %v1067
    %v1069 = vpop.f32.mrb[0].mxu0
    %v1070 = vpop.f32.mrb[0].mxu0
    %v1071 = vpop.f32.mrb[0].mxu0
    %1072 = vdwg.mxu0
    %v1073 = vadd.f32 %v188, %v1068
    %v1074 = vmul.f32 %v1073, 0.5
    %v1075 = vtanh.pop %v1074
    %v1076 = vmul.f32 %v1075, 0.5
    %v1077 = vadd.f32 %v1076, 0.5
    %v1078 = vadd.f32 %v1068, %v295
    %1080 = vrot.lane.b32.xlu0 %v1078, 64
    %v1081 = vpop.permute.xlu0 %1080
    %v1083 = vmul.f32 %v1077, %v1081
    %1085 = vrot.lane.b32.xlu0 %v1083, 64
    %v1086 = vpop.permute.xlu0 %1085
    %v1088 = vadd.f32 %v188, %v1086
    %v1089 = vtanh.pop %v1088
    %1091 = vrot.lane.b32.xlu0 %v1089, 64
    %v1092 = vpop.permute.xlu0 %1091
    %v1094 = vsub.f32 %v936, %v1092
    %1096 = vrot.lane.b32.xlu0 %v1094, 32
    %v1097 = vpop.permute.xlu0 %1096
    %v1099 = vmul.f32 %v1077, %v1097
    %1101 = vrot.lane.b32.xlu0 %v1099, 32
    %v1102 = vpop.permute.xlu0 %1101
    %v1104 = vadd.f32 %v1089, %v1102
    %1106 = vrot.lane.b32.xlu0 %v936, 64
    %v1107 = vpop.permute.xlu0 %1106
    %v1109 = vsel %vm1023, %v1104, %v1107
    %v1110 = vpack.c.bf16 %v1028, %v1028
    %1112 = vrot.lane.b32.xlu0 %v1110, 96
    %v1113 = vpop.permute.xlu0 %1112
    %v1115 = vsel %vm240, %v1113, 0
    %1117 = vmatprep.subr.bf16.mxu0 0
    %1118 = vmatpush1.bf16.msra.mxu0 %v343
    %1119 = vmatprep.subr.bf16.mxu0 0
    %1120 = vmatpush1.bf16.msra.mxu0 %v344
    %1121 = vmatprep.subr.bf16.mxu0 0
    %1122 = vmatpush1.bf16.msra.mxu0 0
    %1123 = vmatprep.subr.bf16.mxu0 0
    %1124 = vmatpush1.bf16.msra.mxu0 0
    %1125 = vmatprep.subr.bf16.mxu0 0
    %1126 = vmatpush1.bf16.msra.mxu0 0
    %1127 = vmatprep.subr.bf16.mxu0 0
    %1128 = vmatpush1.bf16.msra.mxu0 0
    %1129 = vmatprep.subr.bf16.mxu0 0
    %1130 = vmatpush1.bf16.msra.mxu0 0
    %1131 = vmatprep.subr.bf16.mxu0 0
    %1132 = vmatpush1.bf16.msra.mxu0 0
    %1133 = vmatprep.subr.bf16.mxu0 0
    %1134 = vmatpush1.bf16.msra.mxu0 0
    %1135 = vmatprep.subr.bf16.mxu0 0
    %1136 = vmatpush1.bf16.msra.mxu0 0
    %1137 = vmatprep.subr.bf16.mxu0 0
    %1138 = vmatpush1.bf16.msra.mxu0 0
    %1139 = vmatprep.subr.bf16.mxu0 0
    %1140 = vmatpush1.bf16.msra.mxu0 0
    %1141 = vmatprep.subr.bf16.mxu0 0
    %1142 = vmatpush1.bf16.msra.mxu0 0
    %1143 = vmatprep.subr.bf16.mxu0 0
    %1144 = vmatpush1.bf16.msra.mxu0 0
    %1145 = vmatprep.subr.bf16.mxu0 0
    %1146 = vmatpush1.bf16.msra.mxu0 0
    %1147 = vmatprep.subr.bf16.mxu0 0
    %1148 = vmatpush1.bf16.msra.mxu0 0
    %1149 = vmatprep.mubr.bf16.mxu0 0
    %1150 = vmatmul.mubr.bf16.gmra.mrb[0].mxu0 %v1115
    %v1151 = vpop.f32.mrb[0].mxu0
    %v1152 = vadd.f32 0.0, %v1151
    %v1153 = vpop.f32.mrb[0].mxu0
    %v1154 = vpop.f32.mrb[0].mxu0
    %v1155 = vpop.f32.mrb[0].mxu0
    %1156 = vdwg.mxu0
    %v1158 = vrot.slane %v1152, 2
    %1159 = vrot.lane.b32.xlu0 %v1158, 96
    %v1160 = vpop.permute.xlu0 %1159
    %v1162 = vadd.f32 %v184, %v1160
    %v1163 = vmul.f32 %v1162, 0.5
    %v1164 = vtanh.pop %v1163
    %v1165 = vmul.f32 %v1164, 0.5
    %v1166 = vadd.f32 %v1165, 0.5
    %v1167 = vadd.f32 %v186, %v1160
    %v1168 = vmul.f32 %v1167, 0.5
    %v1169 = vtanh.pop %v1168
    %v1170 = vmul.f32 %v1169, 0.5
    %v1171 = vadd.f32 %v1170, 0.5
    %v1172 = vadd.f32 %v1152, %v411
    %v1174 = vrot.slane %v1172, 2
    %1175 = vrot.lane.b32.xlu0 %v1174, 32
    %v1176 = vpop.permute.xlu0 %1175
    %v1178 = vmul.f32 %v1166, %v1176
    %1180 = vrot.lane.b32.xlu0 %v1178, 64
    %v1181 = vpop.permute.xlu0 %1180
    %v1183 = vadd.f32 %v186, %v1181
    %v1184 = vtanh.pop %v1183
    %v1186 = vrot.slane %v1184, 6
    %v1188 = vsub.f32 %v1028, %v1186
    %v1190 = vrot.slane %v1188, 2
    %1191 = vrot.lane.b32.xlu0 %v1190, 96
    %v1192 = vpop.permute.xlu0 %1191
    %v1194 = vmul.f32 %v1171, %v1192
    %1196 = vrot.lane.b32.xlu0 %v1194, 32
    %v1197 = vpop.permute.xlu0 %1196
    %v1199 = vadd.f32 %v1184, %v1197
    %v1201 = vrot.slane %v1199, 6
    %1202 = vrot.lane.b32.xlu0 %v1201, 96
    %v1203 = vpop.permute.xlu0 %1202
    %1206 = vrot.lane.b32.xlu0 %v1028, 96
    %v1207 = vpop.permute.xlu0 %1206
    %v1209 = vsel %vm930, %v1203, %v1207
    %v1210 = vpack.c.bf16 %v1109, %v1109
    %1212 = vrot.lane.b32.xlu0 %v1210, 64
    %v1213 = vpop.permute.xlu0 %1212
    %v1215 = vsel %vm240, %v1213, 0
    %1217 = vmatprep.subr.bf16.mxu0 0
    %1218 = vmatpush1.bf16.msra.mxu0 %v236
    %1219 = vmatprep.subr.bf16.mxu0 0
    %1220 = vmatpush1.bf16.msra.mxu0 %v237
    %1221 = vmatprep.subr.bf16.mxu0 0
    %1222 = vmatpush1.bf16.msra.mxu0 0
    %1223 = vmatprep.subr.bf16.mxu0 0
    %1224 = vmatpush1.bf16.msra.mxu0 0
    %1225 = vmatprep.subr.bf16.mxu0 0
    %1226 = vmatpush1.bf16.msra.mxu0 0
    %1227 = vmatprep.subr.bf16.mxu0 0
    %1228 = vmatpush1.bf16.msra.mxu0 0
    %1229 = vmatprep.subr.bf16.mxu0 0
    %1230 = vmatpush1.bf16.msra.mxu0 0
    %1231 = vmatprep.subr.bf16.mxu0 0
    %1232 = vmatpush1.bf16.msra.mxu0 0
    %1233 = vmatprep.subr.bf16.mxu0 0
    %1234 = vmatpush1.bf16.msra.mxu0 0
    %1235 = vmatprep.subr.bf16.mxu0 0
    %1236 = vmatpush1.bf16.msra.mxu0 0
    %1237 = vmatprep.subr.bf16.mxu0 0
    %1238 = vmatpush1.bf16.msra.mxu0 0
    %1239 = vmatprep.subr.bf16.mxu0 0
    %1240 = vmatpush1.bf16.msra.mxu0 0
    %1241 = vmatprep.subr.bf16.mxu0 0
    %1242 = vmatpush1.bf16.msra.mxu0 0
    %1243 = vmatprep.subr.bf16.mxu0 0
    %1244 = vmatpush1.bf16.msra.mxu0 0
    %1245 = vmatprep.subr.bf16.mxu0 0
    %1246 = vmatpush1.bf16.msra.mxu0 0
    %1247 = vmatprep.subr.bf16.mxu0 0
    %1248 = vmatpush1.bf16.msra.mxu0 0
    %1249 = vmatprep.mubr.bf16.mxu0 0
    %1250 = vmatmul.mubr.bf16.gmra.mrb[0].mxu0 %v1215
    %v1251 = vpop.f32.mrb[0].mxu0
    %v1252 = vadd.f32 0.0, %v1251
    %v1253 = vpop.f32.mrb[0].mxu0
    %v1254 = vpop.f32.mrb[0].mxu0
    %v1255 = vpop.f32.mrb[0].mxu0
    %1256 = vdwg.mxu0
    %v1258 = vrot.slane %v1252, 6
    %v1260 = vadd.f32 %v188, %v1258
    %v1261 = vmul.f32 %v1260, 0.5
    %v1262 = vtanh.pop %v1261
    %v1263 = vmul.f32 %v1262, 0.5
    %v1264 = vadd.f32 %v1263, 0.5
    %v1265 = vadd.f32 %v1252, %v295
    %v1267 = vrot.slane %v1265, 6
    %1268 = vrot.lane.b32.xlu0 %v1267, 64
    %v1269 = vpop.permute.xlu0 %1268
    %v1271 = vmul.f32 %v1264, %v1269
    %1273 = vrot.lane.b32.xlu0 %v1271, 64
    %v1274 = vpop.permute.xlu0 %1273
    %v1276 = vadd.f32 %v188, %v1274
    %v1277 = vtanh.pop %v1276
    %v1279 = vrot.slane %v1277, 2
    %v1281 = vsub.f32 %v1109, %v1279
    %v1283 = vrot.slane %v1281, 6
    %1284 = vrot.lane.b32.xlu0 %v1283, 96
    %v1285 = vpop.permute.xlu0 %1284
    %v1287 = vmul.f32 %v1264, %v1285
    %1289 = vrot.lane.b32.xlu0 %v1287, 32
    %v1290 = vpop.permute.xlu0 %1289
    %v1292 = vadd.f32 %v1277, %v1290
    %v1294 = vrot.slane %v1292, 2
    %1295 = vrot.lane.b32.xlu0 %v1294, 64
    %v1296 = vpop.permute.xlu0 %1295
    %1299 = vrot.lane.b32.xlu0 %v1109, 64
    %v1300 = vpop.permute.xlu0 %1299
    %v1302 = vsel %vm836, %v1296, %v1300
    %v1303 = vpack.c.bf16 %v1209, %v1209
    %v1305 = vsel %vm240, %v1303, 0
    %1307 = vmatprep.subr.bf16.mxu0 0
    %1308 = vmatpush1.bf16.msra.mxu0 %v343
    %1309 = vmatprep.subr.bf16.mxu0 0
    %1310 = vmatpush1.bf16.msra.mxu0 %v344
    %1311 = vmatprep.subr.bf16.mxu0 0
    %1312 = vmatpush1.bf16.msra.mxu0 0
    %1313 = vmatprep.subr.bf16.mxu0 0
    %1314 = vmatpush1.bf16.msra.mxu0 0
    %1315 = vmatprep.subr.bf16.mxu0 0
    %1316 = vmatpush1.bf16.msra.mxu0 0
    %1317 = vmatprep.subr.bf16.mxu0 0
    %1318 = vmatpush1.bf16.msra.mxu0 0
    %1319 = vmatprep.subr.bf16.mxu0 0
    %1320 = vmatpush1.bf16.msra.mxu0 0
    %1321 = vmatprep.subr.bf16.mxu0 0
    %1322 = vmatpush1.bf16.msra.mxu0 0
    %1323 = vmatprep.subr.bf16.mxu0 0
    %1324 = vmatpush1.bf16.msra.mxu0 0
    %1325 = vmatprep.subr.bf16.mxu0 0
    %1326 = vmatpush1.bf16.msra.mxu0 0
    %1327 = vmatprep.subr.bf16.mxu0 0
    %1328 = vmatpush1.bf16.msra.mxu0 0
    %1329 = vmatprep.subr.bf16.mxu0 0
    %1330 = vmatpush1.bf16.msra.mxu0 0
    %1331 = vmatprep.subr.bf16.mxu0 0
    %1332 = vmatpush1.bf16.msra.mxu0 0
    %1333 = vmatprep.subr.bf16.mxu0 0
    %1334 = vmatpush1.bf16.msra.mxu0 0
    %1335 = vmatprep.subr.bf16.mxu0 0
    %1336 = vmatpush1.bf16.msra.mxu0 0
    %1337 = vmatprep.subr.bf16.mxu0 0
    %1338 = vmatpush1.bf16.msra.mxu0 0
    %1339 = vmatprep.mubr.bf16.mxu0 0
    %1340 = vmatmul.mubr.bf16.gmra.mrb[0].mxu0 %v1305
    %v1341 = vpop.f32.mrb[0].mxu0
    %v1342 = vadd.f32 0.0, %v1341
    %v1343 = vpop.f32.mrb[0].mxu0
    %v1344 = vpop.f32.mrb[0].mxu0
    %v1345 = vpop.f32.mrb[0].mxu0
    %1346 = vdwg.mxu0
    %v1348 = vrot.slane %v1342, 4
    %1349 = vrot.lane.b32.xlu0 %v1348, 96
    %v1350 = vpop.permute.xlu0 %1349
    %v1352 = vadd.f32 %v184, %v1350
    %v1353 = vmul.f32 %v1352, 0.5
    %v1354 = vtanh.pop %v1353
    %v1355 = vmul.f32 %v1354, 0.5
    %v1356 = vadd.f32 %v1355, 0.5
    %v1357 = vadd.f32 %v186, %v1350
    %v1358 = vmul.f32 %v1357, 0.5
    %v1359 = vtanh.pop %v1358
    %v1360 = vmul.f32 %v1359, 0.5
    %v1361 = vadd.f32 %v1360, 0.5
    %v1362 = vadd.f32 %v1342, %v411
    %v1364 = vrot.slane %v1362, 4
    %1365 = vrot.lane.b32.xlu0 %v1364, 32
    %v1366 = vpop.permute.xlu0 %1365
    %v1368 = vmul.f32 %v1356, %v1366
    %1370 = vrot.lane.b32.xlu0 %v1368, 64
    %v1371 = vpop.permute.xlu0 %1370
    %v1373 = vadd.f32 %v186, %v1371
    %v1374 = vtanh.pop %v1373
    %v1376 = vrot.slane %v1374, 4
    %1377 = vrot.lane.b32.xlu0 %v1376, 96
    %v1378 = vpop.permute.xlu0 %1377
    %v1380 = vsub.f32 %v1209, %v1378
    %v1382 = vrot.slane %v1380, 4
    %v1384 = vmul.f32 %v1361, %v1382
    %1386 = vrot.lane.b32.xlu0 %v1384, 32
    %v1387 = vpop.permute.xlu0 %1386
    %v1389 = vadd.f32 %v1374, %v1387
    %v1391 = vrot.slane %v1389, 4
    %1392 = vrot.lane.b32.xlu0 %v1391, 96
    %v1393 = vpop.permute.xlu0 %1392
    %v1395 = vsel %vm737, %v1393, %v1209
    %v1396 = vpack.c.bf16 %v1302, %v1302
    %v1398 = vsel %vm240, %v1396, 0
    %1400 = vmatprep.subr.bf16.mxu0 0
    %1401 = vmatpush1.bf16.msra.mxu0 %v236
    %1402 = vmatprep.subr.bf16.mxu0 0
    %1403 = vmatpush1.bf16.msra.mxu0 %v237
    %1404 = vmatprep.subr.bf16.mxu0 0
    %1405 = vmatpush1.bf16.msra.mxu0 0
    %1406 = vmatprep.subr.bf16.mxu0 0
    %1407 = vmatpush1.bf16.msra.mxu0 0
    %1408 = vmatprep.subr.bf16.mxu0 0
    %1409 = vmatpush1.bf16.msra.mxu0 0
    %1410 = vmatprep.subr.bf16.mxu0 0
    %1411 = vmatpush1.bf16.msra.mxu0 0
    %1412 = vmatprep.subr.bf16.mxu0 0
    %1413 = vmatpush1.bf16.msra.mxu0 0
    %1414 = vmatprep.subr.bf16.mxu0 0
    %1415 = vmatpush1.bf16.msra.mxu0 0
    %1416 = vmatprep.subr.bf16.mxu0 0
    %1417 = vmatpush1.bf16.msra.mxu0 0
    %1418 = vmatprep.subr.bf16.mxu0 0
    %1419 = vmatpush1.bf16.msra.mxu0 0
    %1420 = vmatprep.subr.bf16.mxu0 0
    %1421 = vmatpush1.bf16.msra.mxu0 0
    %1422 = vmatprep.subr.bf16.mxu0 0
    %1423 = vmatpush1.bf16.msra.mxu0 0
    %1424 = vmatprep.subr.bf16.mxu0 0
    %1425 = vmatpush1.bf16.msra.mxu0 0
    %1426 = vmatprep.subr.bf16.mxu0 0
    %1427 = vmatpush1.bf16.msra.mxu0 0
    %1428 = vmatprep.subr.bf16.mxu0 0
    %1429 = vmatpush1.bf16.msra.mxu0 0
    %1430 = vmatprep.subr.bf16.mxu0 0
    %1431 = vmatpush1.bf16.msra.mxu0 0
    %1432 = vmatprep.mubr.bf16.mxu0 0
    %1433 = vmatmul.mubr.bf16.gmra.mrb[0].mxu0 %v1398
    %v1434 = vpop.f32.mrb[0].mxu0
    %v1435 = vadd.f32 0.0, %v1434
    %v1436 = vpop.f32.mrb[0].mxu0
    %v1437 = vpop.f32.mrb[0].mxu0
    %v1438 = vpop.f32.mrb[0].mxu0
    %1439 = vdwg.mxu0
    %v1441 = vrot.slane %v1435, 4
    %v1443 = vadd.f32 %v188, %v1441
    %v1444 = vmul.f32 %v1443, 0.5
    %v1445 = vtanh.pop %v1444
    %v1446 = vmul.f32 %v1445, 0.5
    %v1447 = vadd.f32 %v1446, 0.5
    %v1448 = vadd.f32 %v1435, %v295
    %v1450 = vrot.slane %v1448, 4
    %1451 = vrot.lane.b32.xlu0 %v1450, 64
    %v1452 = vpop.permute.xlu0 %1451
    %v1454 = vmul.f32 %v1447, %v1452
    %1456 = vrot.lane.b32.xlu0 %v1454, 64
    %v1457 = vpop.permute.xlu0 %1456
    %v1459 = vadd.f32 %v188, %v1457
    %v1460 = vtanh.pop %v1459
    %v1462 = vrot.slane %v1460, 4
    %1463 = vrot.lane.b32.xlu0 %v1462, 64
    %v1464 = vpop.permute.xlu0 %1463
    %v1466 = vsub.f32 %v1302, %v1464
    %v1468 = vrot.slane %v1466, 4
    %1469 = vrot.lane.b32.xlu0 %v1468, 32
    %v1470 = vpop.permute.xlu0 %1469
    %v1472 = vmul.f32 %v1447, %v1470
    %1474 = vrot.lane.b32.xlu0 %v1472, 32
    %v1475 = vpop.permute.xlu0 %1474
    %v1477 = vadd.f32 %v1460, %v1475
    %v1479 = vrot.slane %v1477, 4
    %1480 = vrot.lane.b32.xlu0 %v1479, 64
    %v1481 = vpop.permute.xlu0 %1480
    %v1483 = vsel %vm643, %v1481, %v1302
    %v1484 = vpack.c.bf16 %v1395, %v1395
    %v1486 = vsel %vm240, %v1484, 0
    %1488 = vmatprep.subr.bf16.mxu0 0
    %1489 = vmatpush1.bf16.msra.mxu0 %v343
    %1490 = vmatprep.subr.bf16.mxu0 0
    %1491 = vmatpush1.bf16.msra.mxu0 %v344
    %1492 = vmatprep.subr.bf16.mxu0 0
    %1493 = vmatpush1.bf16.msra.mxu0 0
    %1494 = vmatprep.subr.bf16.mxu0 0
    %1495 = vmatpush1.bf16.msra.mxu0 0
    %1496 = vmatprep.subr.bf16.mxu0 0
    %1497 = vmatpush1.bf16.msra.mxu0 0
    %1498 = vmatprep.subr.bf16.mxu0 0
    %1499 = vmatpush1.bf16.msra.mxu0 0
    %1500 = vmatprep.subr.bf16.mxu0 0
    %1501 = vmatpush1.bf16.msra.mxu0 0
    %1502 = vmatprep.subr.bf16.mxu0 0
    %1503 = vmatpush1.bf16.msra.mxu0 0
    %1504 = vmatprep.subr.bf16.mxu0 0
    %1505 = vmatpush1.bf16.msra.mxu0 0
    %1506 = vmatprep.subr.bf16.mxu0 0
    %1507 = vmatpush1.bf16.msra.mxu0 0
    %1508 = vmatprep.subr.bf16.mxu0 0
    %1509 = vmatpush1.bf16.msra.mxu0 0
    %1510 = vmatprep.subr.bf16.mxu0 0
    %1511 = vmatpush1.bf16.msra.mxu0 0
    %1512 = vmatprep.subr.bf16.mxu0 0
    %1513 = vmatpush1.bf16.msra.mxu0 0
    %1514 = vmatprep.subr.bf16.mxu0 0
    %1515 = vmatpush1.bf16.msra.mxu0 0
    %1516 = vmatprep.subr.bf16.mxu0 0
    %1517 = vmatpush1.bf16.msra.mxu0 0
    %1518 = vmatprep.subr.bf16.mxu0 0
    %1519 = vmatpush1.bf16.msra.mxu0 0
    %1520 = vmatprep.mubr.bf16.mxu0 0
    %1521 = vmatmul.mubr.bf16.gmra.mrb[0].mxu0 %v1486
    %v1522 = vpop.f32.mrb[0].mxu0
    %v1523 = vadd.f32 0.0, %v1522
    %v1524 = vpop.f32.mrb[0].mxu0
    %v1525 = vpop.f32.mrb[0].mxu0
    %v1526 = vpop.f32.mrb[0].mxu0
    %1527 = vdwg.mxu0
    %v1529 = vrot.slane %v1523, 6
    %1530 = vrot.lane.b32.xlu0 %v1529, 96
    %v1531 = vpop.permute.xlu0 %1530
    %v1533 = vadd.f32 %v184, %v1531
    %v1534 = vmul.f32 %v1533, 0.5
    %v1535 = vtanh.pop %v1534
    %v1536 = vmul.f32 %v1535, 0.5
    %v1537 = vadd.f32 %v1536, 0.5
    %v1538 = vadd.f32 %v186, %v1531
    %v1539 = vmul.f32 %v1538, 0.5
    %v1540 = vtanh.pop %v1539
    %v1541 = vmul.f32 %v1540, 0.5
    %v1542 = vadd.f32 %v1541, 0.5
    %v1543 = vadd.f32 %v1523, %v411
    %v1545 = vrot.slane %v1543, 6
    %1546 = vrot.lane.b32.xlu0 %v1545, 32
    %v1547 = vpop.permute.xlu0 %1546
    %v1549 = vmul.f32 %v1537, %v1547
    %1551 = vrot.lane.b32.xlu0 %v1549, 64
    %v1552 = vpop.permute.xlu0 %1551
    %v1554 = vadd.f32 %v186, %v1552
    %v1555 = vtanh.pop %v1554
    %v1557 = vrot.slane %v1555, 2
    %1558 = vrot.lane.b32.xlu0 %v1557, 96
    %v1559 = vpop.permute.xlu0 %1558
    %v1561 = vsub.f32 %v1395, %v1559
    %v1563 = vrot.slane %v1561, 6
    %v1565 = vmul.f32 %v1542, %v1563
    %1567 = vrot.lane.b32.xlu0 %v1565, 32
    %v1568 = vpop.permute.xlu0 %1567
    %v1570 = vadd.f32 %v1555, %v1568
    %v1572 = vrot.slane %v1570, 2
    %1573 = vrot.lane.b32.xlu0 %v1572, 96
    %v1574 = vpop.permute.xlu0 %1573
    %v1576 = vsel %vm540, %v1574, %v1395
    %v1577 = vpack.c.bf16 %v1483, %v1483
    %v1579 = vsel %vm240, %v1577, 0
    %1581 = vmatprep.subr.bf16.mxu0 0
    %1582 = vmatpush1.bf16.msra.mxu0 %v236
    %1583 = vmatprep.subr.bf16.mxu0 0
    %1584 = vmatpush1.bf16.msra.mxu0 %v237
    %1585 = vmatprep.subr.bf16.mxu0 0
    %1586 = vmatpush1.bf16.msra.mxu0 0
    %1587 = vmatprep.subr.bf16.mxu0 0
    %1588 = vmatpush1.bf16.msra.mxu0 0
    %1589 = vmatprep.subr.bf16.mxu0 0
    %1590 = vmatpush1.bf16.msra.mxu0 0
    %1591 = vmatprep.subr.bf16.mxu0 0
    %1592 = vmatpush1.bf16.msra.mxu0 0
    %1593 = vmatprep.subr.bf16.mxu0 0
    %1594 = vmatpush1.bf16.msra.mxu0 0
    %1595 = vmatprep.subr.bf16.mxu0 0
    %1596 = vmatpush1.bf16.msra.mxu0 0
    %1597 = vmatprep.subr.bf16.mxu0 0
    %1598 = vmatpush1.bf16.msra.mxu0 0
    %1599 = vmatprep.subr.bf16.mxu0 0
    %1600 = vmatpush1.bf16.msra.mxu0 0
    %1601 = vmatprep.subr.bf16.mxu0 0
    %1602 = vmatpush1.bf16.msra.mxu0 0
    %1603 = vmatprep.subr.bf16.mxu0 0
    %1604 = vmatpush1.bf16.msra.mxu0 0
    %1605 = vmatprep.subr.bf16.mxu0 0
    %1606 = vmatpush1.bf16.msra.mxu0 0
    %1607 = vmatprep.subr.bf16.mxu0 0
    %1608 = vmatpush1.bf16.msra.mxu0 0
    %1609 = vmatprep.subr.bf16.mxu0 0
    %1610 = vmatpush1.bf16.msra.mxu0 0
    %1611 = vmatprep.subr.bf16.mxu0 0
    %1612 = vmatpush1.bf16.msra.mxu0 0
    %1613 = vmatprep.mubr.bf16.mxu0 0
    %1614 = vmatmul.mubr.bf16.gmra.mrb[0].mxu0 %v1579
    %v1615 = vpop.f32.mrb[0].mxu0
    %v1616 = vadd.f32 0.0, %v1615
    %v1617 = vpop.f32.mrb[0].mxu0
    %v1618 = vpop.f32.mrb[0].mxu0
    %v1619 = vpop.f32.mrb[0].mxu0
    %1620 = vdwg.mxu0
    %v1622 = vrot.slane %v1616, 2
    %v1624 = vadd.f32 %v188, %v1622
    %v1625 = vmul.f32 %v1624, 0.5
    %v1626 = vtanh.pop %v1625
    %v1627 = vmul.f32 %v1626, 0.5
    %v1628 = vadd.f32 %v1627, 0.5
    %v1629 = vadd.f32 %v1616, %v295
    %v1631 = vrot.slane %v1629, 2
    %1632 = vrot.lane.b32.xlu0 %v1631, 64
    %v1633 = vpop.permute.xlu0 %1632
    %v1635 = vmul.f32 %v1628, %v1633
    %1637 = vrot.lane.b32.xlu0 %v1635, 64
    %v1638 = vpop.permute.xlu0 %1637
    %v1640 = vadd.f32 %v188, %v1638
    %v1641 = vtanh.pop %v1640
    %v1643 = vrot.slane %v1641, 6
    %1644 = vrot.lane.b32.xlu0 %v1643, 64
    %v1645 = vpop.permute.xlu0 %1644
    %v1647 = vsub.f32 %v1483, %v1645
    %v1649 = vrot.slane %v1647, 2
    %1650 = vrot.lane.b32.xlu0 %v1649, 32
    %v1651 = vpop.permute.xlu0 %1650
    %v1653 = vmul.f32 %v1628, %v1651
    %1655 = vrot.lane.b32.xlu0 %v1653, 32
    %v1656 = vpop.permute.xlu0 %1655
    %v1658 = vadd.f32 %v1641, %v1656
    %v1660 = vrot.slane %v1658, 6
    %1661 = vrot.lane.b32.xlu0 %v1660, 64
    %v1662 = vpop.permute.xlu0 %1661
    %v1664 = vsel %vm445, %v1662, %v1483
    %v1665 = vpack.c.bf16 %v1576, %v1576
    %v1667 = vsel %vm240, %v1665, 0
    %1669 = vmatprep.subr.bf16.mxu0 0
    %1670 = vmatpush1.bf16.msra.mxu0 %v343
    %1671 = vmatprep.subr.bf16.mxu0 0
    %1672 = vmatpush1.bf16.msra.mxu0 %v344
    %1673 = vmatprep.subr.bf16.mxu0 0
    %1674 = vmatpush1.bf16.msra.mxu0 0
    %1675 = vmatprep.subr.bf16.mxu0 0
    %1676 = vmatpush1.bf16.msra.mxu0 0
    %1677 = vmatprep.subr.bf16.mxu0 0
    %1678 = vmatpush1.bf16.msra.mxu0 0
    %1679 = vmatprep.subr.bf16.mxu0 0
    %1680 = vmatpush1.bf16.msra.mxu0 0
    %1681 = vmatprep.subr.bf16.mxu0 0
    %1682 = vmatpush1.bf16.msra.mxu0 0
    %1683 = vmatprep.subr.bf16.mxu0 0
    %1684 = vmatpush1.bf16.msra.mxu0 0
    %1685 = vmatprep.subr.bf16.mxu0 0
    %1686 = vmatpush1.bf16.msra.mxu0 0
    %1687 = vmatprep.subr.bf16.mxu0 0
    %1688 = vmatpush1.bf16.msra.mxu0 0
    %1689 = vmatprep.subr.bf16.mxu0 0
    %1690 = vmatpush1.bf16.msra.mxu0 0
    %1691 = vmatprep.subr.bf16.mxu0 0
    %1692 = vmatpush1.bf16.msra.mxu0 0
    %1693 = vmatprep.subr.bf16.mxu0 0
    %1694 = vmatpush1.bf16.msra.mxu0 0
    %1695 = vmatprep.subr.bf16.mxu0 0
    %1696 = vmatpush1.bf16.msra.mxu0 0
    %1697 = vmatprep.subr.bf16.mxu0 0
    %1698 = vmatpush1.bf16.msra.mxu0 0
    %1699 = vmatprep.subr.bf16.mxu0 0
    %1700 = vmatpush1.bf16.msra.mxu0 0
    %1701 = vmatprep.mubr.bf16.mxu0 0
    %1702 = vmatmul.mubr.bf16.gmra.mrb[0].mxu0 %v1667
    %v1703 = vpop.f32.mrb[0].mxu0
    %v1704 = vadd.f32 0.0, %v1703
    %v1705 = vpop.f32.mrb[0].mxu0
    %v1706 = vpop.f32.mrb[0].mxu0
    %v1707 = vpop.f32.mrb[0].mxu0
    %1708 = vdwg.mxu0
    %1710 = vrot.lane.b32.xlu0 %v1704, 96
    %v1711 = vpop.permute.xlu0 %1710
    %v1713 = vadd.f32 %v184, %v1711
    %v1714 = vmul.f32 %v1713, 0.5
    %v1715 = vtanh.pop %v1714
    %v1716 = vmul.f32 %v1715, 0.5
    %v1717 = vadd.f32 %v1716, 0.5
    %v1718 = vadd.f32 %v186, %v1711
    %v1719 = vmul.f32 %v1718, 0.5
    %v1720 = vtanh.pop %v1719
    %v1721 = vmul.f32 %v1720, 0.5
    %v1722 = vadd.f32 %v1721, 0.5
    %v1723 = vadd.f32 %v1704, %v411
    %1725 = vrot.lane.b32.xlu0 %v1723, 32
    %v1726 = vpop.permute.xlu0 %1725
    %v1728 = vmul.f32 %v1717, %v1726
    %1730 = vrot.lane.b32.xlu0 %v1728, 64
    %v1731 = vpop.permute.xlu0 %1730
    %v1733 = vadd.f32 %v186, %v1731
    %v1734 = vtanh.pop %v1733
    %1736 = vrot.lane.b32.xlu0 %v1734, 96
    %v1737 = vpop.permute.xlu0 %1736
    %v1739 = vsub.f32 %v1576, %v1737
    %v1740 = vmul.f32 %v1722, %v1739
    %1742 = vrot.lane.b32.xlu0 %v1740, 32
    %v1743 = vpop.permute.xlu0 %1742
    %v1745 = vadd.f32 %v1734, %v1743
    %1747 = vrot.lane.b32.xlu0 %v1576, 32
    %v1748 = vpop.permute.xlu0 %1747
    %v1750 = vsel %vm328, %v1745, %v1748
    %v1751 = vpack.c.bf16 %v1664, %v1664
    %v1752 = vld [vmem:[#allocation8] sm:$0xf]
    %v1753 = vld [vmem:[#allocation8 + $0x4] sm:$0xf]
    %v1754 = vld [vmem:[#allocation8 + $0x8] sm:$0xf]
    %v1755 = vld [vmem:[#allocation8 + $0xc] sm:$0xf]
    %v1756 = vpack.c.bf16 %v1750, %v1750
    %s1757 = scalar_lea.vmem [#allocation8], 16
    %v1758 = vld [vmem:[%s1757] sm:$0xf]
    %v1759 = vld [vmem:[%s1757 + $0x4] sm:$0xf]
    %v1760 = vld [vmem:[%s1757 + $0x8] sm:$0xf]
    %v1761 = vld [vmem:[%s1757 + $0xc] sm:$0xf]
    %1763 = vrot.lane.b32.xlu0 %v1756, 96
    %v1764 = vpop.permute.xlu0 %1763
    %v1769 = vunpack.c.l.b16 %v1758
    %v1770 = vunpack.c.l.b16 %v1759
    %v1771 = vunpack.c.l.b16 %v1760
    %v1772 = vunpack.c.l.b16 %v1761
    %v1773 = vpack.c.b16 %v1770, %v1769
    %v1774 = vpack.c.b16 %v1772, %v1771
    %v1778 = vsel %vm240, %v1764, 0
    %1780 = vmatprep.subr.bf16.mxu0 0
    %1781 = vmatpush1.bf16.msra.mxu0 %v1773
    %1782 = vmatprep.subr.bf16.mxu0 0
    %1783 = vmatpush1.bf16.msra.mxu0 %v1774
    %1784 = vmatprep.subr.bf16.mxu0 0
    %1785 = vmatpush1.bf16.msra.mxu0 0
    %1786 = vmatprep.subr.bf16.mxu0 0
    %1787 = vmatpush1.bf16.msra.mxu0 0
    %1788 = vmatprep.subr.bf16.mxu0 0
    %1789 = vmatpush1.bf16.msra.mxu0 0
    %1790 = vmatprep.subr.bf16.mxu0 0
    %1791 = vmatpush1.bf16.msra.mxu0 0
    %1792 = vmatprep.subr.bf16.mxu0 0
    %1793 = vmatpush1.bf16.msra.mxu0 0
    %1794 = vmatprep.subr.bf16.mxu0 0
    %1795 = vmatpush1.bf16.msra.mxu0 0
    %1796 = vmatprep.subr.bf16.mxu0 0
    %1797 = vmatpush1.bf16.msra.mxu0 0
    %1798 = vmatprep.subr.bf16.mxu0 0
    %1799 = vmatpush1.bf16.msra.mxu0 0
    %1800 = vmatprep.subr.bf16.mxu0 0
    %1801 = vmatpush1.bf16.msra.mxu0 0
    %1802 = vmatprep.subr.bf16.mxu0 0
    %1803 = vmatpush1.bf16.msra.mxu0 0
    %1804 = vmatprep.subr.bf16.mxu0 0
    %1805 = vmatpush1.bf16.msra.mxu0 0
    %1806 = vmatprep.subr.bf16.mxu0 0
    %1807 = vmatpush1.bf16.msra.mxu0 0
    %1808 = vmatprep.subr.bf16.mxu0 0
    %1809 = vmatpush1.bf16.msra.mxu0 0
    %1810 = vmatprep.subr.bf16.mxu0 0
    %1811 = vmatpush1.bf16.msra.mxu0 0
    %1812 = vmatprep.mubr.bf16.mxu0 0
    %1813 = vmatmul.mubr.bf16.gmra.mrb[0].mxu0 %v1778
    %v1814 = vpop.f32.mrb[0].mxu0
    %v1815 = vadd.f32 0.0, %v1814
    %v1816 = vpop.f32.mrb[0].mxu0
    %v1817 = vpop.f32.mrb[0].mxu0
    %v1818 = vpop.f32.mrb[0].mxu0
    %1819 = vdwg.mxu0
    %v1824 = vunpack.c.l.b16 %v1752
    %v1825 = vunpack.c.l.b16 %v1753
    %v1826 = vunpack.c.l.b16 %v1754
    %v1827 = vunpack.c.l.b16 %v1755
    %v1828 = vpack.c.b16 %v1825, %v1824
    %v1829 = vpack.c.b16 %v1827, %v1826
    %v1833 = vsel %vm240, %v1751, 0
    %1835 = vmatprep.subr.bf16.mxu0 0
    %1836 = vmatpush1.bf16.msra.mxu0 %v1828
    %1837 = vmatprep.subr.bf16.mxu0 0
    %1838 = vmatpush1.bf16.msra.mxu0 %v1829
    %1839 = vmatprep.subr.bf16.mxu0 0
    %1840 = vmatpush1.bf16.msra.mxu0 0
    %1841 = vmatprep.subr.bf16.mxu0 0
    %1842 = vmatpush1.bf16.msra.mxu0 0
    %1843 = vmatprep.subr.bf16.mxu0 0
    %1844 = vmatpush1.bf16.msra.mxu0 0
    %1845 = vmatprep.subr.bf16.mxu0 0
    %1846 = vmatpush1.bf16.msra.mxu0 0
    %1847 = vmatprep.subr.bf16.mxu0 0
    %1848 = vmatpush1.bf16.msra.mxu0 0
    %1849 = vmatprep.subr.bf16.mxu0 0
    %1850 = vmatpush1.bf16.msra.mxu0 0
    %1851 = vmatprep.subr.bf16.mxu0 0
    %1852 = vmatpush1.bf16.msra.mxu0 0
    %1853 = vmatprep.subr.bf16.mxu0 0
    %1854 = vmatpush1.bf16.msra.mxu0 0
    %1855 = vmatprep.subr.bf16.mxu0 0
    %1856 = vmatpush1.bf16.msra.mxu0 0
    %1857 = vmatprep.subr.bf16.mxu0 0
    %1858 = vmatpush1.bf16.msra.mxu0 0
    %1859 = vmatprep.subr.bf16.mxu0 0
    %1860 = vmatpush1.bf16.msra.mxu0 0
    %1861 = vmatprep.subr.bf16.mxu0 0
    %1862 = vmatpush1.bf16.msra.mxu0 0
    %1863 = vmatprep.subr.bf16.mxu0 0
    %1864 = vmatpush1.bf16.msra.mxu0 0
    %1865 = vmatprep.subr.bf16.mxu0 0
    %1866 = vmatpush1.bf16.msra.mxu0 0
    %1867 = vmatprep.mubr.bf16.mxu0 0
    %1868 = vmatmul.mubr.bf16.gmra.mrb[0].mxu0 %v1833
    %v1869 = vpop.f32.mrb[0].mxu0
    %v1870 = vadd.f32 %v1815, %v1869
    %v1871 = vpop.f32.mrb[0].mxu0
    %v1872 = vpop.f32.mrb[0].mxu0
    %v1873 = vpop.f32.mrb[0].mxu0
    %1874 = vdwg.mxu0
    %v1876 = vlaneseq
    %v1877 = vshrl.u32 %v1876, 7
    %v1878 = vsub.s32 0, %v1877
    %v1879 = vrot.slane %v209, %v1878
    %v1881 = vadd.f32 %v1870, %v1879
    %vm1882 = vcmask 254976
    %v1883 = vsel %vm1882, %v1881, 0.0
    %1884 = vadd.xlane.f32.xlu0 %v1883
    %v1885 = vpop.xlane.xlu0 %1884
    %v1886 = vrcp.pop 32.0
    %v1887 = vmul.f32 %v1885, %v1886
    %v1888 = vsub.f32 %v1881, %v1887
    %v1889 = vmul.f32 %v1888, %v1888
    %v1890 = vsel %vm1882, %v1889, 0.0
    %1891 = vadd.xlane.f32.xlu0 %v1890
    %v1892 = vpop.xlane.xlu0 %1891
    %v1893 = vmul.f32 %v1892, %v1886
    %v1894 = vadd.f32 %v1893, 1e-05
    %v1895 = vrsqrt.pop %v1894
    %v1896 = vmul.f32 %v1888, %v1895
    %v1898 = vlaneseq
    %v1899 = vshrl.u32 %v1898, 7
    %v1900 = vsub.s32 0, %v1899
    %v1901 = vrot.slane %v211, %v1900
    %v1903 = vmul.f32 %v1896, %v1901
    %v1905 = vlaneseq
    %v1906 = vshrl.u32 %v1905, 7
    %v1907 = vsub.s32 0, %v1906
    %v1908 = vrot.slane %v213, %v1907
    %v1910 = vadd.f32 %v1903, %v1908
    %vm1911 = vcmp.gt.f32.partialorder %v1910, 0.0
    %v1912 = vmul.f32 %v1910, 0.2
    %v1913 = vsel %vm1911, %v1910, %v1912
    %v1914 = vpack.c.bf16 %v1913, %v1913
    %v1915 = vld [vmem:[%s7] sm:$0xf]
    %v1916 = vld [vmem:[%s7 + $0x4] sm:$0xf]
    %v1917 = vld [vmem:[%s7 + $0x8] sm:$0xf]
    %v1918 = vld [vmem:[%s7 + $0xc] sm:$0xf]
    %v1919 = vld [vmem:[%s8] sm:$0x1]
    %v1921 = vlaneseq
    %v1922 = vshrl.u32 %v1921, 7
    %v1923 = vsub.s32 0, %v1922
    %v1924 = vrot.slane %v1919, %v1923
    %v1930 = vunpack.c.l.b16 %v1915
    %v1931 = vunpack.c.l.b16 %v1916
    %v1932 = vunpack.c.l.b16 %v1917
    %v1933 = vunpack.c.l.b16 %v1918
    %v1934 = vpack.c.b16 %v1931, %v1930
    %v1935 = vpack.c.b16 %v1933, %v1932
    %v1939 = vsel %vm240, %v1914, 0
    %1941 = vmatprep.subr.bf16.mxu0 0
    %1942 = vmatpush1.bf16.msra.mxu0 %v1934
    %1943 = vmatprep.subr.bf16.mxu0 0
    %1944 = vmatpush1.bf16.msra.mxu0 %v1935
    %1945 = vmatprep.subr.bf16.mxu0 0
    %1946 = vmatpush1.bf16.msra.mxu0 0
    %1947 = vmatprep.subr.bf16.mxu0 0
    %1948 = vmatpush1.bf16.msra.mxu0 0
    %1949 = vmatprep.subr.bf16.mxu0 0
    %1950 = vmatpush1.bf16.msra.mxu0 0
    %1951 = vmatprep.subr.bf16.mxu0 0
    %1952 = vmatpush1.bf16.msra.mxu0 0
    %1953 = vmatprep.subr.bf16.mxu0 0
    %1954 = vmatpush1.bf16.msra.mxu0 0
    %1955 = vmatprep.subr.bf16.mxu0 0
    %1956 = vmatpush1.bf16.msra.mxu0 0
    %1957 = vmatprep.subr.bf16.mxu0 0
    %1958 = vmatpush1.bf16.msra.mxu0 0
    %1959 = vmatprep.subr.bf16.mxu0 0
    %1960 = vmatpush1.bf16.msra.mxu0 0
    %1961 = vmatprep.subr.bf16.mxu0 0
    %1962 = vmatpush1.bf16.msra.mxu0 0
    %1963 = vmatprep.subr.bf16.mxu0 0
    %1964 = vmatpush1.bf16.msra.mxu0 0
    %1965 = vmatprep.subr.bf16.mxu0 0
    %1966 = vmatpush1.bf16.msra.mxu0 0
    %1967 = vmatprep.subr.bf16.mxu0 0
    %1968 = vmatpush1.bf16.msra.mxu0 0
    %1969 = vmatprep.subr.bf16.mxu0 0
    %1970 = vmatpush1.bf16.msra.mxu0 0
    %1971 = vmatprep.subr.bf16.mxu0 0
    %1972 = vmatpush1.bf16.msra.mxu0 0
    %1973 = vmatprep.mubr.bf16.mxu0 0
    %1974 = vmatmul.mubr.bf16.gmra.mrb[0].mxu0 %v1939
    %v1975 = vpop.f32.mrb[0].mxu0
    %v1976 = vadd.f32 %v1924, %v1975
    %v1977 = vpop.f32.mrb[0].mxu0
    %v1978 = vpop.f32.mrb[0].mxu0
    %v1979 = vpop.f32.mrb[0].mxu0
    %1980 = vdwg.mxu0
    %1981 = vst.msk [vmem:[#allocation10] sm:$0x3] %vm1882, %v1976
    // Predicated region
    $region54: #{tpu_custom_call.1} parent=1 // pred_check
      _
    $region55: #{tpu_custom_call.1} parent=1 // pred_check_branch
      %1983 = sbr.rel (0) target = $region57
    $region56: #{tpu_custom_call.1} parent=1 // pred_region
      %s1985 = ssub.s32 32, 32
      %1986 = vsyncadd [#allocation4], %s1985
      %s1988 = sshll.u32 [#allocation10], 4
      %s1989 = int_to_ptr.vmem [resolvable:$true] %s1988
      %1991 = dma.vmem_to_hbm [thread:$0]  %s1989, 32, %s9, [#allocation4]
    $region57: #{tpu_custom_call.1} parent=1 // pred_fallthru
      _
    // Predicated region
    $region58: #{tpu_custom_call.1} parent=1 // pred_check
      _
    $region59: #{tpu_custom_call.1} parent=1 // pred_check_branch
      %1993 = sbr.rel (0) target = $region61
    $region60: #{tpu_custom_call.1} parent=1 // pred_region
      %1994 = dma.done [#allocation4], 32
    $region61: #{tpu_custom_call.1} parent=1 // pred_fallthru
      _
    %1995 = vsyncpa [#allocation3], 1
    %1996 = vsyncpa [#allocation6], 1
    %1997 = vsyncpa [#allocation9], 1
    %1998 = vsyncpa [#allocation4], 1

</llo_original>
